<compile_context>
chip_gen: v6e
topology: v6e:2x2x1
jax: 0.10.0
libtpu: 0.0.40
codegen_flags: <defaults>
</compile_context>

<pallas_src>
import functools

import jax
import jax.numpy as jnp
from jax.experimental import pallas as pl
from jax.experimental.pallas import tpu as pltpu

DENSENET_FEATS = 1024      # densenet121 classifier in_features
EFFICIENTNET_FEATS = 1280  # efficientnet_b0 classifier in_features
FUSED_FEATS = DENSENET_FEATS + EFFICIENTNET_FEATS   # 2304, multiple of 128
NUM_CLASSES = 2


def _pick_spatial_tile(S, max_tile=512):
    """Largest power-of-two tile (<= max_tile) that divides S, else S itself."""
    for t in (512, 256, 128, 64, 32, 16, 8):
        if t <= max_tile and S % t == 0:
            return t
    return S


def _combined_kernel(x_ref, w_proj_ref, w_cls_ref, b_cls_ref,
                     out_ref, acc_d_ref, acc_e_ref, *, t_rows):
    """Grid = (B, S_tiles). Accumulate pooled features over S, classify at end."""
    s = pl.program_id(1)

    @pl.when(s == 0)
    def _init():
        acc_d_ref[...] = jnp.zeros_like(acc_d_ref)
        acc_e_ref[...] = jnp.zeros_like(acc_e_ref)

    # x tile: (tS, Cin_pad) bf16; column C is constant 1.0 so the matmul also
    # applies the projection bias (folded into that row of w_proj).
    x = x_ref[0]

    # ---- DenseNet branch: matmul -> ReLU -> sublane-aligned partial sum ----
    hd = jnp.dot(x, w_proj_ref[:, :DENSENET_FEATS],
                 preferred_element_type=jnp.float32)          # (tS, 1024) f32
    hd = jnp.maximum(hd, 0.0)
    acc_d_ref[...] += jnp.sum(
        hd.reshape(t_rows, 8, DENSENET_FEATS), axis=0)        # (8, 1024) vadds

    # ---- EfficientNet branch: matmul -> SiLU (single-EUP tanh sigmoid) ----
    he = jnp.dot(x, w_proj_ref[:, DENSENET_FEATS:],
                 preferred_element_type=jnp.float32)          # (tS, 1280) f32
    sig = 0.5 * (jnp.tanh(0.5 * he) + 1.0)
    he = he * sig
    acc_e_ref[...] += jnp.sum(
        he.reshape(t_rows, 8, EFFICIENTNET_FEATS), axis=0)    # (8, 1280) vadds

    @pl.when(s == pl.num_programs(1) - 1)
    def _finalize():
        # Single cross-sublane collapse per batch element (XLU, once).
        feats_d = jnp.sum(acc_d_ref[...], axis=0, keepdims=True)   # (1, 1024)
        feats_e = jnp.sum(acc_e_ref[...], axis=0, keepdims=True)   # (1, 1280)
        # w_cls already has 0.5/S folded in; b_cls has the 0.5 averaging.
        logits = (jnp.dot(feats_d, w_cls_ref[:DENSENET_FEATS],
                          preferred_element_type=jnp.float32)
                  + jnp.dot(feats_e, w_cls_ref[DENSENET_FEATS:],
                            preferred_element_type=jnp.float32)
                  + b_cls_ref[...])
        out_ref[0] = logits


def init_params(key, in_channels=3, num_classes=NUM_CLASSES):
    ks = jax.random.split(key, 8)

    def nrm(k, shape, scale):
        return (scale * jax.random.normal(k, shape)).astype(jnp.float32)

    return {
        "w_d_proj": nrm(ks[0], (in_channels, DENSENET_FEATS), 0.1),
        "b_d_proj": nrm(ks[1], (1, DENSENET_FEATS), 0.01),
        "w_d_cls":  nrm(ks[2], (DENSENET_FEATS, num_classes), 0.02),
        "b_d_cls":  nrm(ks[3], (1, num_classes), 0.01),
        "w_e_proj": nrm(ks[4], (in_channels, EFFICIENTNET_FEATS), 0.1),
        "b_e_proj": nrm(ks[5], (1, EFFICIENTNET_FEATS), 0.01),
        "w_e_cls":  nrm(ks[6], (EFFICIENTNET_FEATS, num_classes), 0.02),
        "b_e_cls":  nrm(ks[7], (1, num_classes), 0.01),
    }


def combined_forward(x_nchw, params):
    """Wrapper: NCHW -> (B, S, Cin_pad) glue + weight fusion in JAX, compute in Pallas."""
    B, C, H, W = x_nchw.shape
    S = H * W
    num_classes = params["w_d_cls"].shape[1]
    assert S % 8 == 0, "spatial size must be a multiple of 8 for the sublane-aligned pool"

    # NCHW -> (B, S, C); pad channels to a multiple of 8 with room for a bias
    # column, set that column to 1.0, stream as bf16.
    cin_pad = max(8, ((C + 1 + 7) // 8) * 8)
    x = jnp.transpose(x_nchw, (0, 2, 3, 1)).reshape(B, S, C).astype(jnp.float32)
    x = jnp.pad(x, ((0, 0), (0, 0), (0, cin_pad - C)))
    x = x.at[:, :, C].set(1.0)                      # bias column (exact in bf16)
    x = x.astype(jnp.bfloat16)

    # Fused projection weight (Cin_pad, 2304): both branches side by side,
    # concatenated biases folded into row C, remaining pad rows zero.
    w_proj = jnp.concatenate([params["w_d_proj"], params["w_e_proj"]], axis=1)
    b_proj = jnp.concatenate([params["b_d_proj"], params["b_e_proj"]], axis=1)
    w_proj = jnp.concatenate(
        [w_proj, b_proj, jnp.zeros((cin_pad - C - 1, FUSED_FEATS), jnp.float32)],
        axis=0).astype(jnp.bfloat16)

    # Fused classifier: (sum_d | sum_e) @ vstack(Wd, We) * (0.5/S) + 0.5*(bd+be)
    # == (logits_d + logits_e) / 2 with global-average-pooled features.
    w_cls = (jnp.concatenate([params["w_d_cls"], params["w_e_cls"]], axis=0)
             * (0.5 / S)).astype(jnp.float32)
    b_cls = (0.5 * (params["b_d_cls"] + params["b_e_cls"])).astype(jnp.float32)

    t_s = _pick_spatial_tile(S)
    n_s = S // t_s

    kernel = functools.partial(_combined_kernel, t_rows=t_s // 8)

    flops = 2 * B * S * cin_pad * FUSED_FEATS + 2 * B * FUSED_FEATS * num_classes
    bytes_accessed = int(x.size * 2 + w_proj.size * 2
                         + (w_cls.size + b_cls.size + B * num_classes) * 4)

    out = pl.pallas_call(
        kernel,
        out_shape=jax.ShapeDtypeStruct((B, 1, num_classes), jnp.float32),
        grid_spec=pltpu.PrefetchScalarGridSpec(
            num_scalar_prefetch=0,
            grid=(B, n_s),
            in_specs=[
                # x: one spatial tile per step, double-buffered by the pipeline.
                pl.BlockSpec((1, t_s, cin_pad), lambda b, s: (b, s, 0)),
                # Weights/bias: same block every step -> stay resident in VMEM.
                pl.BlockSpec((cin_pad, FUSED_FEATS), lambda b, s: (0, 0)),
                pl.BlockSpec((FUSED_FEATS, num_classes), lambda b, s: (0, 0)),
                pl.BlockSpec((1, num_classes), lambda b, s: (0, 0)),
            ],
            out_specs=pl.BlockSpec((1, 1, num_classes), lambda b, s: (b, 0, 0)),
            scratch_shapes=[
                pltpu.VMEM((8, DENSENET_FEATS), jnp.float32),
                pltpu.VMEM((8, EFFICIENTNET_FEATS), jnp.float32),
            ],
        ),
        compiler_params=pltpu.CompilerParams(
            dimension_semantics=("parallel", "arbitrary"),
            vmem_limit_bytes=48 * 1024 * 1024),
        cost_estimate=pl.CostEstimate(
            flops=flops,
            transcendentals=B * S * EFFICIENTNET_FEATS,
            bytes_accessed=bytes_accessed),
    )(x, w_proj, w_cls, b_cls)

    return out.reshape(B, num_classes)


if __name__ == "__main__":
    key = jax.random.PRNGKey(0)
    k_x, k_p = jax.random.split(key)

    # Small deterministic input consistent with the module (3-channel image, NCHW).
    x = jax.random.normal(k_x, (2, 3, 16, 16), dtype=jnp.float32)
    params = init_params(k_p, in_channels=3, num_classes=NUM_CLASSES)

    out = combined_forward(x, params)
    out = jax.block_until_ready(out)
    assert out.shape == (2, NUM_CLASSES)
    assert jnp.all(jnp.isfinite(out))
    print("KERNEL_OK")
</pallas_src>

<mosaic_0001>
module attributes {stable_mosaic.version = 11 : i64} {
  func.func @_combined_kernel(%arg0: i32, %arg1: i32, %arg2: memref<1x256x8xbf16, #tpu.memory_space<vmem>>, %arg3: memref<8x2304xbf16, #tpu.memory_space<vmem>>, %arg4: memref<2304x2xf32, #tpu.memory_space<vmem>>, %arg5: memref<1x2xf32, #tpu.memory_space<vmem>>, %arg6: memref<1x1x2xf32, #tpu.memory_space<vmem>>, %arg7: memref<8x1024xf32, #tpu.memory_space<vmem>>, %arg8: memref<8x1280xf32, #tpu.memory_space<vmem>>) attributes {dimension_semantics = [#tpu.dimension_semantics<parallel>, #tpu.dimension_semantics<arbitrary>], iteration_bounds = array<i64: 2, 1>, scalar_prefetch = 0 : i64, scratch_operands = 2 : i64, tpu.core_type = #tpu.core_type<tc>, window_params = [{transform_indices = @transform_0, window_bounds = array<i64: 1, 256, 8>}, {pipeline_mode = #tpu.pipeline_mode<synchronous>, transform_indices = @transform_1, window_bounds = array<i64: 8, 2304>}, {pipeline_mode = #tpu.pipeline_mode<synchronous>, transform_indices = @transform_2, window_bounds = array<i64: 2304, 2>}, {pipeline_mode = #tpu.pipeline_mode<synchronous>, transform_indices = @transform_3, window_bounds = array<i64: 1, 2>}, {transform_indices = @transform_4, window_bounds = array<i64: 1, 1, 2>}]} {
    %c0_i32 = arith.constant 0 : i32
    %0 = arith.cmpi eq, %arg1, %c0_i32 : i32
    %1 = arith.extui %0 : i1 to i32
    %c0_i32_0 = arith.constant 0 : i32
    %2 = arith.cmpi ne, %1, %c0_i32_0 : i32
    scf.if %2 {
      %cst_23 = arith.constant 0.000000e+00 : f32
      %32 = vector.broadcast %cst_23 : f32 to vector<8x1024xf32>
      %c0_24 = arith.constant 0 : index
      %c0_25 = arith.constant 0 : index
      %33 = vector.load %arg7[%c0_24, %c0_25] : memref<8x1024xf32, #tpu.memory_space<vmem>>, vector<8x1024xf32>
      tpu.vector_store %arg7[%c0_24, %c0_25], %32 {strides = array<i32>} : memref<8x1024xf32, #tpu.memory_space<vmem>>, vector<8x1024xf32>,
      %cst_26 = arith.constant 0.000000e+00 : f32
      %34 = vector.broadcast %cst_26 : f32 to vector<8x1280xf32>
      %c0_27 = arith.constant 0 : index
      %c0_28 = arith.constant 0 : index
      %35 = vector.load %arg8[%c0_27, %c0_28] : memref<8x1280xf32, #tpu.memory_space<vmem>>, vector<8x1280xf32>
      tpu.vector_store %arg8[%c0_27, %c0_28], %34 {strides = array<i32>} : memref<8x1280xf32, #tpu.memory_space<vmem>>, vector<8x1280xf32>,
    } else {
    }
    %c0 = arith.constant 0 : index
    %c0_1 = arith.constant 0 : index
    %c0_2 = arith.constant 0 : index
    %3 = vector.load %arg2[%c0, %c0_1, %c0_2] : memref<1x256x8xbf16, #tpu.memory_space<vmem>>, vector<1x256x8xbf16>
    %4 = vector.shape_cast %3 : vector<1x256x8xbf16> to vector<256x8xbf16>
    %c0_3 = arith.constant 0 : index
    %c0_4 = arith.constant 0 : index
    %5 = vector.load %arg3[%c0_3, %c0_4] : memref<8x2304xbf16, #tpu.memory_space<vmem>>, vector<8x1024xbf16>
    %cst = arith.constant dense<0.000000e+00> : vector<256x1024xf32>
    %6 = tpu.matmul %4, %5, %cst {dimension_numbers = #tpu.dot_dimension_numbers<[1], [0], [0], [1], [0, 0, 1, 1], [], []>} : vector<256x8xbf16>, vector<8x1024xbf16>, vector<256x1024xf32> -> vector<256x1024xf32>
    %cst_5 = arith.constant 0.000000e+00 : f32
    %7 = vector.broadcast %cst_5 : f32 to vector<256x1024xf32>
    %8 = arith.maximumf %6, %7 : vector<256x1024xf32>
    %c0_6 = arith.constant 0 : index
    %c0_7 = arith.constant 0 : index
    %9 = vector.load %arg7[%c0_6, %c0_7] : memref<8x1024xf32, #tpu.memory_space<vmem>>, vector<8x1024xf32>
    %10 = vector.shape_cast %8 : vector<256x1024xf32> to vector<32x8x1024xf32>
    %cst_8 = arith.constant dense<0.000000e+00> : vector<8x1024xf32>
    %11 = vector.multi_reduction <add>, %10, %cst_8 [0] : vector<32x8x1024xf32> to vector<8x1024xf32>
    %12 = arith.addf %9, %11 : vector<8x1024xf32>
    %c0_9 = arith.constant 0 : index
    %c0_10 = arith.constant 0 : index
    %13 = vector.load %arg7[%c0_9, %c0_10] : memref<8x1024xf32, #tpu.memory_space<vmem>>, vector<8x1024xf32>
    tpu.vector_store %arg7[%c0_9, %c0_10], %12 {strides = array<i32>} : memref<8x1024xf32, #tpu.memory_space<vmem>>, vector<8x1024xf32>,
    %c0_11 = arith.constant 0 : index
    %c1024 = arith.constant 1024 : index
    %14 = vector.load %arg3[%c0_11, %c1024] : memref<8x2304xbf16, #tpu.memory_space<vmem>>, vector<8x1280xbf16>
    %cst_12 = arith.constant dense<0.000000e+00> : vector<256x1280xf32>
    %15 = tpu.matmul %4, %14, %cst_12 {dimension_numbers = #tpu.dot_dimension_numbers<[1], [0], [0], [1], [0, 0, 1, 1], [], []>} : vector<256x8xbf16>, vector<8x1280xbf16>, vector<256x1280xf32> -> vector<256x1280xf32>
    %cst_13 = arith.constant 5.000000e-01 : f32
    %16 = vector.broadcast %cst_13 : f32 to vector<256x1280xf32>
    %17 = arith.mulf %16, %15 : vector<256x1280xf32>
    %18 = math.tanh %17 : vector<256x1280xf32>
    %cst_14 = arith.constant 1.000000e+00 : f32
    %19 = vector.broadcast %cst_14 : f32 to vector<256x1280xf32>
    %20 = arith.addf %18, %19 : vector<256x1280xf32>
    %cst_15 = arith.constant 5.000000e-01 : f32
    %21 = vector.broadcast %cst_15 : f32 to vector<256x1280xf32>
    %22 = arith.mulf %21, %20 : vector<256x1280xf32>
    %23 = arith.mulf %15, %22 : vector<256x1280xf32>
    %c0_16 = arith.constant 0 : index
    %c0_17 = arith.constant 0 : index
    %24 = vector.load %arg8[%c0_16, %c0_17] : memref<8x1280xf32, #tpu.memory_space<vmem>>, vector<8x1280xf32>
    %25 = vector.shape_cast %23 : vector<256x1280xf32> to vector<32x8x1280xf32>
    %cst_18 = arith.constant dense<0.000000e+00> : vector<8x1280xf32>
    %26 = vector.multi_reduction <add>, %25, %cst_18 [0] : vector<32x8x1280xf32> to vector<8x1280xf32>
    %27 = arith.addf %24, %26 : vector<8x1280xf32>
    %c0_19 = arith.constant 0 : index
    %c0_20 = arith.constant 0 : index
    %28 = vector.load %arg8[%c0_19, %c0_20] : memref<8x1280xf32, #tpu.memory_space<vmem>>, vector<8x1280xf32>
    tpu.vector_store %arg8[%c0_19, %c0_20], %27 {strides = array<i32>} : memref<8x1280xf32, #tpu.memory_space<vmem>>, vector<8x1280xf32>,
    %c0_i32_21 = arith.constant 0 : i32
    %29 = arith.cmpi eq, %arg1, %c0_i32_21 : i32
    %30 = arith.extui %29 : i1 to i32
    %c0_i32_22 = arith.constant 0 : i32
    %31 = arith.cmpi ne, %30, %c0_i32_22 : i32
    scf.if %31 {
      %c0_23 = arith.constant 0 : index
      %c0_24 = arith.constant 0 : index
      %32 = vector.load %arg7[%c0_23, %c0_24] : memref<8x1024xf32, #tpu.memory_space<vmem>>, vector<8x1024xf32>
      %cst_25 = arith.constant dense<0.000000e+00> : vector<1024xf32>
      %33 = vector.multi_reduction <add>, %32, %cst_25 [0] : vector<8x1024xf32> to vector<1024xf32>
      %34 = vector.shape_cast %33 : vector<1024xf32> to vector<1x1024xf32>
      %c0_26 = arith.constant 0 : index
      %c0_27 = arith.constant 0 : index
      %35 = vector.load %arg8[%c0_26, %c0_27] : memref<8x1280xf32, #tpu.memory_space<vmem>>, vector<8x1280xf32>
      %cst_28 = arith.constant dense<0.000000e+00> : vector<1280xf32>
      %36 = vector.multi_reduction <add>, %35, %cst_28 [0] : vector<8x1280xf32> to vector<1280xf32>
      %37 = vector.shape_cast %36 : vector<1280xf32> to vector<1x1280xf32>
      %c0_29 = arith.constant 0 : index
      %c0_30 = arith.constant 0 : index
      %38 = vector.load %arg4[%c0_29, %c0_30] : memref<2304x2xf32, #tpu.memory_space<vmem>>, vector<1024x2xf32>
      %cst_31 = arith.constant dense<0.000000e+00> : vector<1x2xf32>
      %39 = tpu.matmul %34, %38, %cst_31 {dimension_numbers = #tpu.dot_dimension_numbers<[1], [0], [0], [1], [0, 0, 1, 1], [], []>} : vector<1x1024xf32>, vector<1024x2xf32>, vector<1x2xf32> -> vector<1x2xf32>
      %c1024_32 = arith.constant 1024 : index
      %c0_33 = arith.constant 0 : index
      %40 = vector.load %arg4[%c1024_32, %c0_33] : memref<2304x2xf32, #tpu.memory_space<vmem>>, vector<1280x2xf32>
      %cst_34 = arith.constant dense<0.000000e+00> : vector<1x2xf32>
      %41 = tpu.matmul %37, %40, %cst_34 {dimension_numbers = #tpu.dot_dimension_numbers<[1], [0], [0], [1], [0, 0, 1, 1], [], []>} : vector<1x1280xf32>, vector<1280x2xf32>, vector<1x2xf32> -> vector<1x2xf32>
      %42 = arith.addf %39, %41 : vector<1x2xf32>
      %c0_35 = arith.constant 0 : index
      %c0_36 = arith.constant 0 : index
      %43 = vector.load %arg5[%c0_35, %c0_36] : memref<1x2xf32, #tpu.memory_space<vmem>>, vector<1x2xf32>
      %44 = arith.addf %42, %43 : vector<1x2xf32>
      %c0_37 = arith.constant 0 : index
      %c0_38 = arith.constant 0 : index
      %c0_39 = arith.constant 0 : index
      %45 = vector.load %arg6[%c0_37, %c0_38, %c0_39] : memref<1x1x2xf32, #tpu.memory_space<vmem>>, vector<1x1x2xf32>
      %46 = vector.shape_cast %45 : vector<1x1x2xf32> to vector<1x2xf32>
      %47 = vector.shape_cast %44 : vector<1x2xf32> to vector<1x1x2xf32>
      tpu.vector_store %arg6[%c0_37, %c0_38, %c0_39], %47 {strides = array<i32>} : memref<1x1x2xf32, #tpu.memory_space<vmem>>, vector<1x1x2xf32>,
    } else {
    }
    return
  }
  func.func @transform_0(%arg0: i32, %arg1: i32) -> (i32, i32, i32) {
    %c0_i32 = arith.constant 0 : i32
    %c0_i32_0 = arith.constant 0 : i32
    return %arg0, %arg1, %c0_i32 : i32, i32, i32
  }
  func.func @transform_1(%arg0: i32, %arg1: i32) -> (i32, i32) {
    %c0_i32 = arith.constant 0 : i32
    %c0_i32_0 = arith.constant 0 : i32
    %c0_i32_1 = arith.constant 0 : i32
    return %c0_i32, %c0_i32_0 : i32, i32
  }
  func.func @transform_2(%arg0: i32, %arg1: i32) -> (i32, i32) {
    %c0_i32 = arith.constant 0 : i32
    %c0_i32_0 = arith.constant 0 : i32
    %c0_i32_1 = arith.constant 0 : i32
    return %c0_i32, %c0_i32_0 : i32, i32
  }
  func.func @transform_3(%arg0: i32, %arg1: i32) -> (i32, i32) {
    %c0_i32 = arith.constant 0 : i32
    %c0_i32_0 = arith.constant 0 : i32
    %c0_i32_1 = arith.constant 0 : i32
    return %c0_i32, %c0_i32_0 : i32, i32
  }
  func.func @transform_4(%arg0: i32, %arg1: i32) -> (i32, i32, i32) {
    %c0_i32 = arith.constant 0 : i32
    %c0_i32_0 = arith.constant 0 : i32
    %c0_i32_1 = arith.constant 0 : i32
    return %arg0, %c0_i32, %c0_i32_0 : i32, i32, i32
  }
}

</mosaic_0001>

<llo_original>
// kernel: tpu_custom_call.1
$region0: #{tpu_custom_call.1}
  #allocation0 [shape = 'u32[]', space=smem, size = 0x4, offset = 0x4, fixed_abs, tag = 'smem constant byte address 0x4 - core index']
  #allocation1 [shape = 'u32[144,128]{1,0:T(1,128)}', space=vmem, size = 0x12000, scoped, tag = 'internal scratch']
  #allocation2 [shape = 'f32[8,1024]{1,0:T(8,128)}', space=vmem, size = 0x8000, scoped, tag = 'scratch operand']
  #allocation3 [shape = 'f32[8,1280]{1,0:T(8,128)}', space=vmem, size = 0xa000, scoped, tag = 'scratch operand']
  %s0 = inlined_call_operand.vmem [shape: bf16[2,256,8], index: 0, kind: input, shape index: {}]
  %s1 = inlined_call_operand.vmem [shape: bf16[8,2304], index: 1, kind: input, shape index: {}]
  %s2 = inlined_call_operand.vmem [shape: f32[2304,2], index: 2, kind: input, shape index: {}]
  %s3 = inlined_call_operand.vmem [shape: f32[1,2], index: 3, kind: input, shape index: {}]
  %s4 = inlined_call_operand.hbm [shape: f32[2,1,2], index: 4, kind: output, shape index: {}]
  %s5 = sld [smem:[#allocation0]]
  $region57: #{tpu_custom_call.1} parent=0
    _
  %s7 = ssub.s32 1, %s5
  %s8 = scalar_select 0, %s7, %s5
  $region1: #{tpu_custom_call.1} parent=0
    #allocation4 [shape = 'u8[1024]{0}', space=vmem, size = 0x400, scoped, tag = 'output window, operand 0']
    #allocation5 [shape = 's32[2]{0}', space=sflag, size = 0x8, scoped, tag = 'scoped memory for tpu_custom_call.1']
    %9 = vsyncpa [#allocation5], 0
    %s10 = scalar_lea.sflag [#allocation5], 1
    %11 = vsyncpa %s10, 0
    loop: start=0, step=1, limit=4
    $region2: #{tpu_custom_call.1} parent=1 // loop_pre_header
      _
    $region3: #{tpu_custom_call.1} parent=1 // loop_header
      %s13 = sphi 0, %s17
      %p14 = scmp.ge.s32.totalorder %s13, 4
      %s20 = sphi 0, %s32
      %s21 = sphi 0, %s28
      %s22 = sphi 0, %s20
      %s23 = sphi 0, %s21
      %s24 = sphi 0, %s22
      %s25 = sphi 0, %s23
      %s37 = sphi 0, %s39
      %s40 = sphi 0, %s37
      %s41 = sphi 0, %s40
      %s57 = sphi 0, %s41
      %s61 = sphi 0, %s61
      %s63 = sphi 0, %s61
      %s64 = sphi 0, %s63
      %s78 = sphi 0, %s64
      %s82 = sphi 0, %s82
      %s84 = sphi 0, %s82
      %s85 = sphi 0, %s84
      %s99 = sphi 0, %s85
      %s103 = sphi 0, %s103
      %s105 = sphi 0, %s103
      %s106 = sphi 0, %s105
      %s120 = sphi 0, %s106
      %s126 = sphi 0, %s128
      %s129 = sphi 0, %s126
      %s130 = sphi 0, %s129
      %s146 = sphi 0, %s130
    $region4: #{tpu_custom_call.1} parent=1 // loop_header_branch
      %16 = sbr.rel (%p14) target = $region8
    $region5: #{tpu_custom_call.1} parent=1 // loop_body
      %s18 = ssub.s32 %s13, 1
      %s19 = ssub.s32 %s13, 2
      %s26 = sadd.s32 1, %s21
      %p27 = scmp.ge.s32.totalorder %s26, 1
      %s28 = scalar_select %p27, 0, %s26
      %s29 = sadd.s32 1, %s20
      %s30 = scalar_select %p27, %s29, %s20
      %p31 = scmp.ge.s32.totalorder %s30, 2
      %s32 = scalar_select %p31, 0, %s30
      %s33 = ssub.s32 %s20, %s32
      %s34 = ssub.s32 %s21, %s28
      %s35 = sor.u32 %s33, %s34
      %p36 = scmp.eq.s32.totalorder %s35, 0
      %s38 = sadd.s32 %s37, 1
      %s39 = scalar_select %p36, %s37, %s38
      %p42 = pneg %p36
      %p43 = scmp.eq.s32.totalorder %s13, 1
      %p44 = por %p42, %p43
      %p45 = scmp.ne.s32.totalorder %s37, %s40
      %p46 = scmp.eq.s32.totalorder %s13, 0
      %p47 = por %p45, %p46
      %p48 = scmp.ne.s32.totalorder %s37, %s40
      %p49 = scmp.eq.s32.totalorder %s18, 1
      %p50 = por %p48, %p49
      %p51 = scmp.ne.s32.totalorder %s40, %s41
      %p52 = scmp.eq.s32.totalorder %s18, 0
      %p53 = por %p51, %p52
      %p54 = scmp.ne.s32.totalorder %s40, %s41
      %p55 = scmp.eq.s32.totalorder %s19, 1
      %p56 = por %p54, %p55
      %p58 = scmp.ne.s32.totalorder %s41, %s57
      %p59 = scmp.eq.s32.totalorder %s19, 0
      %p60 = por %p58, %p59
      %s62 = sadd.s32 %s61, 1
      %p65 = scmp.eq.s32.totalorder %s13, 1
      %p66 = scmp.ne.s32.totalorder %s61, %s63
      %p67 = scmp.eq.s32.totalorder %s13, 0
      %p68 = por %p66, %p67
      %p69 = scmp.ne.s32.totalorder %s61, %s63
      %p70 = scmp.eq.s32.totalorder %s18, 1
      %p71 = por %p69, %p70
      %p72 = scmp.ne.s32.totalorder %s63, %s64
      %p73 = scmp.eq.s32.totalorder %s18, 0
      %p74 = por %p72, %p73
      %p75 = scmp.ne.s32.totalorder %s63, %s64
      %p76 = scmp.eq.s32.totalorder %s19, 1
      %p77 = por %p75, %p76
      %p79 = scmp.ne.s32.totalorder %s64, %s78
      %p80 = scmp.eq.s32.totalorder %s19, 0
      %p81 = por %p79, %p80
      %s83 = sadd.s32 %s82, 1
      %p86 = scmp.eq.s32.totalorder %s13, 1
      %p87 = scmp.ne.s32.totalorder %s82, %s84
      %p88 = scmp.eq.s32.totalorder %s13, 0
      %p89 = por %p87, %p88
      %p90 = scmp.ne.s32.totalorder %s82, %s84
      %p91 = scmp.eq.s32.totalorder %s18, 1
      %p92 = por %p90, %p91
      %p93 = scmp.ne.s32.totalorder %s84, %s85
      %p94 = scmp.eq.s32.totalorder %s18, 0
      %p95 = por %p93, %p94
      %p96 = scmp.ne.s32.totalorder %s84, %s85
      %p97 = scmp.eq.s32.totalorder %s19, 1
      %p98 = por %p96, %p97
      %p100 = scmp.ne.s32.totalorder %s85, %s99
      %p101 = scmp.eq.s32.totalorder %s19, 0
      %p102 = por %p100, %p101
      %s104 = sadd.s32 %s103, 1
      %p107 = scmp.eq.s32.totalorder %s13, 1
      %p108 = scmp.ne.s32.totalorder %s103, %s105
      %p109 = scmp.eq.s32.totalorder %s13, 0
      %p110 = por %p108, %p109
      %p111 = scmp.ne.s32.totalorder %s103, %s105
      %p112 = scmp.eq.s32.totalorder %s18, 1
      %p113 = por %p111, %p112
      %p114 = scmp.ne.s32.totalorder %s105, %s106
      %p115 = scmp.eq.s32.totalorder %s18, 0
      %p116 = por %p114, %p115
      %p117 = scmp.ne.s32.totalorder %s105, %s106
      %p118 = scmp.eq.s32.totalorder %s19, 1
      %p119 = por %p117, %p118
      %p121 = scmp.ne.s32.totalorder %s106, %s120
      %p122 = scmp.eq.s32.totalorder %s19, 0
      %p123 = por %p121, %p122
      %s124 = ssub.s32 %s20, %s32
      %p125 = scmp.eq.s32.totalorder %s124, 0
      %s127 = sadd.s32 %s126, 1
      %s128 = scalar_select %p125, %s126, %s127
      %p131 = pneg %p125
      %p132 = scmp.eq.s32.totalorder %s13, 1
      %p133 = por %p131, %p132
      %p134 = scmp.ne.s32.totalorder %s126, %s129
      %p135 = scmp.eq.s32.totalorder %s13, 0
      %p136 = por %p134, %p135
      %p137 = scmp.ne.s32.totalorder %s126, %s129
      %p138 = scmp.eq.s32.totalorder %s18, 1
      %p139 = por %p137, %p138
      %p140 = scmp.ne.s32.totalorder %s129, %s130
      %p141 = scmp.eq.s32.totalorder %s18, 0
      %p142 = por %p140, %p141
      %p143 = scmp.ne.s32.totalorder %s129, %s130
      %p144 = scmp.eq.s32.totalorder %s19, 1
      %p145 = por %p143, %p144
      %p147 = scmp.ne.s32.totalorder %s130, %s146
      %p148 = scmp.eq.s32.totalorder %s19, 0
      %p149 = por %p147, %p148
      %p150 = scmp.le.s32.totalorder 1, %s13
      %p151 = scmp.lt.s32.totalorder %s13, 3
      %p152 = pnand %p150, %p151
      %p153 = pneg %p152
      // Predicated region
      $region9: #{tpu_custom_call.1} parent=5 // pred_check
        _
      $region10: #{tpu_custom_call.1} parent=5 // pred_check_branch
        %155 = sbr.rel (%p152) target = $region12
      $region11: #{tpu_custom_call.1} parent=5 // pred_region
        %s156 = ssub.s32 %s13, 1
        // Predicated region
        $region13: #{tpu_custom_call.1} parent=11 // pred_check
          %p157 = pneg %p74
        $region14: #{tpu_custom_call.1} parent=11 // pred_check_branch
          %159 = sbr.rel (%p157) target = $region16
        $region15: #{tpu_custom_call.1} parent=11 // pred_region
          _
        $region16: #{tpu_custom_call.1} parent=11 // pred_fallthru
          _
        // Predicated region
        $region17: #{tpu_custom_call.1} parent=11 // pred_check
          %p160 = pneg %p95
        $region18: #{tpu_custom_call.1} parent=11 // pred_check_branch
          %162 = sbr.rel (%p160) target = $region20
        $region19: #{tpu_custom_call.1} parent=11 // pred_region
          _
        $region20: #{tpu_custom_call.1} parent=11 // pred_fallthru
          _
        // Predicated region
        $region21: #{tpu_custom_call.1} parent=11 // pred_check
          %p163 = pneg %p116
        $region22: #{tpu_custom_call.1} parent=11 // pred_check_branch
          %165 = sbr.rel (%p163) target = $region24
        $region23: #{tpu_custom_call.1} parent=11 // pred_region
          _
        $region24: #{tpu_custom_call.1} parent=11 // pred_fallthru
          _
      $region12: #{tpu_custom_call.1} parent=5 // pred_fallthru
        _
      %p166 = scmp.lt.s32.totalorder %s13, 2
      // Predicated region
      $region25: #{tpu_custom_call.1} parent=5 // pred_check
        %p167 = pneg %p166
      $region26: #{tpu_custom_call.1} parent=5 // pred_check_branch
        %169 = sbr.rel (%p167) target = $region28
      $region27: #{tpu_custom_call.1} parent=5 // pred_region
        // Predicated region
        $region29: #{tpu_custom_call.1} parent=27 // pred_check
          %p170 = pneg %p47
        $region30: #{tpu_custom_call.1} parent=27 // pred_check_branch
          %172 = sbr.rel (%p170) target = $region32
        $region31: #{tpu_custom_call.1} parent=27 // pred_region
          %s173 = smul.u32 32, %s21
          %p174 = scmp.lt.s32.totalorder %s20, 1
          %s175 = scalar_select %p174, %s20, 1
          %p176 = scmp.lt.s32.totalorder %s173, 31
          %s177 = scalar_select %p176, %s173, 31
          %s178 = smul.addr %s175, 32
          %s179 = sadd.s32 %s177, %s178
          %s180 = smul.addr %s179, 4
          %s181 = scalar_lea.vmem %s0, %s180
          %s182 = smul.u32 32, %s21
        $region32: #{tpu_custom_call.1} parent=27 // pred_fallthru
          _
      $region28: #{tpu_custom_call.1} parent=5 // pred_fallthru
        _
      %p183 = scmp.le.s32.totalorder 1, %s13
      %p184 = scmp.lt.s32.totalorder %s13, 3
      %p185 = pnand %p183, %p184
      %p186 = pneg %p185
      // Predicated region
      $region33: #{tpu_custom_call.1} parent=5 // pred_check
        _
      $region34: #{tpu_custom_call.1} parent=5 // pred_check_branch
        %188 = sbr.rel (%p185) target = $region36
      $region35: #{tpu_custom_call.1} parent=5 // pred_region
        %s189 = ssub.s32 %s13, 1
        %s190 = smul.u32 32, %s23
        %p191 = scmp.lt.s32.totalorder %s22, 1
        %s192 = scalar_select %p191, %s22, 1
        %p193 = scmp.lt.s32.totalorder %s190, 31
        %s194 = scalar_select %p193, %s190, 31
        %s195 = smul.addr %s192, 32
        %s196 = sadd.s32 %s194, %s195
        %s197 = smul.addr %s196, 4
        %s198 = scalar_lea.vmem %s0, %s197
        %p199 = pneg %p53
        %p200 = pneg %p50
        %p201 = pneg %p74
        %p202 = pneg %p71
        %p203 = pneg %p95
        %p204 = pneg %p92
        %p205 = pneg %p116
        %p206 = pneg %p113
        %p207 = pneg %p142
        %p208 = pneg %p139
        %s209 = sand.u32 %s129, 1
        %s210 = scalar_lea.sflag [#allocation5], %s209
        %s211 = sand.u32 %s129, 1
        %s212 = scalar_lea.vmem [#allocation4], %s211
        %s213 = smul.u32 32, %s23
        %p214 = scmp.lt.s32.totalorder %s22, 1
        %s215 = scalar_select %p214, %s22, 1
        %p216 = scmp.lt.s32.totalorder %s213, 31
        %s217 = scalar_select %p216, %s213, 31
        %s218 = smul.addr %s215, 32
        %s219 = sadd.s32 %s217, %s218
        %s220 = smul.addr %s219, 4
        %s221 = scalar_lea.vmem %s0, %s220
        %s222 = smul.u32 32, %s23
        %p224 = scmp.eq.s32.totalorder %s23, 0
        // Predicated region
        $region37: #{tpu_custom_call.1} parent=35 // pred_check
          %p225 = pneg %p224
        $region38: #{tpu_custom_call.1} parent=35 // pred_check_branch
          %227 = sbr.rel (%p225) target = $region40
        $region39: #{tpu_custom_call.1} parent=35 // pred_region
          %228 = vst [vmem:[#allocation2] sm:$0xff] 0.0
          %229 = vst [vmem:[#allocation2 + $0x8] sm:$0xff] 0.0
          %230 = vst [vmem:[#allocation2 + $0x10] sm:$0xff] 0.0
          %231 = vst [vmem:[#allocation2 + $0x18] sm:$0xff] 0.0
          %232 = vst [vmem:[#allocation2 + $0x20] sm:$0xff] 0.0
          %233 = vst [vmem:[#allocation2 + $0x28] sm:$0xff] 0.0
          %234 = vst [vmem:[#allocation2 + $0x30] sm:$0xff] 0.0
          %235 = vst [vmem:[#allocation2 + $0x38] sm:$0xff] 0.0
          %236 = vst [vmem:[#allocation3] sm:$0xff] 0.0
          %237 = vst [vmem:[#allocation3 + $0x8] sm:$0xff] 0.0
          %238 = vst [vmem:[#allocation3 + $0x10] sm:$0xff] 0.0
          %239 = vst [vmem:[#allocation3 + $0x18] sm:$0xff] 0.0
          %240 = vst [vmem:[#allocation3 + $0x20] sm:$0xff] 0.0
          %241 = vst [vmem:[#allocation3 + $0x28] sm:$0xff] 0.0
          %242 = vst [vmem:[#allocation3 + $0x30] sm:$0xff] 0.0
          %243 = vst [vmem:[#allocation3 + $0x38] sm:$0xff] 0.0
          %244 = vst [vmem:[#allocation3 + $0x40] sm:$0xff] 0.0
          %245 = vst [vmem:[#allocation3 + $0x48] sm:$0xff] 0.0
        $region40: #{tpu_custom_call.1} parent=35 // pred_fallthru
          _
        %v246 = vld [vmem:[%s221] sm:$0xf]
        %v247 = vld [vmem:[%s221 + $0x4] sm:$0xf]
        %v248 = vld [vmem:[%s221 + $0x8] sm:$0xf]
        %v249 = vld [vmem:[%s221 + $0xc] sm:$0xf]
        %v250 = vld [vmem:[%s221 + $0x10] sm:$0xf]
        %v251 = vld [vmem:[%s221 + $0x14] sm:$0xf]
        %v252 = vld [vmem:[%s221 + $0x18] sm:$0xf]
        %v253 = vld [vmem:[%s221 + $0x1c] sm:$0xf]
        %v254 = vld [vmem:[%s221 + $0x20] sm:$0xf]
        %v255 = vld [vmem:[%s221 + $0x24] sm:$0xf]
        %v256 = vld [vmem:[%s221 + $0x28] sm:$0xf]
        %v257 = vld [vmem:[%s221 + $0x2c] sm:$0xf]
        %v258 = vld [vmem:[%s221 + $0x30] sm:$0xf]
        %v259 = vld [vmem:[%s221 + $0x34] sm:$0xf]
        %v260 = vld [vmem:[%s221 + $0x38] sm:$0xf]
        %v261 = vld [vmem:[%s221 + $0x3c] sm:$0xf]
        %v262 = vld [vmem:[%s221 + $0x40] sm:$0xf]
        %v263 = vld [vmem:[%s221 + $0x44] sm:$0xf]
        %v264 = vld [vmem:[%s221 + $0x48] sm:$0xf]
        %v265 = vld [vmem:[%s221 + $0x4c] sm:$0xf]
        %v266 = vld [vmem:[%s221 + $0x50] sm:$0xf]
        %v267 = vld [vmem:[%s221 + $0x54] sm:$0xf]
        %v268 = vld [vmem:[%s221 + $0x58] sm:$0xf]
        %v269 = vld [vmem:[%s221 + $0x5c] sm:$0xf]
        %v270 = vld [vmem:[%s221 + $0x60] sm:$0xf]
        %v271 = vld [vmem:[%s221 + $0x64] sm:$0xf]
        %v272 = vld [vmem:[%s221 + $0x68] sm:$0xf]
        %v273 = vld [vmem:[%s221 + $0x6c] sm:$0xf]
        %v274 = vld [vmem:[%s221 + $0x70] sm:$0xf]
        %v275 = vld [vmem:[%s221 + $0x74] sm:$0xf]
        %v276 = vld [vmem:[%s221 + $0x78] sm:$0xf]
        %v277 = vld [vmem:[%s221 + $0x7c] sm:$0xf]
        %v278 = vld [vmem:[%s1] sm:$0xff]
        %v279 = vld [vmem:[%s1 + $0x8] sm:$0xff]
        %v280 = vld [vmem:[%s1 + $0x10] sm:$0xff]
        %v281 = vld [vmem:[%s1 + $0x18] sm:$0xff]
        %v314 = vunpack.c.l.b16 %v246
        %v315 = vunpack.c.l.b16 %v247
        %v316 = vunpack.c.l.b16 %v248
        %v317 = vunpack.c.l.b16 %v249
        %v318 = vunpack.c.l.b16 %v250
        %v319 = vunpack.c.l.b16 %v251
        %v320 = vunpack.c.l.b16 %v252
        %v321 = vunpack.c.l.b16 %v253
        %v322 = vunpack.c.l.b16 %v254
        %v323 = vunpack.c.l.b16 %v255
        %v324 = vunpack.c.l.b16 %v256
        %v325 = vunpack.c.l.b16 %v257
        %v326 = vunpack.c.l.b16 %v258
        %v327 = vunpack.c.l.b16 %v259
        %v328 = vunpack.c.l.b16 %v260
        %v329 = vunpack.c.l.b16 %v261
        %v330 = vunpack.c.l.b16 %v262
        %v331 = vunpack.c.l.b16 %v263
        %v332 = vunpack.c.l.b16 %v264
        %v333 = vunpack.c.l.b16 %v265
        %v334 = vunpack.c.l.b16 %v266
        %v335 = vunpack.c.l.b16 %v267
        %v336 = vunpack.c.l.b16 %v268
        %v337 = vunpack.c.l.b16 %v269
        %v338 = vunpack.c.l.b16 %v270
        %v339 = vunpack.c.l.b16 %v271
        %v340 = vunpack.c.l.b16 %v272
        %v341 = vunpack.c.l.b16 %v273
        %v342 = vunpack.c.l.b16 %v274
        %v343 = vunpack.c.l.b16 %v275
        %v344 = vunpack.c.l.b16 %v276
        %v345 = vunpack.c.l.b16 %v277
        %v346 = vpack.c.b16 %v315, %v314
        %v347 = vpack.c.b16 %v317, %v316
        %v348 = vpack.c.b16 %v319, %v318
        %v349 = vpack.c.b16 %v321, %v320
        %v350 = vpack.c.b16 %v323, %v322
        %v351 = vpack.c.b16 %v325, %v324
        %v352 = vpack.c.b16 %v327, %v326
        %v353 = vpack.c.b16 %v329, %v328
        %v354 = vpack.c.b16 %v331, %v330
        %v355 = vpack.c.b16 %v333, %v332
        %v356 = vpack.c.b16 %v335, %v334
        %v357 = vpack.c.b16 %v337, %v336
        %v358 = vpack.c.b16 %v339, %v338
        %v359 = vpack.c.b16 %v341, %v340
        %v360 = vpack.c.b16 %v343, %v342
        %v361 = vpack.c.b16 %v345, %v344
        %v366 = vunpack.c.l.b16 %v278
        %v367 = vunpack.c.h.b16 %v278
        %v368 = vunpack.c.l.b16 %v279
        %v369 = vunpack.c.h.b16 %v279
        %v370 = vunpack.c.l.b16 %v280
        %v371 = vunpack.c.h.b16 %v280
        %v372 = vunpack.c.l.b16 %v281
        %v373 = vunpack.c.h.b16 %v281
        %v374 = vpack.c.b16 %v366, %v366
        %v375 = vpack.c.b16 %v367, %v367
        %v376 = vpack.c.b16 %v368, %v368
        %v377 = vpack.c.b16 %v369, %v369
        %v378 = vpack.c.b16 %v370, %v370
        %v379 = vpack.c.b16 %v371, %v371
        %v380 = vpack.c.b16 %v372, %v372
        %v381 = vpack.c.b16 %v373, %v373
        %vm382 = vcmask 64512
        %v384 = vsel %vm382, %v346, 0
        %v387 = vsel %vm382, %v347, 0
        %v390 = vsel %vm382, %v348, 0
        %v393 = vsel %vm382, %v349, 0
        %v396 = vsel %vm382, %v350, 0
        %v399 = vsel %vm382, %v351, 0
        %v402 = vsel %vm382, %v352, 0
        %v405 = vsel %vm382, %v353, 0
        %v408 = vsel %vm382, %v354, 0
        %v411 = vsel %vm382, %v355, 0
        %v414 = vsel %vm382, %v356, 0
        %v417 = vsel %vm382, %v357, 0
        %v420 = vsel %vm382, %v358, 0
        %v423 = vsel %vm382, %v359, 0
        %v426 = vsel %vm382, %v360, 0
        %v429 = vsel %vm382, %v361, 0
        %vm431 = vcmask 1043456
        %v433 = vsel %vm431, %v374, 0
        %v436 = vsel %vm431, %v375, 0
        %v439 = vsel %vm431, %v376, 0
        %v442 = vsel %vm431, %v377, 0
        %v445 = vsel %vm431, %v378, 0
        %v448 = vsel %vm431, %v379, 0
        %v451 = vsel %vm431, %v380, 0
        %v454 = vsel %vm431, %v381, 0
        %456 = vmatprep.subr.bf16.mxu0 0
        %457 = vmatpush1.bf16.msra.mxu0 0
        %458 = vmatprep.subr.bf16.mxu0 0
        %459 = vmatpush1.bf16.msra.mxu0 0
        %460 = vmatprep.subr.bf16.mxu0 0
        %461 = vmatpush1.bf16.msra.mxu0 0
        %462 = vmatprep.subr.bf16.mxu0 0
        %463 = vmatpush1.bf16.msra.mxu0 0
        %464 = vmatprep.subr.bf16.mxu0 0
        %465 = vmatpush1.bf16.msra.mxu0 0
        %466 = vmatprep.subr.bf16.mxu0 0
        %467 = vmatpush1.bf16.msra.mxu0 0
        %468 = vmatprep.subr.bf16.mxu0 0
        %469 = vmatpush1.bf16.msra.mxu0 0
        %470 = vmatprep.subr.bf16.mxu0 %v436
        %471 = vmatpush1.bf16.msra.mxu0 %v433
        %472 = vmatprep.subr.bf16.mxu0 0
        %473 = vmatpush2.bf16.msra.mxu0 0
        %474 = vmatprep.subr.bf16.mxu0 0
        %475 = vmatpush2.bf16.msra.mxu0 0
        %476 = vmatprep.subr.bf16.mxu0 0
        %477 = vmatpush2.bf16.msra.mxu0 0
        %478 = vmatprep.subr.bf16.mxu0 0
        %479 = vmatpush2.bf16.msra.mxu0 0
        %480 = vmatprep.subr.bf16.mxu0 0
        %481 = vmatpush2.bf16.msra.mxu0 0
        %482 = vmatprep.subr.bf16.mxu0 0
        %483 = vmatpush2.bf16.msra.mxu0 0
        %484 = vmatprep.subr.bf16.mxu0 0
        %485 = vmatpush2.bf16.msra.mxu0 0
        %486 = vmatprep.subr.bf16.mxu0 0
        %487 = vmatpush2.bf16.msra.mxu0 0
        %488 = vmatprep.mubr.bf16.mxu0 0
        %489 = vmatmul.mubr.bf16.gmra.mxu0 %v384
        %v490 = vpop.f32.mrf.mxu0
        %v491 = vadd.f32 0.0, %v490
        %v492 = vpop.f32.mrf.mxu0
        %v493 = vadd.f32 0.0, %v492
        %v494 = vpop.f32.mrf.mxu0
        %v495 = vadd.f32 0.0, %v494
        %v496 = vpop.f32.mrf.mxu0
        %v497 = vadd.f32 0.0, %v496
        %498 = vmatprep.mubr.bf16.mxu0 0
        %499 = vmatmul.mubr.bf16.gmra.mxu0 %v387
        %v500 = vpop.f32.mrf.mxu0
        %v501 = vadd.f32 0.0, %v500
        %v502 = vpop.f32.mrf.mxu0
        %v503 = vadd.f32 0.0, %v502
        %v504 = vpop.f32.mrf.mxu0
        %v505 = vadd.f32 0.0, %v504
        %v506 = vpop.f32.mrf.mxu0
        %v507 = vadd.f32 0.0, %v506
        %508 = vmatprep.mubr.bf16.mxu0 0
        %509 = vmatmul.mubr.bf16.gmra.mxu0 %v390
        %v510 = vpop.f32.mrf.mxu0
        %v511 = vadd.f32 0.0, %v510
        %v512 = vpop.f32.mrf.mxu0
        %v513 = vadd.f32 0.0, %v512
        %v514 = vpop.f32.mrf.mxu0
        %v515 = vadd.f32 0.0, %v514
        %v516 = vpop.f32.mrf.mxu0
        %v517 = vadd.f32 0.0, %v516
        %518 = vmatprep.mubr.bf16.mxu0 0
        %519 = vmatmul.mubr.bf16.gmra.mxu0 %v393
        %v520 = vpop.f32.mrf.mxu0
        %v521 = vadd.f32 0.0, %v520
        %v522 = vpop.f32.mrf.mxu0
        %v523 = vadd.f32 0.0, %v522
        %v524 = vpop.f32.mrf.mxu0
        %v525 = vadd.f32 0.0, %v524
        %v526 = vpop.f32.mrf.mxu0
        %v527 = vadd.f32 0.0, %v526
        %528 = vmatprep.mubr.bf16.mxu0 0
        %529 = vmatmul.mubr.bf16.gmra.mxu0 %v396
        %v530 = vpop.f32.mrf.mxu0
        %v531 = vadd.f32 0.0, %v530
        %v532 = vpop.f32.mrf.mxu0
        %v533 = vadd.f32 0.0, %v532
        %v534 = vpop.f32.mrf.mxu0
        %v535 = vadd.f32 0.0, %v534
        %v536 = vpop.f32.mrf.mxu0
        %v537 = vadd.f32 0.0, %v536
        %538 = vmatprep.mubr.bf16.mxu0 0
        %539 = vmatmul.mubr.bf16.gmra.mxu0 %v399
        %v540 = vpop.f32.mrf.mxu0
        %v541 = vadd.f32 0.0, %v540
        %v542 = vpop.f32.mrf.mxu0
        %v543 = vadd.f32 0.0, %v542
        %v544 = vpop.f32.mrf.mxu0
        %v545 = vadd.f32 0.0, %v544
        %v546 = vpop.f32.mrf.mxu0
        %v547 = vadd.f32 0.0, %v546
        %548 = vmatprep.mubr.bf16.mxu0 0
        %549 = vmatmul.mubr.bf16.gmra.mxu0 %v402
        %v550 = vpop.f32.mrf.mxu0
        %v551 = vadd.f32 0.0, %v550
        %v552 = vpop.f32.mrf.mxu0
        %v553 = vadd.f32 0.0, %v552
        %v554 = vpop.f32.mrf.mxu0
        %v555 = vadd.f32 0.0, %v554
        %v556 = vpop.f32.mrf.mxu0
        %v557 = vadd.f32 0.0, %v556
        %558 = vmatprep.mubr.bf16.mxu0 0
        %559 = vmatmul.mubr.bf16.gmra.mxu0 %v405
        %v560 = vpop.f32.mrf.mxu0
        %v561 = vadd.f32 0.0, %v560
        %v562 = vpop.f32.mrf.mxu0
        %v563 = vadd.f32 0.0, %v562
        %v564 = vpop.f32.mrf.mxu0
        %v565 = vadd.f32 0.0, %v564
        %v566 = vpop.f32.mrf.mxu0
        %v567 = vadd.f32 0.0, %v566
        %568 = vmatprep.mubr.bf16.mxu0 0
        %569 = vmatmul.mubr.bf16.gmra.mxu0 %v408
        %v570 = vpop.f32.mrf.mxu0
        %v571 = vadd.f32 0.0, %v570
        %v572 = vpop.f32.mrf.mxu0
        %v573 = vadd.f32 0.0, %v572
        %v574 = vpop.f32.mrf.mxu0
        %v575 = vadd.f32 0.0, %v574
        %v576 = vpop.f32.mrf.mxu0
        %v577 = vadd.f32 0.0, %v576
        %578 = vmatprep.mubr.bf16.mxu0 0
        %579 = vmatmul.mubr.bf16.gmra.mxu0 %v411
        %v580 = vpop.f32.mrf.mxu0
        %v581 = vadd.f32 0.0, %v580
        %v582 = vpop.f32.mrf.mxu0
        %v583 = vadd.f32 0.0, %v582
        %v584 = vpop.f32.mrf.mxu0
        %v585 = vadd.f32 0.0, %v584
        %v586 = vpop.f32.mrf.mxu0
        %v587 = vadd.f32 0.0, %v586
        %588 = vmatprep.mubr.bf16.mxu0 0
        %589 = vmatmul.mubr.bf16.gmra.mxu0 %v414
        %v590 = vpop.f32.mrf.mxu0
        %v591 = vadd.f32 0.0, %v590
        %v592 = vpop.f32.mrf.mxu0
        %v593 = vadd.f32 0.0, %v592
        %v594 = vpop.f32.mrf.mxu0
        %v595 = vadd.f32 0.0, %v594
        %v596 = vpop.f32.mrf.mxu0
        %v597 = vadd.f32 0.0, %v596
        %598 = vmatprep.mubr.bf16.mxu0 0
        %599 = vmatmul.mubr.bf16.gmra.mxu0 %v417
        %v600 = vpop.f32.mrf.mxu0
        %v601 = vadd.f32 0.0, %v600
        %v602 = vpop.f32.mrf.mxu0
        %v603 = vadd.f32 0.0, %v602
        %v604 = vpop.f32.mrf.mxu0
        %v605 = vadd.f32 0.0, %v604
        %v606 = vpop.f32.mrf.mxu0
        %v607 = vadd.f32 0.0, %v606
        %608 = vmatprep.mubr.bf16.mxu0 0
        %609 = vmatmul.mubr.bf16.gmra.mxu0 %v420
        %v610 = vpop.f32.mrf.mxu0
        %v611 = vadd.f32 0.0, %v610
        %v612 = vpop.f32.mrf.mxu0
        %v613 = vadd.f32 0.0, %v612
        %v614 = vpop.f32.mrf.mxu0
        %v615 = vadd.f32 0.0, %v614
        %v616 = vpop.f32.mrf.mxu0
        %v617 = vadd.f32 0.0, %v616
        %618 = vmatprep.mubr.bf16.mxu0 0
        %619 = vmatmul.mubr.bf16.gmra.mxu0 %v423
        %v620 = vpop.f32.mrf.mxu0
        %v621 = vadd.f32 0.0, %v620
        %v622 = vpop.f32.mrf.mxu0
        %v623 = vadd.f32 0.0, %v622
        %v624 = vpop.f32.mrf.mxu0
        %v625 = vadd.f32 0.0, %v624
        %v626 = vpop.f32.mrf.mxu0
        %v627 = vadd.f32 0.0, %v626
        %628 = vmatprep.mubr.bf16.mxu0 0
        %629 = vmatmul.mubr.bf16.gmra.mxu0 %v426
        %v630 = vpop.f32.mrf.mxu0
        %v631 = vadd.f32 0.0, %v630
        %v632 = vpop.f32.mrf.mxu0
        %v633 = vadd.f32 0.0, %v632
        %v634 = vpop.f32.mrf.mxu0
        %v635 = vadd.f32 0.0, %v634
        %v636 = vpop.f32.mrf.mxu0
        %v637 = vadd.f32 0.0, %v636
        %638 = vmatprep.mubr.bf16.mxu0 0
        %639 = vmatmul.mubr.bf16.gmra.mxu0 %v429
        %v640 = vpop.f32.mrf.mxu0
        %v641 = vadd.f32 0.0, %v640
        %v642 = vpop.f32.mrf.mxu0
        %v643 = vadd.f32 0.0, %v642
        %v644 = vpop.f32.mrf.mxu0
        %v645 = vadd.f32 0.0, %v644
        %v646 = vpop.f32.mrf.mxu0
        %v647 = vadd.f32 0.0, %v646
        %648 = vdwg.mxu0
        %649 = vmatprep.subr.bf16.mxu0 0
        %650 = vmatpush1.bf16.msra.mxu0 0
        %651 = vmatprep.subr.bf16.mxu0 0
        %652 = vmatpush1.bf16.msra.mxu0 0
        %653 = vmatprep.subr.bf16.mxu0 0
        %654 = vmatpush1.bf16.msra.mxu0 0
        %655 = vmatprep.subr.bf16.mxu0 0
        %656 = vmatpush1.bf16.msra.mxu0 0
        %657 = vmatprep.subr.bf16.mxu0 0
        %658 = vmatpush1.bf16.msra.mxu0 0
        %659 = vmatprep.subr.bf16.mxu0 0
        %660 = vmatpush1.bf16.msra.mxu0 0
        %661 = vmatprep.subr.bf16.mxu0 0
        %662 = vmatpush1.bf16.msra.mxu0 0
        %663 = vmatprep.subr.bf16.mxu0 %v442
        %664 = vmatpush1.bf16.msra.mxu0 %v439
        %665 = vmatprep.subr.bf16.mxu0 0
        %666 = vmatpush2.bf16.msra.mxu0 0
        %667 = vmatprep.subr.bf16.mxu0 0
        %668 = vmatpush2.bf16.msra.mxu0 0
        %669 = vmatprep.subr.bf16.mxu0 0
        %670 = vmatpush2.bf16.msra.mxu0 0
        %671 = vmatprep.subr.bf16.mxu0 0
        %672 = vmatpush2.bf16.msra.mxu0 0
        %673 = vmatprep.subr.bf16.mxu0 0
        %674 = vmatpush2.bf16.msra.mxu0 0
        %675 = vmatprep.subr.bf16.mxu0 0
        %676 = vmatpush2.bf16.msra.mxu0 0
        %677 = vmatprep.subr.bf16.mxu0 0
        %678 = vmatpush2.bf16.msra.mxu0 0
        %679 = vmatprep.subr.bf16.mxu0 0
        %680 = vmatpush2.bf16.msra.mxu0 0
        %681 = vmatprep.mubr.bf16.mxu0 0
        %682 = vmatmul.mubr.bf16.gmra.mxu0 %v384
        %v683 = vpop.f32.mrf.mxu0
        %v684 = vadd.f32 0.0, %v683
        %v685 = vpop.f32.mrf.mxu0
        %v686 = vadd.f32 0.0, %v685
        %v687 = vpop.f32.mrf.mxu0
        %v688 = vadd.f32 0.0, %v687
        %v689 = vpop.f32.mrf.mxu0
        %v690 = vadd.f32 0.0, %v689
        %691 = vmatprep.mubr.bf16.mxu0 0
        %692 = vmatmul.mubr.bf16.gmra.mxu0 %v387
        %v693 = vpop.f32.mrf.mxu0
        %v694 = vadd.f32 0.0, %v693
        %v695 = vpop.f32.mrf.mxu0
        %v696 = vadd.f32 0.0, %v695
        %v697 = vpop.f32.mrf.mxu0
        %v698 = vadd.f32 0.0, %v697
        %v699 = vpop.f32.mrf.mxu0
        %v700 = vadd.f32 0.0, %v699
        %701 = vmatprep.mubr.bf16.mxu0 0
        %702 = vmatmul.mubr.bf16.gmra.mxu0 %v390
        %v703 = vpop.f32.mrf.mxu0
        %v704 = vadd.f32 0.0, %v703
        %v705 = vpop.f32.mrf.mxu0
        %v706 = vadd.f32 0.0, %v705
        %v707 = vpop.f32.mrf.mxu0
        %v708 = vadd.f32 0.0, %v707
        %v709 = vpop.f32.mrf.mxu0
        %v710 = vadd.f32 0.0, %v709
        %711 = vmatprep.mubr.bf16.mxu0 0
        %712 = vmatmul.mubr.bf16.gmra.mxu0 %v393
        %v713 = vpop.f32.mrf.mxu0
        %v714 = vadd.f32 0.0, %v713
        %v715 = vpop.f32.mrf.mxu0
        %v716 = vadd.f32 0.0, %v715
        %v717 = vpop.f32.mrf.mxu0
        %v718 = vadd.f32 0.0, %v717
        %v719 = vpop.f32.mrf.mxu0
        %v720 = vadd.f32 0.0, %v719
        %721 = vmatprep.mubr.bf16.mxu0 0
        %722 = vmatmul.mubr.bf16.gmra.mxu0 %v396
        %v723 = vpop.f32.mrf.mxu0
        %v724 = vadd.f32 0.0, %v723
        %v725 = vpop.f32.mrf.mxu0
        %v726 = vadd.f32 0.0, %v725
        %v727 = vpop.f32.mrf.mxu0
        %v728 = vadd.f32 0.0, %v727
        %v729 = vpop.f32.mrf.mxu0
        %v730 = vadd.f32 0.0, %v729
        %731 = vmatprep.mubr.bf16.mxu0 0
        %732 = vmatmul.mubr.bf16.gmra.mxu0 %v399
        %v733 = vpop.f32.mrf.mxu0
        %v734 = vadd.f32 0.0, %v733
        %v735 = vpop.f32.mrf.mxu0
        %v736 = vadd.f32 0.0, %v735
        %v737 = vpop.f32.mrf.mxu0
        %v738 = vadd.f32 0.0, %v737
        %v739 = vpop.f32.mrf.mxu0
        %v740 = vadd.f32 0.0, %v739
        %741 = vmatprep.mubr.bf16.mxu0 0
        %742 = vmatmul.mubr.bf16.gmra.mxu0 %v402
        %v743 = vpop.f32.mrf.mxu0
        %v744 = vadd.f32 0.0, %v743
        %v745 = vpop.f32.mrf.mxu0
        %v746 = vadd.f32 0.0, %v745
        %v747 = vpop.f32.mrf.mxu0
        %v748 = vadd.f32 0.0, %v747
        %v749 = vpop.f32.mrf.mxu0
        %v750 = vadd.f32 0.0, %v749
        %751 = vmatprep.mubr.bf16.mxu0 0
        %752 = vmatmul.mubr.bf16.gmra.mxu0 %v405
        %v753 = vpop.f32.mrf.mxu0
        %v754 = vadd.f32 0.0, %v753
        %v755 = vpop.f32.mrf.mxu0
        %v756 = vadd.f32 0.0, %v755
        %v757 = vpop.f32.mrf.mxu0
        %v758 = vadd.f32 0.0, %v757
        %v759 = vpop.f32.mrf.mxu0
        %v760 = vadd.f32 0.0, %v759
        %761 = vmatprep.mubr.bf16.mxu0 0
        %762 = vmatmul.mubr.bf16.gmra.mxu0 %v408
        %v763 = vpop.f32.mrf.mxu0
        %v764 = vadd.f32 0.0, %v763
        %v765 = vpop.f32.mrf.mxu0
        %v766 = vadd.f32 0.0, %v765
        %v767 = vpop.f32.mrf.mxu0
        %v768 = vadd.f32 0.0, %v767
        %v769 = vpop.f32.mrf.mxu0
        %v770 = vadd.f32 0.0, %v769
        %771 = vmatprep.mubr.bf16.mxu0 0
        %772 = vmatmul.mubr.bf16.gmra.mxu0 %v411
        %v773 = vpop.f32.mrf.mxu0
        %v774 = vadd.f32 0.0, %v773
        %v775 = vpop.f32.mrf.mxu0
        %v776 = vadd.f32 0.0, %v775
        %v777 = vpop.f32.mrf.mxu0
        %v778 = vadd.f32 0.0, %v777
        %v779 = vpop.f32.mrf.mxu0
        %v780 = vadd.f32 0.0, %v779
        %781 = vmatprep.mubr.bf16.mxu0 0
        %782 = vmatmul.mubr.bf16.gmra.mxu0 %v414
        %v783 = vpop.f32.mrf.mxu0
        %v784 = vadd.f32 0.0, %v783
        %v785 = vpop.f32.mrf.mxu0
        %v786 = vadd.f32 0.0, %v785
        %v787 = vpop.f32.mrf.mxu0
        %v788 = vadd.f32 0.0, %v787
        %v789 = vpop.f32.mrf.mxu0
        %v790 = vadd.f32 0.0, %v789
        %791 = vmatprep.mubr.bf16.mxu0 0
        %792 = vmatmul.mubr.bf16.gmra.mxu0 %v417
        %v793 = vpop.f32.mrf.mxu0
        %v794 = vadd.f32 0.0, %v793
        %v795 = vpop.f32.mrf.mxu0
        %v796 = vadd.f32 0.0, %v795
        %v797 = vpop.f32.mrf.mxu0
        %v798 = vadd.f32 0.0, %v797
        %v799 = vpop.f32.mrf.mxu0
        %v800 = vadd.f32 0.0, %v799
        %801 = vmatprep.mubr.bf16.mxu0 0
        %802 = vmatmul.mubr.bf16.gmra.mxu0 %v420
        %v803 = vpop.f32.mrf.mxu0
        %v804 = vadd.f32 0.0, %v803
        %v805 = vpop.f32.mrf.mxu0
        %v806 = vadd.f32 0.0, %v805
        %v807 = vpop.f32.mrf.mxu0
        %v808 = vadd.f32 0.0, %v807
        %v809 = vpop.f32.mrf.mxu0
        %v810 = vadd.f32 0.0, %v809
        %811 = vmatprep.mubr.bf16.mxu0 0
        %812 = vmatmul.mubr.bf16.gmra.mxu0 %v423
        %v813 = vpop.f32.mrf.mxu0
        %v814 = vadd.f32 0.0, %v813
        %v815 = vpop.f32.mrf.mxu0
        %v816 = vadd.f32 0.0, %v815
        %v817 = vpop.f32.mrf.mxu0
        %v818 = vadd.f32 0.0, %v817
        %v819 = vpop.f32.mrf.mxu0
        %v820 = vadd.f32 0.0, %v819
        %821 = vmatprep.mubr.bf16.mxu0 0
        %822 = vmatmul.mubr.bf16.gmra.mxu0 %v426
        %v823 = vpop.f32.mrf.mxu0
        %v824 = vadd.f32 0.0, %v823
        %v825 = vpop.f32.mrf.mxu0
        %v826 = vadd.f32 0.0, %v825
        %v827 = vpop.f32.mrf.mxu0
        %v828 = vadd.f32 0.0, %v827
        %v829 = vpop.f32.mrf.mxu0
        %v830 = vadd.f32 0.0, %v829
        %831 = vmatprep.mubr.bf16.mxu0 0
        %832 = vmatmul.mubr.bf16.gmra.mxu0 %v429
        %v833 = vpop.f32.mrf.mxu0
        %v834 = vadd.f32 0.0, %v833
        %v835 = vpop.f32.mrf.mxu0
        %v836 = vadd.f32 0.0, %v835
        %v837 = vpop.f32.mrf.mxu0
        %v838 = vadd.f32 0.0, %v837
        %v839 = vpop.f32.mrf.mxu0
        %v840 = vadd.f32 0.0, %v839
        %841 = vdwg.mxu0
        %842 = vmatprep.subr.bf16.mxu0 0
        %843 = vmatpush1.bf16.msra.mxu0 0
        %844 = vmatprep.subr.bf16.mxu0 0
        %845 = vmatpush1.bf16.msra.mxu0 0
        %846 = vmatprep.subr.bf16.mxu0 0
        %847 = vmatpush1.bf16.msra.mxu0 0
        %848 = vmatprep.subr.bf16.mxu0 0
        %849 = vmatpush1.bf16.msra.mxu0 0
        %850 = vmatprep.subr.bf16.mxu0 0
        %851 = vmatpush1.bf16.msra.mxu0 0
        %852 = vmatprep.subr.bf16.mxu0 0
        %853 = vmatpush1.bf16.msra.mxu0 0
        %854 = vmatprep.subr.bf16.mxu0 0
        %855 = vmatpush1.bf16.msra.mxu0 0
        %856 = vmatprep.subr.bf16.mxu0 %v448
        %857 = vmatpush1.bf16.msra.mxu0 %v445
        %858 = vmatprep.subr.bf16.mxu0 0
        %859 = vmatpush2.bf16.msra.mxu0 0
        %860 = vmatprep.subr.bf16.mxu0 0
        %861 = vmatpush2.bf16.msra.mxu0 0
        %862 = vmatprep.subr.bf16.mxu0 0
        %863 = vmatpush2.bf16.msra.mxu0 0
        %864 = vmatprep.subr.bf16.mxu0 0
        %865 = vmatpush2.bf16.msra.mxu0 0
        %866 = vmatprep.subr.bf16.mxu0 0
        %867 = vmatpush2.bf16.msra.mxu0 0
        %868 = vmatprep.subr.bf16.mxu0 0
        %869 = vmatpush2.bf16.msra.mxu0 0
        %870 = vmatprep.subr.bf16.mxu0 0
        %871 = vmatpush2.bf16.msra.mxu0 0
        %872 = vmatprep.subr.bf16.mxu0 0
        %873 = vmatpush2.bf16.msra.mxu0 0
        %874 = vmatprep.mubr.bf16.mxu0 0
        %875 = vmatmul.mubr.bf16.gmra.mxu0 %v384
        %v876 = vpop.f32.mrf.mxu0
        %v877 = vadd.f32 0.0, %v876
        %v878 = vpop.f32.mrf.mxu0
        %v879 = vadd.f32 0.0, %v878
        %v880 = vpop.f32.mrf.mxu0
        %v881 = vadd.f32 0.0, %v880
        %v882 = vpop.f32.mrf.mxu0
        %v883 = vadd.f32 0.0, %v882
        %884 = vmatprep.mubr.bf16.mxu0 0
        %885 = vmatmul.mubr.bf16.gmra.mxu0 %v387
        %v886 = vpop.f32.mrf.mxu0
        %v887 = vadd.f32 0.0, %v886
        %v888 = vpop.f32.mrf.mxu0
        %v889 = vadd.f32 0.0, %v888
        %v890 = vpop.f32.mrf.mxu0
        %v891 = vadd.f32 0.0, %v890
        %v892 = vpop.f32.mrf.mxu0
        %v893 = vadd.f32 0.0, %v892
        %894 = vmatprep.mubr.bf16.mxu0 0
        %895 = vmatmul.mubr.bf16.gmra.mxu0 %v390
        %v896 = vpop.f32.mrf.mxu0
        %v897 = vadd.f32 0.0, %v896
        %v898 = vpop.f32.mrf.mxu0
        %v899 = vadd.f32 0.0, %v898
        %v900 = vpop.f32.mrf.mxu0
        %v901 = vadd.f32 0.0, %v900
        %v902 = vpop.f32.mrf.mxu0
        %v903 = vadd.f32 0.0, %v902
        %904 = vmatprep.mubr.bf16.mxu0 0
        %905 = vmatmul.mubr.bf16.gmra.mxu0 %v393
        %v906 = vpop.f32.mrf.mxu0
        %v907 = vadd.f32 0.0, %v906
        %v908 = vpop.f32.mrf.mxu0
        %v909 = vadd.f32 0.0, %v908
        %v910 = vpop.f32.mrf.mxu0
        %v911 = vadd.f32 0.0, %v910
        %v912 = vpop.f32.mrf.mxu0
        %v913 = vadd.f32 0.0, %v912
        %914 = vmatprep.mubr.bf16.mxu0 0
        %915 = vmatmul.mubr.bf16.gmra.mxu0 %v396
        %v916 = vpop.f32.mrf.mxu0
        %v917 = vadd.f32 0.0, %v916
        %v918 = vpop.f32.mrf.mxu0
        %v919 = vadd.f32 0.0, %v918
        %v920 = vpop.f32.mrf.mxu0
        %v921 = vadd.f32 0.0, %v920
        %v922 = vpop.f32.mrf.mxu0
        %v923 = vadd.f32 0.0, %v922
        %924 = vmatprep.mubr.bf16.mxu0 0
        %925 = vmatmul.mubr.bf16.gmra.mxu0 %v399
        %v926 = vpop.f32.mrf.mxu0
        %v927 = vadd.f32 0.0, %v926
        %v928 = vpop.f32.mrf.mxu0
        %v929 = vadd.f32 0.0, %v928
        %v930 = vpop.f32.mrf.mxu0
        %v931 = vadd.f32 0.0, %v930
        %v932 = vpop.f32.mrf.mxu0
        %v933 = vadd.f32 0.0, %v932
        %934 = vmatprep.mubr.bf16.mxu0 0
        %935 = vmatmul.mubr.bf16.gmra.mxu0 %v402
        %v936 = vpop.f32.mrf.mxu0
        %v937 = vadd.f32 0.0, %v936
        %v938 = vpop.f32.mrf.mxu0
        %v939 = vadd.f32 0.0, %v938
        %v940 = vpop.f32.mrf.mxu0
        %v941 = vadd.f32 0.0, %v940
        %v942 = vpop.f32.mrf.mxu0
        %v943 = vadd.f32 0.0, %v942
        %944 = vmatprep.mubr.bf16.mxu0 0
        %945 = vmatmul.mubr.bf16.gmra.mxu0 %v405
        %v946 = vpop.f32.mrf.mxu0
        %v947 = vadd.f32 0.0, %v946
        %v948 = vpop.f32.mrf.mxu0
        %v949 = vadd.f32 0.0, %v948
        %v950 = vpop.f32.mrf.mxu0
        %v951 = vadd.f32 0.0, %v950
        %v952 = vpop.f32.mrf.mxu0
        %v953 = vadd.f32 0.0, %v952
        %954 = vmatprep.mubr.bf16.mxu0 0
        %955 = vmatmul.mubr.bf16.gmra.mxu0 %v408
        %v956 = vpop.f32.mrf.mxu0
        %v957 = vadd.f32 0.0, %v956
        %v958 = vpop.f32.mrf.mxu0
        %v959 = vadd.f32 0.0, %v958
        %v960 = vpop.f32.mrf.mxu0
        %v961 = vadd.f32 0.0, %v960
        %v962 = vpop.f32.mrf.mxu0
        %v963 = vadd.f32 0.0, %v962
        %964 = vmatprep.mubr.bf16.mxu0 0
        %965 = vmatmul.mubr.bf16.gmra.mxu0 %v411
        %v966 = vpop.f32.mrf.mxu0
        %v967 = vadd.f32 0.0, %v966
        %v968 = vpop.f32.mrf.mxu0
        %v969 = vadd.f32 0.0, %v968
        %v970 = vpop.f32.mrf.mxu0
        %v971 = vadd.f32 0.0, %v970
        %v972 = vpop.f32.mrf.mxu0
        %v973 = vadd.f32 0.0, %v972
        %974 = vmatprep.mubr.bf16.mxu0 0
        %975 = vmatmul.mubr.bf16.gmra.mxu0 %v414
        %v976 = vpop.f32.mrf.mxu0
        %v977 = vadd.f32 0.0, %v976
        %v978 = vpop.f32.mrf.mxu0
        %v979 = vadd.f32 0.0, %v978
        %v980 = vpop.f32.mrf.mxu0
        %v981 = vadd.f32 0.0, %v980
        %v982 = vpop.f32.mrf.mxu0
        %v983 = vadd.f32 0.0, %v982
        %984 = vmatprep.mubr.bf16.mxu0 0
        %985 = vmatmul.mubr.bf16.gmra.mxu0 %v417
        %v986 = vpop.f32.mrf.mxu0
        %v987 = vadd.f32 0.0, %v986
        %v988 = vpop.f32.mrf.mxu0
        %v989 = vadd.f32 0.0, %v988
        %v990 = vpop.f32.mrf.mxu0
        %v991 = vadd.f32 0.0, %v990
        %v992 = vpop.f32.mrf.mxu0
        %v993 = vadd.f32 0.0, %v992
        %994 = vmatprep.mubr.bf16.mxu0 0
        %995 = vmatmul.mubr.bf16.gmra.mxu0 %v420
        %v996 = vpop.f32.mrf.mxu0
        %v997 = vadd.f32 0.0, %v996
        %v998 = vpop.f32.mrf.mxu0
        %v999 = vadd.f32 0.0, %v998
        %v1000 = vpop.f32.mrf.mxu0
        %v1001 = vadd.f32 0.0, %v1000
        %v1002 = vpop.f32.mrf.mxu0
        %v1003 = vadd.f32 0.0, %v1002
        %1004 = vmatprep.mubr.bf16.mxu0 0
        %1005 = vmatmul.mubr.bf16.gmra.mxu0 %v423
        %v1006 = vpop.f32.mrf.mxu0
        %v1007 = vadd.f32 0.0, %v1006
        %v1008 = vpop.f32.mrf.mxu0
        %v1009 = vadd.f32 0.0, %v1008
        %v1010 = vpop.f32.mrf.mxu0
        %v1011 = vadd.f32 0.0, %v1010
        %v1012 = vpop.f32.mrf.mxu0
        %v1013 = vadd.f32 0.0, %v1012
        %1014 = vmatprep.mubr.bf16.mxu0 0
        %1015 = vmatmul.mubr.bf16.gmra.mxu0 %v426
        %v1016 = vpop.f32.mrf.mxu0
        %v1017 = vadd.f32 0.0, %v1016
        %v1018 = vpop.f32.mrf.mxu0
        %v1019 = vadd.f32 0.0, %v1018
        %v1020 = vpop.f32.mrf.mxu0
        %v1021 = vadd.f32 0.0, %v1020
        %v1022 = vpop.f32.mrf.mxu0
        %v1023 = vadd.f32 0.0, %v1022
        %1024 = vmatprep.mubr.bf16.mxu0 0
        %1025 = vmatmul.mubr.bf16.gmra.mxu0 %v429
        %v1026 = vpop.f32.mrf.mxu0
        %v1027 = vadd.f32 0.0, %v1026
        %v1028 = vpop.f32.mrf.mxu0
        %v1029 = vadd.f32 0.0, %v1028
        %v1030 = vpop.f32.mrf.mxu0
        %v1031 = vadd.f32 0.0, %v1030
        %v1032 = vpop.f32.mrf.mxu0
        %v1033 = vadd.f32 0.0, %v1032
        %1034 = vdwg.mxu0
        %1035 = vmatprep.subr.bf16.mxu0 0
        %1036 = vmatpush1.bf16.msra.mxu0 0
        %1037 = vmatprep.subr.bf16.mxu0 0
        %1038 = vmatpush1.bf16.msra.mxu0 0
        %1039 = vmatprep.subr.bf16.mxu0 0
        %1040 = vmatpush1.bf16.msra.mxu0 0
        %1041 = vmatprep.subr.bf16.mxu0 0
        %1042 = vmatpush1.bf16.msra.mxu0 0
        %1043 = vmatprep.subr.bf16.mxu0 0
        %1044 = vmatpush1.bf16.msra.mxu0 0
        %1045 = vmatprep.subr.bf16.mxu0 0
        %1046 = vmatpush1.bf16.msra.mxu0 0
        %1047 = vmatprep.subr.bf16.mxu0 0
        %1048 = vmatpush1.bf16.msra.mxu0 0
        %1049 = vmatprep.subr.bf16.mxu0 %v454
        %1050 = vmatpush1.bf16.msra.mxu0 %v451
        %1051 = vmatprep.subr.bf16.mxu0 0
        %1052 = vmatpush2.bf16.msra.mxu0 0
        %1053 = vmatprep.subr.bf16.mxu0 0
        %1054 = vmatpush2.bf16.msra.mxu0 0
        %1055 = vmatprep.subr.bf16.mxu0 0
        %1056 = vmatpush2.bf16.msra.mxu0 0
        %1057 = vmatprep.subr.bf16.mxu0 0
        %1058 = vmatpush2.bf16.msra.mxu0 0
        %1059 = vmatprep.subr.bf16.mxu0 0
        %1060 = vmatpush2.bf16.msra.mxu0 0
        %1061 = vmatprep.subr.bf16.mxu0 0
        %1062 = vmatpush2.bf16.msra.mxu0 0
        %1063 = vmatprep.subr.bf16.mxu0 0
        %1064 = vmatpush2.bf16.msra.mxu0 0
        %1065 = vmatprep.subr.bf16.mxu0 0
        %1066 = vmatpush2.bf16.msra.mxu0 0
        %1067 = vmatprep.mubr.bf16.mxu0 0
        %1068 = vmatmul.mubr.bf16.gmra.mxu0 %v384
        %v1069 = vpop.f32.mrf.mxu0
        %v1070 = vadd.f32 0.0, %v1069
        %v1071 = vpop.f32.mrf.mxu0
        %v1072 = vadd.f32 0.0, %v1071
        %v1073 = vpop.f32.mrf.mxu0
        %v1074 = vadd.f32 0.0, %v1073
        %v1075 = vpop.f32.mrf.mxu0
        %v1076 = vadd.f32 0.0, %v1075
        %1077 = vmatprep.mubr.bf16.mxu0 0
        %1078 = vmatmul.mubr.bf16.gmra.mxu0 %v387
        %v1079 = vpop.f32.mrf.mxu0
        %v1080 = vadd.f32 0.0, %v1079
        %v1081 = vpop.f32.mrf.mxu0
        %v1082 = vadd.f32 0.0, %v1081
        %v1083 = vpop.f32.mrf.mxu0
        %v1084 = vadd.f32 0.0, %v1083
        %v1085 = vpop.f32.mrf.mxu0
        %v1086 = vadd.f32 0.0, %v1085
        %1087 = vmatprep.mubr.bf16.mxu0 0
        %1088 = vmatmul.mubr.bf16.gmra.mxu0 %v390
        %v1089 = vpop.f32.mrf.mxu0
        %v1090 = vadd.f32 0.0, %v1089
        %v1091 = vpop.f32.mrf.mxu0
        %v1092 = vadd.f32 0.0, %v1091
        %v1093 = vpop.f32.mrf.mxu0
        %v1094 = vadd.f32 0.0, %v1093
        %v1095 = vpop.f32.mrf.mxu0
        %v1096 = vadd.f32 0.0, %v1095
        %1097 = vmatprep.mubr.bf16.mxu0 0
        %1098 = vmatmul.mubr.bf16.gmra.mxu0 %v393
        %v1099 = vpop.f32.mrf.mxu0
        %v1100 = vadd.f32 0.0, %v1099
        %v1101 = vpop.f32.mrf.mxu0
        %v1102 = vadd.f32 0.0, %v1101
        %v1103 = vpop.f32.mrf.mxu0
        %v1104 = vadd.f32 0.0, %v1103
        %v1105 = vpop.f32.mrf.mxu0
        %v1106 = vadd.f32 0.0, %v1105
        %1107 = vmatprep.mubr.bf16.mxu0 0
        %1108 = vmatmul.mubr.bf16.gmra.mxu0 %v396
        %v1109 = vpop.f32.mrf.mxu0
        %v1110 = vadd.f32 0.0, %v1109
        %v1111 = vpop.f32.mrf.mxu0
        %v1112 = vadd.f32 0.0, %v1111
        %v1113 = vpop.f32.mrf.mxu0
        %v1114 = vadd.f32 0.0, %v1113
        %v1115 = vpop.f32.mrf.mxu0
        %v1116 = vadd.f32 0.0, %v1115
        %1117 = vmatprep.mubr.bf16.mxu0 0
        %1118 = vmatmul.mubr.bf16.gmra.mxu0 %v399
        %v1119 = vpop.f32.mrf.mxu0
        %v1120 = vadd.f32 0.0, %v1119
        %v1121 = vpop.f32.mrf.mxu0
        %v1122 = vadd.f32 0.0, %v1121
        %v1123 = vpop.f32.mrf.mxu0
        %v1124 = vadd.f32 0.0, %v1123
        %v1125 = vpop.f32.mrf.mxu0
        %v1126 = vadd.f32 0.0, %v1125
        %1127 = vmatprep.mubr.bf16.mxu0 0
        %1128 = vmatmul.mubr.bf16.gmra.mxu0 %v402
        %v1129 = vpop.f32.mrf.mxu0
        %v1130 = vadd.f32 0.0, %v1129
        %v1131 = vpop.f32.mrf.mxu0
        %v1132 = vadd.f32 0.0, %v1131
        %v1133 = vpop.f32.mrf.mxu0
        %v1134 = vadd.f32 0.0, %v1133
        %v1135 = vpop.f32.mrf.mxu0
        %v1136 = vadd.f32 0.0, %v1135
        %1137 = vmatprep.mubr.bf16.mxu0 0
        %1138 = vmatmul.mubr.bf16.gmra.mxu0 %v405
        %v1139 = vpop.f32.mrf.mxu0
        %v1140 = vadd.f32 0.0, %v1139
        %v1141 = vpop.f32.mrf.mxu0
        %v1142 = vadd.f32 0.0, %v1141
        %v1143 = vpop.f32.mrf.mxu0
        %v1144 = vadd.f32 0.0, %v1143
        %v1145 = vpop.f32.mrf.mxu0
        %v1146 = vadd.f32 0.0, %v1145
        %1147 = vmatprep.mubr.bf16.mxu0 0
        %1148 = vmatmul.mubr.bf16.gmra.mxu0 %v408
        %v1149 = vpop.f32.mrf.mxu0
        %v1150 = vadd.f32 0.0, %v1149
        %v1151 = vpop.f32.mrf.mxu0
        %v1152 = vadd.f32 0.0, %v1151
        %v1153 = vpop.f32.mrf.mxu0
        %v1154 = vadd.f32 0.0, %v1153
        %v1155 = vpop.f32.mrf.mxu0
        %v1156 = vadd.f32 0.0, %v1155
        %1157 = vmatprep.mubr.bf16.mxu0 0
        %1158 = vmatmul.mubr.bf16.gmra.mxu0 %v411
        %v1159 = vpop.f32.mrf.mxu0
        %v1160 = vadd.f32 0.0, %v1159
        %v1161 = vpop.f32.mrf.mxu0
        %v1162 = vadd.f32 0.0, %v1161
        %v1163 = vpop.f32.mrf.mxu0
        %v1164 = vadd.f32 0.0, %v1163
        %v1165 = vpop.f32.mrf.mxu0
        %v1166 = vadd.f32 0.0, %v1165
        %1167 = vmatprep.mubr.bf16.mxu0 0
        %1168 = vmatmul.mubr.bf16.gmra.mxu0 %v414
        %v1169 = vpop.f32.mrf.mxu0
        %v1170 = vadd.f32 0.0, %v1169
        %v1171 = vpop.f32.mrf.mxu0
        %v1172 = vadd.f32 0.0, %v1171
        %v1173 = vpop.f32.mrf.mxu0
        %v1174 = vadd.f32 0.0, %v1173
        %v1175 = vpop.f32.mrf.mxu0
        %v1176 = vadd.f32 0.0, %v1175
        %1177 = vmatprep.mubr.bf16.mxu0 0
        %1178 = vmatmul.mubr.bf16.gmra.mxu0 %v417
        %v1179 = vpop.f32.mrf.mxu0
        %v1180 = vadd.f32 0.0, %v1179
        %v1181 = vpop.f32.mrf.mxu0
        %v1182 = vadd.f32 0.0, %v1181
        %v1183 = vpop.f32.mrf.mxu0
        %v1184 = vadd.f32 0.0, %v1183
        %v1185 = vpop.f32.mrf.mxu0
        %v1186 = vadd.f32 0.0, %v1185
        %1187 = vmatprep.mubr.bf16.mxu0 0
        %1188 = vmatmul.mubr.bf16.gmra.mxu0 %v420
        %v1189 = vpop.f32.mrf.mxu0
        %v1190 = vadd.f32 0.0, %v1189
        %v1191 = vpop.f32.mrf.mxu0
        %v1192 = vadd.f32 0.0, %v1191
        %v1193 = vpop.f32.mrf.mxu0
        %v1194 = vadd.f32 0.0, %v1193
        %v1195 = vpop.f32.mrf.mxu0
        %v1196 = vadd.f32 0.0, %v1195
        %1197 = vmatprep.mubr.bf16.mxu0 0
        %1198 = vmatmul.mubr.bf16.gmra.mxu0 %v423
        %v1199 = vpop.f32.mrf.mxu0
        %v1200 = vadd.f32 0.0, %v1199
        %v1201 = vpop.f32.mrf.mxu0
        %v1202 = vadd.f32 0.0, %v1201
        %v1203 = vpop.f32.mrf.mxu0
        %v1204 = vadd.f32 0.0, %v1203
        %v1205 = vpop.f32.mrf.mxu0
        %v1206 = vadd.f32 0.0, %v1205
        %1207 = vmatprep.mubr.bf16.mxu0 0
        %1208 = vmatmul.mubr.bf16.gmra.mxu0 %v426
        %v1209 = vpop.f32.mrf.mxu0
        %v1210 = vadd.f32 0.0, %v1209
        %v1211 = vpop.f32.mrf.mxu0
        %v1212 = vadd.f32 0.0, %v1211
        %v1213 = vpop.f32.mrf.mxu0
        %v1214 = vadd.f32 0.0, %v1213
        %v1215 = vpop.f32.mrf.mxu0
        %v1216 = vadd.f32 0.0, %v1215
        %1217 = vmatprep.mubr.bf16.mxu0 0
        %1218 = vmatmul.mubr.bf16.gmra.mxu0 %v429
        %v1219 = vpop.f32.mrf.mxu0
        %v1220 = vadd.f32 0.0, %v1219
        %v1221 = vpop.f32.mrf.mxu0
        %v1222 = vadd.f32 0.0, %v1221
        %v1223 = vpop.f32.mrf.mxu0
        %v1224 = vadd.f32 0.0, %v1223
        %v1225 = vpop.f32.mrf.mxu0
        %v1226 = vadd.f32 0.0, %v1225
        %1227 = vdwg.mxu0
        %v1228 = vmax.f32 %v491, 0.0
        %v1229 = vmax.f32 %v493, 0.0
        %v1230 = vmax.f32 %v684, 0.0
        %v1231 = vmax.f32 %v686, 0.0
        %v1232 = vmax.f32 %v877, 0.0
        %v1233 = vmax.f32 %v879, 0.0
        %v1234 = vmax.f32 %v1070, 0.0
        %v1235 = vmax.f32 %v1072, 0.0
        %v1236 = vmax.f32 %v495, 0.0
        %v1237 = vmax.f32 %v497, 0.0
        %v1238 = vmax.f32 %v688, 0.0
        %v1239 = vmax.f32 %v690, 0.0
        %v1240 = vmax.f32 %v881, 0.0
        %v1241 = vmax.f32 %v883, 0.0
        %v1242 = vmax.f32 %v1074, 0.0
        %v1243 = vmax.f32 %v1076, 0.0
        %v1244 = vmax.f32 %v501, 0.0
        %v1245 = vmax.f32 %v503, 0.0
        %v1246 = vmax.f32 %v694, 0.0
        %v1247 = vmax.f32 %v696, 0.0
        %v1248 = vmax.f32 %v887, 0.0
        %v1249 = vmax.f32 %v889, 0.0
        %v1250 = vmax.f32 %v1080, 0.0
        %v1251 = vmax.f32 %v1082, 0.0
        %v1252 = vmax.f32 %v505, 0.0
        %v1253 = vmax.f32 %v507, 0.0
        %v1254 = vmax.f32 %v698, 0.0
        %v1255 = vmax.f32 %v700, 0.0
        %v1256 = vmax.f32 %v891, 0.0
        %v1257 = vmax.f32 %v893, 0.0
        %v1258 = vmax.f32 %v1084, 0.0
        %v1259 = vmax.f32 %v1086, 0.0
        %v1260 = vmax.f32 %v511, 0.0
        %v1261 = vmax.f32 %v513, 0.0
        %v1262 = vmax.f32 %v704, 0.0
        %v1263 = vmax.f32 %v706, 0.0
        %v1264 = vmax.f32 %v897, 0.0
        %v1265 = vmax.f32 %v899, 0.0
        %v1266 = vmax.f32 %v1090, 0.0
        %v1267 = vmax.f32 %v1092, 0.0
        %v1268 = vmax.f32 %v515, 0.0
        %v1269 = vmax.f32 %v517, 0.0
        %v1270 = vmax.f32 %v708, 0.0
        %v1271 = vmax.f32 %v710, 0.0
        %v1272 = vmax.f32 %v901, 0.0
        %v1273 = vmax.f32 %v903, 0.0
        %v1274 = vmax.f32 %v1094, 0.0
        %v1275 = vmax.f32 %v1096, 0.0
        %v1276 = vmax.f32 %v521, 0.0
        %v1277 = vmax.f32 %v523, 0.0
        %v1278 = vmax.f32 %v714, 0.0
        %v1279 = vmax.f32 %v716, 0.0
        %v1280 = vmax.f32 %v907, 0.0
        %v1281 = vmax.f32 %v909, 0.0
        %v1282 = vmax.f32 %v1100, 0.0
        %v1283 = vmax.f32 %v1102, 0.0
        %v1284 = vmax.f32 %v525, 0.0
        %v1285 = vmax.f32 %v527, 0.0
        %v1286 = vmax.f32 %v718, 0.0
        %v1287 = vmax.f32 %v720, 0.0
        %v1288 = vmax.f32 %v911, 0.0
        %v1289 = vmax.f32 %v913, 0.0
        %v1290 = vmax.f32 %v1104, 0.0
        %v1291 = vmax.f32 %v1106, 0.0
        %v1292 = vmax.f32 %v531, 0.0
        %v1293 = vmax.f32 %v533, 0.0
        %v1294 = vmax.f32 %v724, 0.0
        %v1295 = vmax.f32 %v726, 0.0
        %v1296 = vmax.f32 %v917, 0.0
        %v1297 = vmax.f32 %v919, 0.0
        %v1298 = vmax.f32 %v1110, 0.0
        %v1299 = vmax.f32 %v1112, 0.0
        %v1300 = vmax.f32 %v535, 0.0
        %v1301 = vmax.f32 %v537, 0.0
        %v1302 = vmax.f32 %v728, 0.0
        %v1303 = vmax.f32 %v730, 0.0
        %v1304 = vmax.f32 %v921, 0.0
        %v1305 = vmax.f32 %v923, 0.0
        %v1306 = vmax.f32 %v1114, 0.0
        %v1307 = vmax.f32 %v1116, 0.0
        %v1308 = vmax.f32 %v541, 0.0
        %v1309 = vmax.f32 %v543, 0.0
        %v1310 = vmax.f32 %v734, 0.0
        %v1311 = vmax.f32 %v736, 0.0
        %v1312 = vmax.f32 %v927, 0.0
        %v1313 = vmax.f32 %v929, 0.0
        %v1314 = vmax.f32 %v1120, 0.0
        %v1315 = vmax.f32 %v1122, 0.0
        %v1316 = vmax.f32 %v545, 0.0
        %v1317 = vmax.f32 %v547, 0.0
        %v1318 = vmax.f32 %v738, 0.0
        %v1319 = vmax.f32 %v740, 0.0
        %v1320 = vmax.f32 %v931, 0.0
        %v1321 = vmax.f32 %v933, 0.0
        %v1322 = vmax.f32 %v1124, 0.0
        %v1323 = vmax.f32 %v1126, 0.0
        %v1324 = vmax.f32 %v551, 0.0
        %v1325 = vmax.f32 %v553, 0.0
        %v1326 = vmax.f32 %v744, 0.0
        %v1327 = vmax.f32 %v746, 0.0
        %v1328 = vmax.f32 %v937, 0.0
        %v1329 = vmax.f32 %v939, 0.0
        %v1330 = vmax.f32 %v1130, 0.0
        %v1331 = vmax.f32 %v1132, 0.0
        %v1332 = vmax.f32 %v555, 0.0
        %v1333 = vmax.f32 %v557, 0.0
        %v1334 = vmax.f32 %v748, 0.0
        %v1335 = vmax.f32 %v750, 0.0
        %v1336 = vmax.f32 %v941, 0.0
        %v1337 = vmax.f32 %v943, 0.0
        %v1338 = vmax.f32 %v1134, 0.0
        %v1339 = vmax.f32 %v1136, 0.0
        %v1340 = vmax.f32 %v561, 0.0
        %v1341 = vmax.f32 %v563, 0.0
        %v1342 = vmax.f32 %v754, 0.0
        %v1343 = vmax.f32 %v756, 0.0
        %v1344 = vmax.f32 %v947, 0.0
        %v1345 = vmax.f32 %v949, 0.0
        %v1346 = vmax.f32 %v1140, 0.0
        %v1347 = vmax.f32 %v1142, 0.0
        %v1348 = vmax.f32 %v565, 0.0
        %v1349 = vmax.f32 %v567, 0.0
        %v1350 = vmax.f32 %v758, 0.0
        %v1351 = vmax.f32 %v760, 0.0
        %v1352 = vmax.f32 %v951, 0.0
        %v1353 = vmax.f32 %v953, 0.0
        %v1354 = vmax.f32 %v1144, 0.0
        %v1355 = vmax.f32 %v1146, 0.0
        %v1356 = vmax.f32 %v571, 0.0
        %v1357 = vmax.f32 %v573, 0.0
        %v1358 = vmax.f32 %v764, 0.0
        %v1359 = vmax.f32 %v766, 0.0
        %v1360 = vmax.f32 %v957, 0.0
        %v1361 = vmax.f32 %v959, 0.0
        %v1362 = vmax.f32 %v1150, 0.0
        %v1363 = vmax.f32 %v1152, 0.0
        %v1364 = vmax.f32 %v575, 0.0
        %v1365 = vmax.f32 %v577, 0.0
        %v1366 = vmax.f32 %v768, 0.0
        %v1367 = vmax.f32 %v770, 0.0
        %v1368 = vmax.f32 %v961, 0.0
        %v1369 = vmax.f32 %v963, 0.0
        %v1370 = vmax.f32 %v1154, 0.0
        %v1371 = vmax.f32 %v1156, 0.0
        %v1372 = vmax.f32 %v581, 0.0
        %v1373 = vmax.f32 %v583, 0.0
        %v1374 = vmax.f32 %v774, 0.0
        %v1375 = vmax.f32 %v776, 0.0
        %v1376 = vmax.f32 %v967, 0.0
        %v1377 = vmax.f32 %v969, 0.0
        %v1378 = vmax.f32 %v1160, 0.0
        %v1379 = vmax.f32 %v1162, 0.0
        %v1380 = vmax.f32 %v585, 0.0
        %v1381 = vmax.f32 %v587, 0.0
        %v1382 = vmax.f32 %v778, 0.0
        %v1383 = vmax.f32 %v780, 0.0
        %v1384 = vmax.f32 %v971, 0.0
        %v1385 = vmax.f32 %v973, 0.0
        %v1386 = vmax.f32 %v1164, 0.0
        %v1387 = vmax.f32 %v1166, 0.0
        %v1388 = vmax.f32 %v591, 0.0
        %v1389 = vmax.f32 %v593, 0.0
        %v1390 = vmax.f32 %v784, 0.0
        %v1391 = vmax.f32 %v786, 0.0
        %v1392 = vmax.f32 %v977, 0.0
        %v1393 = vmax.f32 %v979, 0.0
        %v1394 = vmax.f32 %v1170, 0.0
        %v1395 = vmax.f32 %v1172, 0.0
        %v1396 = vmax.f32 %v595, 0.0
        %v1397 = vmax.f32 %v597, 0.0
        %v1398 = vmax.f32 %v788, 0.0
        %v1399 = vmax.f32 %v790, 0.0
        %v1400 = vmax.f32 %v981, 0.0
        %v1401 = vmax.f32 %v983, 0.0
        %v1402 = vmax.f32 %v1174, 0.0
        %v1403 = vmax.f32 %v1176, 0.0
        %v1404 = vmax.f32 %v601, 0.0
        %v1405 = vmax.f32 %v603, 0.0
        %v1406 = vmax.f32 %v794, 0.0
        %v1407 = vmax.f32 %v796, 0.0
        %v1408 = vmax.f32 %v987, 0.0
        %v1409 = vmax.f32 %v989, 0.0
        %v1410 = vmax.f32 %v1180, 0.0
        %v1411 = vmax.f32 %v1182, 0.0
        %v1412 = vmax.f32 %v605, 0.0
        %v1413 = vmax.f32 %v607, 0.0
        %v1414 = vmax.f32 %v798, 0.0
        %v1415 = vmax.f32 %v800, 0.0
        %v1416 = vmax.f32 %v991, 0.0
        %v1417 = vmax.f32 %v993, 0.0
        %v1418 = vmax.f32 %v1184, 0.0
        %v1419 = vmax.f32 %v1186, 0.0
        %v1420 = vmax.f32 %v611, 0.0
        %v1421 = vmax.f32 %v613, 0.0
        %v1422 = vmax.f32 %v804, 0.0
        %v1423 = vmax.f32 %v806, 0.0
        %v1424 = vmax.f32 %v997, 0.0
        %v1425 = vmax.f32 %v999, 0.0
        %v1426 = vmax.f32 %v1190, 0.0
        %v1427 = vmax.f32 %v1192, 0.0
        %v1428 = vmax.f32 %v615, 0.0
        %v1429 = vmax.f32 %v617, 0.0
        %v1430 = vmax.f32 %v808, 0.0
        %v1431 = vmax.f32 %v810, 0.0
        %v1432 = vmax.f32 %v1001, 0.0
        %v1433 = vmax.f32 %v1003, 0.0
        %v1434 = vmax.f32 %v1194, 0.0
        %v1435 = vmax.f32 %v1196, 0.0
        %v1436 = vmax.f32 %v621, 0.0
        %v1437 = vmax.f32 %v623, 0.0
        %v1438 = vmax.f32 %v814, 0.0
        %v1439 = vmax.f32 %v816, 0.0
        %v1440 = vmax.f32 %v1007, 0.0
        %v1441 = vmax.f32 %v1009, 0.0
        %v1442 = vmax.f32 %v1200, 0.0
        %v1443 = vmax.f32 %v1202, 0.0
        %v1444 = vmax.f32 %v625, 0.0
        %v1445 = vmax.f32 %v627, 0.0
        %v1446 = vmax.f32 %v818, 0.0
        %v1447 = vmax.f32 %v820, 0.0
        %v1448 = vmax.f32 %v1011, 0.0
        %v1449 = vmax.f32 %v1013, 0.0
        %v1450 = vmax.f32 %v1204, 0.0
        %v1451 = vmax.f32 %v1206, 0.0
        %v1452 = vmax.f32 %v631, 0.0
        %v1453 = vmax.f32 %v633, 0.0
        %v1454 = vmax.f32 %v824, 0.0
        %v1455 = vmax.f32 %v826, 0.0
        %v1456 = vmax.f32 %v1017, 0.0
        %v1457 = vmax.f32 %v1019, 0.0
        %v1458 = vmax.f32 %v1210, 0.0
        %v1459 = vmax.f32 %v1212, 0.0
        %v1460 = vmax.f32 %v635, 0.0
        %v1461 = vmax.f32 %v637, 0.0
        %v1462 = vmax.f32 %v828, 0.0
        %v1463 = vmax.f32 %v830, 0.0
        %v1464 = vmax.f32 %v1021, 0.0
        %v1465 = vmax.f32 %v1023, 0.0
        %v1466 = vmax.f32 %v1214, 0.0
        %v1467 = vmax.f32 %v1216, 0.0
        %v1468 = vmax.f32 %v641, 0.0
        %v1469 = vmax.f32 %v643, 0.0
        %v1470 = vmax.f32 %v834, 0.0
        %v1471 = vmax.f32 %v836, 0.0
        %v1472 = vmax.f32 %v1027, 0.0
        %v1473 = vmax.f32 %v1029, 0.0
        %v1474 = vmax.f32 %v1220, 0.0
        %v1475 = vmax.f32 %v1222, 0.0
        %v1476 = vmax.f32 %v645, 0.0
        %v1477 = vmax.f32 %v647, 0.0
        %v1478 = vmax.f32 %v838, 0.0
        %v1479 = vmax.f32 %v840, 0.0
        %v1480 = vmax.f32 %v1031, 0.0
        %v1481 = vmax.f32 %v1033, 0.0
        %v1482 = vmax.f32 %v1224, 0.0
        %v1483 = vmax.f32 %v1226, 0.0
        %v1484 = vld [vmem:[#allocation2] sm:$0xff]
        %v1485 = vld [vmem:[#allocation2 + $0x8] sm:$0xff]
        %v1486 = vld [vmem:[#allocation2 + $0x10] sm:$0xff]
        %v1487 = vld [vmem:[#allocation2 + $0x18] sm:$0xff]
        %v1488 = vld [vmem:[#allocation2 + $0x20] sm:$0xff]
        %v1489 = vld [vmem:[#allocation2 + $0x28] sm:$0xff]
        %v1490 = vld [vmem:[#allocation2 + $0x30] sm:$0xff]
        %v1491 = vld [vmem:[#allocation2 + $0x38] sm:$0xff]
        %v1492 = vadd.f32 %v1228, %v1236
        %v1493 = vadd.f32 %v1492, %v1244
        %v1494 = vadd.f32 %v1493, %v1252
        %v1495 = vadd.f32 %v1494, %v1260
        %v1496 = vadd.f32 %v1495, %v1268
        %v1497 = vadd.f32 %v1496, %v1276
        %v1498 = vadd.f32 %v1497, %v1284
        %v1499 = vadd.f32 %v1498, %v1292
        %v1500 = vadd.f32 %v1499, %v1300
        %v1501 = vadd.f32 %v1500, %v1308
        %v1502 = vadd.f32 %v1501, %v1316
        %v1503 = vadd.f32 %v1502, %v1324
        %v1504 = vadd.f32 %v1503, %v1332
        %v1505 = vadd.f32 %v1504, %v1340
        %v1506 = vadd.f32 %v1505, %v1348
        %v1507 = vadd.f32 %v1506, %v1356
        %v1508 = vadd.f32 %v1507, %v1364
        %v1509 = vadd.f32 %v1508, %v1372
        %v1510 = vadd.f32 %v1509, %v1380
        %v1511 = vadd.f32 %v1510, %v1388
        %v1512 = vadd.f32 %v1511, %v1396
        %v1513 = vadd.f32 %v1512, %v1404
        %v1514 = vadd.f32 %v1513, %v1412
        %v1515 = vadd.f32 %v1514, %v1420
        %v1516 = vadd.f32 %v1515, %v1428
        %v1517 = vadd.f32 %v1516, %v1436
        %v1518 = vadd.f32 %v1517, %v1444
        %v1519 = vadd.f32 %v1518, %v1452
        %v1520 = vadd.f32 %v1519, %v1460
        %v1521 = vadd.f32 %v1520, %v1468
        %v1522 = vadd.f32 %v1521, %v1476
        %v1523 = vadd.f32 %v1229, %v1237
        %v1524 = vadd.f32 %v1523, %v1245
        %v1525 = vadd.f32 %v1524, %v1253
        %v1526 = vadd.f32 %v1525, %v1261
        %v1527 = vadd.f32 %v1526, %v1269
        %v1528 = vadd.f32 %v1527, %v1277
        %v1529 = vadd.f32 %v1528, %v1285
        %v1530 = vadd.f32 %v1529, %v1293
        %v1531 = vadd.f32 %v1530, %v1301
        %v1532 = vadd.f32 %v1531, %v1309
        %v1533 = vadd.f32 %v1532, %v1317
        %v1534 = vadd.f32 %v1533, %v1325
        %v1535 = vadd.f32 %v1534, %v1333
        %v1536 = vadd.f32 %v1535, %v1341
        %v1537 = vadd.f32 %v1536, %v1349
        %v1538 = vadd.f32 %v1537, %v1357
        %v1539 = vadd.f32 %v1538, %v1365
        %v1540 = vadd.f32 %v1539, %v1373
        %v1541 = vadd.f32 %v1540, %v1381
        %v1542 = vadd.f32 %v1541, %v1389
        %v1543 = vadd.f32 %v1542, %v1397
        %v1544 = vadd.f32 %v1543, %v1405
        %v1545 = vadd.f32 %v1544, %v1413
        %v1546 = vadd.f32 %v1545, %v1421
        %v1547 = vadd.f32 %v1546, %v1429
        %v1548 = vadd.f32 %v1547, %v1437
        %v1549 = vadd.f32 %v1548, %v1445
        %v1550 = vadd.f32 %v1549, %v1453
        %v1551 = vadd.f32 %v1550, %v1461
        %v1552 = vadd.f32 %v1551, %v1469
        %v1553 = vadd.f32 %v1552, %v1477
        %v1554 = vadd.f32 %v1230, %v1238
        %v1555 = vadd.f32 %v1554, %v1246
        %v1556 = vadd.f32 %v1555, %v1254
        %v1557 = vadd.f32 %v1556, %v1262
        %v1558 = vadd.f32 %v1557, %v1270
        %v1559 = vadd.f32 %v1558, %v1278
        %v1560 = vadd.f32 %v1559, %v1286
        %v1561 = vadd.f32 %v1560, %v1294
        %v1562 = vadd.f32 %v1561, %v1302
        %v1563 = vadd.f32 %v1562, %v1310
        %v1564 = vadd.f32 %v1563, %v1318
        %v1565 = vadd.f32 %v1564, %v1326
        %v1566 = vadd.f32 %v1565, %v1334
        %v1567 = vadd.f32 %v1566, %v1342
        %v1568 = vadd.f32 %v1567, %v1350
        %v1569 = vadd.f32 %v1568, %v1358
        %v1570 = vadd.f32 %v1569, %v1366
        %v1571 = vadd.f32 %v1570, %v1374
        %v1572 = vadd.f32 %v1571, %v1382
        %v1573 = vadd.f32 %v1572, %v1390
        %v1574 = vadd.f32 %v1573, %v1398
        %v1575 = vadd.f32 %v1574, %v1406
        %v1576 = vadd.f32 %v1575, %v1414
        %v1577 = vadd.f32 %v1576, %v1422
        %v1578 = vadd.f32 %v1577, %v1430
        %v1579 = vadd.f32 %v1578, %v1438
        %v1580 = vadd.f32 %v1579, %v1446
        %v1581 = vadd.f32 %v1580, %v1454
        %v1582 = vadd.f32 %v1581, %v1462
        %v1583 = vadd.f32 %v1582, %v1470
        %v1584 = vadd.f32 %v1583, %v1478
        %v1585 = vadd.f32 %v1231, %v1239
        %v1586 = vadd.f32 %v1585, %v1247
        %v1587 = vadd.f32 %v1586, %v1255
        %v1588 = vadd.f32 %v1587, %v1263
        %v1589 = vadd.f32 %v1588, %v1271
        %v1590 = vadd.f32 %v1589, %v1279
        %v1591 = vadd.f32 %v1590, %v1287
        %v1592 = vadd.f32 %v1591, %v1295
        %v1593 = vadd.f32 %v1592, %v1303
        %v1594 = vadd.f32 %v1593, %v1311
        %v1595 = vadd.f32 %v1594, %v1319
        %v1596 = vadd.f32 %v1595, %v1327
        %v1597 = vadd.f32 %v1596, %v1335
        %v1598 = vadd.f32 %v1597, %v1343
        %v1599 = vadd.f32 %v1598, %v1351
        %v1600 = vadd.f32 %v1599, %v1359
        %v1601 = vadd.f32 %v1600, %v1367
        %v1602 = vadd.f32 %v1601, %v1375
        %v1603 = vadd.f32 %v1602, %v1383
        %v1604 = vadd.f32 %v1603, %v1391
        %v1605 = vadd.f32 %v1604, %v1399
        %v1606 = vadd.f32 %v1605, %v1407
        %v1607 = vadd.f32 %v1606, %v1415
        %v1608 = vadd.f32 %v1607, %v1423
        %v1609 = vadd.f32 %v1608, %v1431
        %v1610 = vadd.f32 %v1609, %v1439
        %v1611 = vadd.f32 %v1610, %v1447
        %v1612 = vadd.f32 %v1611, %v1455
        %v1613 = vadd.f32 %v1612, %v1463
        %v1614 = vadd.f32 %v1613, %v1471
        %v1615 = vadd.f32 %v1614, %v1479
        %v1616 = vadd.f32 %v1232, %v1240
        %v1617 = vadd.f32 %v1616, %v1248
        %v1618 = vadd.f32 %v1617, %v1256
        %v1619 = vadd.f32 %v1618, %v1264
        %v1620 = vadd.f32 %v1619, %v1272
        %v1621 = vadd.f32 %v1620, %v1280
        %v1622 = vadd.f32 %v1621, %v1288
        %v1623 = vadd.f32 %v1622, %v1296
        %v1624 = vadd.f32 %v1623, %v1304
        %v1625 = vadd.f32 %v1624, %v1312
        %v1626 = vadd.f32 %v1625, %v1320
        %v1627 = vadd.f32 %v1626, %v1328
        %v1628 = vadd.f32 %v1627, %v1336
        %v1629 = vadd.f32 %v1628, %v1344
        %v1630 = vadd.f32 %v1629, %v1352
        %v1631 = vadd.f32 %v1630, %v1360
        %v1632 = vadd.f32 %v1631, %v1368
        %v1633 = vadd.f32 %v1632, %v1376
        %v1634 = vadd.f32 %v1633, %v1384
        %v1635 = vadd.f32 %v1634, %v1392
        %v1636 = vadd.f32 %v1635, %v1400
        %v1637 = vadd.f32 %v1636, %v1408
        %v1638 = vadd.f32 %v1637, %v1416
        %v1639 = vadd.f32 %v1638, %v1424
        %v1640 = vadd.f32 %v1639, %v1432
        %v1641 = vadd.f32 %v1640, %v1440
        %v1642 = vadd.f32 %v1641, %v1448
        %v1643 = vadd.f32 %v1642, %v1456
        %v1644 = vadd.f32 %v1643, %v1464
        %v1645 = vadd.f32 %v1644, %v1472
        %v1646 = vadd.f32 %v1645, %v1480
        %v1647 = vadd.f32 %v1233, %v1241
        %v1648 = vadd.f32 %v1647, %v1249
        %v1649 = vadd.f32 %v1648, %v1257
        %v1650 = vadd.f32 %v1649, %v1265
        %v1651 = vadd.f32 %v1650, %v1273
        %v1652 = vadd.f32 %v1651, %v1281
        %v1653 = vadd.f32 %v1652, %v1289
        %v1654 = vadd.f32 %v1653, %v1297
        %v1655 = vadd.f32 %v1654, %v1305
        %v1656 = vadd.f32 %v1655, %v1313
        %v1657 = vadd.f32 %v1656, %v1321
        %v1658 = vadd.f32 %v1657, %v1329
        %v1659 = vadd.f32 %v1658, %v1337
        %v1660 = vadd.f32 %v1659, %v1345
        %v1661 = vadd.f32 %v1660, %v1353
        %v1662 = vadd.f32 %v1661, %v1361
        %v1663 = vadd.f32 %v1662, %v1369
        %v1664 = vadd.f32 %v1663, %v1377
        %v1665 = vadd.f32 %v1664, %v1385
        %v1666 = vadd.f32 %v1665, %v1393
        %v1667 = vadd.f32 %v1666, %v1401
        %v1668 = vadd.f32 %v1667, %v1409
        %v1669 = vadd.f32 %v1668, %v1417
        %v1670 = vadd.f32 %v1669, %v1425
        %v1671 = vadd.f32 %v1670, %v1433
        %v1672 = vadd.f32 %v1671, %v1441
        %v1673 = vadd.f32 %v1672, %v1449
        %v1674 = vadd.f32 %v1673, %v1457
        %v1675 = vadd.f32 %v1674, %v1465
        %v1676 = vadd.f32 %v1675, %v1473
        %v1677 = vadd.f32 %v1676, %v1481
        %v1678 = vadd.f32 %v1234, %v1242
        %v1679 = vadd.f32 %v1678, %v1250
        %v1680 = vadd.f32 %v1679, %v1258
        %v1681 = vadd.f32 %v1680, %v1266
        %v1682 = vadd.f32 %v1681, %v1274
        %v1683 = vadd.f32 %v1682, %v1282
        %v1684 = vadd.f32 %v1683, %v1290
        %v1685 = vadd.f32 %v1684, %v1298
        %v1686 = vadd.f32 %v1685, %v1306
        %v1687 = vadd.f32 %v1686, %v1314
        %v1688 = vadd.f32 %v1687, %v1322
        %v1689 = vadd.f32 %v1688, %v1330
        %v1690 = vadd.f32 %v1689, %v1338
        %v1691 = vadd.f32 %v1690, %v1346
        %v1692 = vadd.f32 %v1691, %v1354
        %v1693 = vadd.f32 %v1692, %v1362
        %v1694 = vadd.f32 %v1693, %v1370
        %v1695 = vadd.f32 %v1694, %v1378
        %v1696 = vadd.f32 %v1695, %v1386
        %v1697 = vadd.f32 %v1696, %v1394
        %v1698 = vadd.f32 %v1697, %v1402
        %v1699 = vadd.f32 %v1698, %v1410
        %v1700 = vadd.f32 %v1699, %v1418
        %v1701 = vadd.f32 %v1700, %v1426
        %v1702 = vadd.f32 %v1701, %v1434
        %v1703 = vadd.f32 %v1702, %v1442
        %v1704 = vadd.f32 %v1703, %v1450
        %v1705 = vadd.f32 %v1704, %v1458
        %v1706 = vadd.f32 %v1705, %v1466
        %v1707 = vadd.f32 %v1706, %v1474
        %v1708 = vadd.f32 %v1707, %v1482
        %v1709 = vadd.f32 %v1235, %v1243
        %v1710 = vadd.f32 %v1709, %v1251
        %v1711 = vadd.f32 %v1710, %v1259
        %v1712 = vadd.f32 %v1711, %v1267
        %v1713 = vadd.f32 %v1712, %v1275
        %v1714 = vadd.f32 %v1713, %v1283
        %v1715 = vadd.f32 %v1714, %v1291
        %v1716 = vadd.f32 %v1715, %v1299
        %v1717 = vadd.f32 %v1716, %v1307
        %v1718 = vadd.f32 %v1717, %v1315
        %v1719 = vadd.f32 %v1718, %v1323
        %v1720 = vadd.f32 %v1719, %v1331
        %v1721 = vadd.f32 %v1720, %v1339
        %v1722 = vadd.f32 %v1721, %v1347
        %v1723 = vadd.f32 %v1722, %v1355
        %v1724 = vadd.f32 %v1723, %v1363
        %v1725 = vadd.f32 %v1724, %v1371
        %v1726 = vadd.f32 %v1725, %v1379
        %v1727 = vadd.f32 %v1726, %v1387
        %v1728 = vadd.f32 %v1727, %v1395
        %v1729 = vadd.f32 %v1728, %v1403
        %v1730 = vadd.f32 %v1729, %v1411
        %v1731 = vadd.f32 %v1730, %v1419
        %v1732 = vadd.f32 %v1731, %v1427
        %v1733 = vadd.f32 %v1732, %v1435
        %v1734 = vadd.f32 %v1733, %v1443
        %v1735 = vadd.f32 %v1734, %v1451
        %v1736 = vadd.f32 %v1735, %v1459
        %v1737 = vadd.f32 %v1736, %v1467
        %v1738 = vadd.f32 %v1737, %v1475
        %v1739 = vadd.f32 %v1738, %v1483
        %v1740 = vadd.f32 %v1484, %v1522
        %v1741 = vadd.f32 %v1485, %v1553
        %v1742 = vadd.f32 %v1486, %v1584
        %v1743 = vadd.f32 %v1487, %v1615
        %v1744 = vadd.f32 %v1488, %v1646
        %v1745 = vadd.f32 %v1489, %v1677
        %v1746 = vadd.f32 %v1490, %v1708
        %v1747 = vadd.f32 %v1491, %v1739
        %1748 = vst [vmem:[#allocation2] sm:$0xff] %v1740
        %1749 = vst [vmem:[#allocation2 + $0x8] sm:$0xff] %v1741
        %1750 = vst [vmem:[#allocation2 + $0x10] sm:$0xff] %v1742
        %1751 = vst [vmem:[#allocation2 + $0x18] sm:$0xff] %v1743
        %1752 = vst [vmem:[#allocation2 + $0x20] sm:$0xff] %v1744
        %1753 = vst [vmem:[#allocation2 + $0x28] sm:$0xff] %v1745
        %1754 = vst [vmem:[#allocation2 + $0x30] sm:$0xff] %v1746
        %1755 = vst [vmem:[#allocation2 + $0x38] sm:$0xff] %v1747
        %v1756 = vld [vmem:[%s1 + $0x20] sm:$0xff]
        %v1757 = vld [vmem:[%s1 + $0x28] sm:$0xff]
        %v1758 = vld [vmem:[%s1 + $0x30] sm:$0xff]
        %v1759 = vld [vmem:[%s1 + $0x38] sm:$0xff]
        %v1760 = vld [vmem:[%s1 + $0x40] sm:$0xff]
        %v1766 = vunpack.c.l.b16 %v1756
        %v1767 = vunpack.c.h.b16 %v1756
        %v1768 = vunpack.c.l.b16 %v1757
        %v1769 = vunpack.c.h.b16 %v1757
        %v1770 = vunpack.c.l.b16 %v1758
        %v1771 = vunpack.c.h.b16 %v1758
        %v1772 = vunpack.c.l.b16 %v1759
        %v1773 = vunpack.c.h.b16 %v1759
        %v1774 = vunpack.c.l.b16 %v1760
        %v1775 = vunpack.c.h.b16 %v1760
        %v1776 = vpack.c.b16 %v1766, %v1766
        %v1777 = vpack.c.b16 %v1767, %v1767
        %v1778 = vpack.c.b16 %v1768, %v1768
        %v1779 = vpack.c.b16 %v1769, %v1769
        %v1780 = vpack.c.b16 %v1770, %v1770
        %v1781 = vpack.c.b16 %v1771, %v1771
        %v1782 = vpack.c.b16 %v1772, %v1772
        %v1783 = vpack.c.b16 %v1773, %v1773
        %v1784 = vpack.c.b16 %v1774, %v1774
        %v1785 = vpack.c.b16 %v1775, %v1775
        %v1787 = vsel %vm431, %v1776, 0
        %v1790 = vsel %vm431, %v1777, 0
        %v1793 = vsel %vm431, %v1778, 0
        %v1796 = vsel %vm431, %v1779, 0
        %v1799 = vsel %vm431, %v1780, 0
        %v1802 = vsel %vm431, %v1781, 0
        %v1805 = vsel %vm431, %v1782, 0
        %v1808 = vsel %vm431, %v1783, 0
        %v1811 = vsel %vm431, %v1784, 0
        %v1814 = vsel %vm431, %v1785, 0
        %1816 = vmatprep.subr.bf16.mxu0 0
        %1817 = vmatpush1.bf16.msra.mxu0 0
        %1818 = vmatprep.subr.bf16.mxu0 0
        %1819 = vmatpush1.bf16.msra.mxu0 0
        %1820 = vmatprep.subr.bf16.mxu0 0
        %1821 = vmatpush1.bf16.msra.mxu0 0
        %1822 = vmatprep.subr.bf16.mxu0 0
        %1823 = vmatpush1.bf16.msra.mxu0 0
        %1824 = vmatprep.subr.bf16.mxu0 0
        %1825 = vmatpush1.bf16.msra.mxu0 0
        %1826 = vmatprep.subr.bf16.mxu0 0
        %1827 = vmatpush1.bf16.msra.mxu0 0
        %1828 = vmatprep.subr.bf16.mxu0 0
        %1829 = vmatpush1.bf16.msra.mxu0 0
        %1830 = vmatprep.subr.bf16.mxu0 %v1790
        %1831 = vmatpush1.bf16.msra.mxu0 %v1787
        %1832 = vmatprep.subr.bf16.mxu0 0
        %1833 = vmatpush2.bf16.msra.mxu0 0
        %1834 = vmatprep.subr.bf16.mxu0 0
        %1835 = vmatpush2.bf16.msra.mxu0 0
        %1836 = vmatprep.subr.bf16.mxu0 0
        %1837 = vmatpush2.bf16.msra.mxu0 0
        %1838 = vmatprep.subr.bf16.mxu0 0
        %1839 = vmatpush2.bf16.msra.mxu0 0
        %1840 = vmatprep.subr.bf16.mxu0 0
        %1841 = vmatpush2.bf16.msra.mxu0 0
        %1842 = vmatprep.subr.bf16.mxu0 0
        %1843 = vmatpush2.bf16.msra.mxu0 0
        %1844 = vmatprep.subr.bf16.mxu0 0
        %1845 = vmatpush2.bf16.msra.mxu0 0
        %1846 = vmatprep.subr.bf16.mxu0 0
        %1847 = vmatpush2.bf16.msra.mxu0 0
        %1848 = vmatprep.mubr.bf16.mxu0 0
        %1849 = vmatmul.mubr.bf16.gmra.mxu0 %v384
        %v1850 = vpop.f32.mrf.mxu0
        %v1851 = vadd.f32 0.0, %v1850
        %v1852 = vpop.f32.mrf.mxu0
        %v1853 = vadd.f32 0.0, %v1852
        %v1854 = vpop.f32.mrf.mxu0
        %v1855 = vadd.f32 0.0, %v1854
        %v1856 = vpop.f32.mrf.mxu0
        %v1857 = vadd.f32 0.0, %v1856
        %1858 = vmatprep.mubr.bf16.mxu0 0
        %1859 = vmatmul.mubr.bf16.gmra.mxu0 %v387
        %v1860 = vpop.f32.mrf.mxu0
        %v1861 = vadd.f32 0.0, %v1860
        %v1862 = vpop.f32.mrf.mxu0
        %v1863 = vadd.f32 0.0, %v1862
        %v1864 = vpop.f32.mrf.mxu0
        %v1865 = vadd.f32 0.0, %v1864
        %v1866 = vpop.f32.mrf.mxu0
        %v1867 = vadd.f32 0.0, %v1866
        %1868 = vmatprep.mubr.bf16.mxu0 0
        %1869 = vmatmul.mubr.bf16.gmra.mxu0 %v390
        %v1870 = vpop.f32.mrf.mxu0
        %v1871 = vadd.f32 0.0, %v1870
        %v1872 = vpop.f32.mrf.mxu0
        %v1873 = vadd.f32 0.0, %v1872
        %v1874 = vpop.f32.mrf.mxu0
        %v1875 = vadd.f32 0.0, %v1874
        %v1876 = vpop.f32.mrf.mxu0
        %v1877 = vadd.f32 0.0, %v1876
        %1878 = vmatprep.mubr.bf16.mxu0 0
        %1879 = vmatmul.mubr.bf16.gmra.mxu0 %v393
        %v1880 = vpop.f32.mrf.mxu0
        %v1881 = vadd.f32 0.0, %v1880
        %v1882 = vpop.f32.mrf.mxu0
        %v1883 = vadd.f32 0.0, %v1882
        %v1884 = vpop.f32.mrf.mxu0
        %v1885 = vadd.f32 0.0, %v1884
        %v1886 = vpop.f32.mrf.mxu0
        %v1887 = vadd.f32 0.0, %v1886
        %1888 = vmatprep.mubr.bf16.mxu0 0
        %1889 = vmatmul.mubr.bf16.gmra.mxu0 %v396
        %v1890 = vpop.f32.mrf.mxu0
        %v1891 = vadd.f32 0.0, %v1890
        %v1892 = vpop.f32.mrf.mxu0
        %v1893 = vadd.f32 0.0, %v1892
        %v1894 = vpop.f32.mrf.mxu0
        %v1895 = vadd.f32 0.0, %v1894
        %v1896 = vpop.f32.mrf.mxu0
        %v1897 = vadd.f32 0.0, %v1896
        %1898 = vmatprep.mubr.bf16.mxu0 0
        %1899 = vmatmul.mubr.bf16.gmra.mxu0 %v399
        %v1900 = vpop.f32.mrf.mxu0
        %v1901 = vadd.f32 0.0, %v1900
        %v1902 = vpop.f32.mrf.mxu0
        %v1903 = vadd.f32 0.0, %v1902
        %v1904 = vpop.f32.mrf.mxu0
        %v1905 = vadd.f32 0.0, %v1904
        %v1906 = vpop.f32.mrf.mxu0
        %v1907 = vadd.f32 0.0, %v1906
        %1908 = vmatprep.mubr.bf16.mxu0 0
        %1909 = vmatmul.mubr.bf16.gmra.mxu0 %v402
        %v1910 = vpop.f32.mrf.mxu0
        %v1911 = vadd.f32 0.0, %v1910
        %v1912 = vpop.f32.mrf.mxu0
        %v1913 = vadd.f32 0.0, %v1912
        %v1914 = vpop.f32.mrf.mxu0
        %v1915 = vadd.f32 0.0, %v1914
        %v1916 = vpop.f32.mrf.mxu0
        %v1917 = vadd.f32 0.0, %v1916
        %1918 = vmatprep.mubr.bf16.mxu0 0
        %1919 = vmatmul.mubr.bf16.gmra.mxu0 %v405
        %v1920 = vpop.f32.mrf.mxu0
        %v1921 = vadd.f32 0.0, %v1920
        %v1922 = vpop.f32.mrf.mxu0
        %v1923 = vadd.f32 0.0, %v1922
        %v1924 = vpop.f32.mrf.mxu0
        %v1925 = vadd.f32 0.0, %v1924
        %v1926 = vpop.f32.mrf.mxu0
        %v1927 = vadd.f32 0.0, %v1926
        %1928 = vmatprep.mubr.bf16.mxu0 0
        %1929 = vmatmul.mubr.bf16.gmra.mxu0 %v408
        %v1930 = vpop.f32.mrf.mxu0
        %v1931 = vadd.f32 0.0, %v1930
        %v1932 = vpop.f32.mrf.mxu0
        %v1933 = vadd.f32 0.0, %v1932
        %v1934 = vpop.f32.mrf.mxu0
        %v1935 = vadd.f32 0.0, %v1934
        %v1936 = vpop.f32.mrf.mxu0
        %v1937 = vadd.f32 0.0, %v1936
        %1938 = vmatprep.mubr.bf16.mxu0 0
        %1939 = vmatmul.mubr.bf16.gmra.mxu0 %v411
        %v1940 = vpop.f32.mrf.mxu0
        %v1941 = vadd.f32 0.0, %v1940
        %v1942 = vpop.f32.mrf.mxu0
        %v1943 = vadd.f32 0.0, %v1942
        %v1944 = vpop.f32.mrf.mxu0
        %v1945 = vadd.f32 0.0, %v1944
        %v1946 = vpop.f32.mrf.mxu0
        %v1947 = vadd.f32 0.0, %v1946
        %1948 = vmatprep.mubr.bf16.mxu0 0
        %1949 = vmatmul.mubr.bf16.gmra.mxu0 %v414
        %v1950 = vpop.f32.mrf.mxu0
        %v1951 = vadd.f32 0.0, %v1950
        %v1952 = vpop.f32.mrf.mxu0
        %v1953 = vadd.f32 0.0, %v1952
        %v1954 = vpop.f32.mrf.mxu0
        %v1955 = vadd.f32 0.0, %v1954
        %v1956 = vpop.f32.mrf.mxu0
        %v1957 = vadd.f32 0.0, %v1956
        %1958 = vmatprep.mubr.bf16.mxu0 0
        %1959 = vmatmul.mubr.bf16.gmra.mxu0 %v417
        %v1960 = vpop.f32.mrf.mxu0
        %v1961 = vadd.f32 0.0, %v1960
        %v1962 = vpop.f32.mrf.mxu0
        %v1963 = vadd.f32 0.0, %v1962
        %v1964 = vpop.f32.mrf.mxu0
        %v1965 = vadd.f32 0.0, %v1964
        %v1966 = vpop.f32.mrf.mxu0
        %v1967 = vadd.f32 0.0, %v1966
        %1968 = vmatprep.mubr.bf16.mxu0 0
        %1969 = vmatmul.mubr.bf16.gmra.mxu0 %v420
        %v1970 = vpop.f32.mrf.mxu0
        %v1971 = vadd.f32 0.0, %v1970
        %v1972 = vpop.f32.mrf.mxu0
        %v1973 = vadd.f32 0.0, %v1972
        %v1974 = vpop.f32.mrf.mxu0
        %v1975 = vadd.f32 0.0, %v1974
        %v1976 = vpop.f32.mrf.mxu0
        %v1977 = vadd.f32 0.0, %v1976
        %1978 = vmatprep.mubr.bf16.mxu0 0
        %1979 = vmatmul.mubr.bf16.gmra.mxu0 %v423
        %v1980 = vpop.f32.mrf.mxu0
        %v1981 = vadd.f32 0.0, %v1980
        %v1982 = vpop.f32.mrf.mxu0
        %v1983 = vadd.f32 0.0, %v1982
        %v1984 = vpop.f32.mrf.mxu0
        %v1985 = vadd.f32 0.0, %v1984
        %v1986 = vpop.f32.mrf.mxu0
        %v1987 = vadd.f32 0.0, %v1986
        %1988 = vmatprep.mubr.bf16.mxu0 0
        %1989 = vmatmul.mubr.bf16.gmra.mxu0 %v426
        %v1990 = vpop.f32.mrf.mxu0
        %v1991 = vadd.f32 0.0, %v1990
        %v1992 = vpop.f32.mrf.mxu0
        %v1993 = vadd.f32 0.0, %v1992
        %v1994 = vpop.f32.mrf.mxu0
        %v1995 = vadd.f32 0.0, %v1994
        %v1996 = vpop.f32.mrf.mxu0
        %v1997 = vadd.f32 0.0, %v1996
        %1998 = vmatprep.mubr.bf16.mxu0 0
        %1999 = vmatmul.mubr.bf16.gmra.mxu0 %v429
        %v2000 = vpop.f32.mrf.mxu0
        %v2001 = vadd.f32 0.0, %v2000
        %v2002 = vpop.f32.mrf.mxu0
        %v2003 = vadd.f32 0.0, %v2002
        %v2004 = vpop.f32.mrf.mxu0
        %v2005 = vadd.f32 0.0, %v2004
        %v2006 = vpop.f32.mrf.mxu0
        %v2007 = vadd.f32 0.0, %v2006
        %2008 = vdwg.mxu0
        %2009 = vmatprep.subr.bf16.mxu0 0
        %2010 = vmatpush1.bf16.msra.mxu0 0
        %2011 = vmatprep.subr.bf16.mxu0 0
        %2012 = vmatpush1.bf16.msra.mxu0 0
        %2013 = vmatprep.subr.bf16.mxu0 0
        %2014 = vmatpush1.bf16.msra.mxu0 0
        %2015 = vmatprep.subr.bf16.mxu0 0
        %2016 = vmatpush1.bf16.msra.mxu0 0
        %2017 = vmatprep.subr.bf16.mxu0 0
        %2018 = vmatpush1.bf16.msra.mxu0 0
        %2019 = vmatprep.subr.bf16.mxu0 0
        %2020 = vmatpush1.bf16.msra.mxu0 0
        %2021 = vmatprep.subr.bf16.mxu0 0
        %2022 = vmatpush1.bf16.msra.mxu0 0
        %2023 = vmatprep.subr.bf16.mxu0 %v1796
        %2024 = vmatpush1.bf16.msra.mxu0 %v1793
        %2025 = vmatprep.subr.bf16.mxu0 0
        %2026 = vmatpush2.bf16.msra.mxu0 0
        %2027 = vmatprep.subr.bf16.mxu0 0
        %2028 = vmatpush2.bf16.msra.mxu0 0
        %2029 = vmatprep.subr.bf16.mxu0 0
        %2030 = vmatpush2.bf16.msra.mxu0 0
        %2031 = vmatprep.subr.bf16.mxu0 0
        %2032 = vmatpush2.bf16.msra.mxu0 0
        %2033 = vmatprep.subr.bf16.mxu0 0
        %2034 = vmatpush2.bf16.msra.mxu0 0
        %2035 = vmatprep.subr.bf16.mxu0 0
        %2036 = vmatpush2.bf16.msra.mxu0 0
        %2037 = vmatprep.subr.bf16.mxu0 0
        %2038 = vmatpush2.bf16.msra.mxu0 0
        %2039 = vmatprep.subr.bf16.mxu0 0
        %2040 = vmatpush2.bf16.msra.mxu0 0
        %2041 = vmatprep.mubr.bf16.mxu0 0
        %2042 = vmatmul.mubr.bf16.gmra.mxu0 %v384
        %v2043 = vpop.f32.mrf.mxu0
        %v2044 = vadd.f32 0.0, %v2043
        %v2045 = vpop.f32.mrf.mxu0
        %v2046 = vadd.f32 0.0, %v2045
        %v2047 = vpop.f32.mrf.mxu0
        %v2048 = vadd.f32 0.0, %v2047
        %v2049 = vpop.f32.mrf.mxu0
        %v2050 = vadd.f32 0.0, %v2049
        %2051 = vmatprep.mubr.bf16.mxu0 0
        %2052 = vmatmul.mubr.bf16.gmra.mxu0 %v387
        %v2053 = vpop.f32.mrf.mxu0
        %v2054 = vadd.f32 0.0, %v2053
        %v2055 = vpop.f32.mrf.mxu0
        %v2056 = vadd.f32 0.0, %v2055
        %v2057 = vpop.f32.mrf.mxu0
        %v2058 = vadd.f32 0.0, %v2057
        %v2059 = vpop.f32.mrf.mxu0
        %v2060 = vadd.f32 0.0, %v2059
        %2061 = vmatprep.mubr.bf16.mxu0 0
        %2062 = vmatmul.mubr.bf16.gmra.mxu0 %v390
        %v2063 = vpop.f32.mrf.mxu0
        %v2064 = vadd.f32 0.0, %v2063
        %v2065 = vpop.f32.mrf.mxu0
        %v2066 = vadd.f32 0.0, %v2065
        %v2067 = vpop.f32.mrf.mxu0
        %v2068 = vadd.f32 0.0, %v2067
        %v2069 = vpop.f32.mrf.mxu0
        %v2070 = vadd.f32 0.0, %v2069
        %2071 = vmatprep.mubr.bf16.mxu0 0
        %2072 = vmatmul.mubr.bf16.gmra.mxu0 %v393
        %v2073 = vpop.f32.mrf.mxu0
        %v2074 = vadd.f32 0.0, %v2073
        %v2075 = vpop.f32.mrf.mxu0
        %v2076 = vadd.f32 0.0, %v2075
        %v2077 = vpop.f32.mrf.mxu0
        %v2078 = vadd.f32 0.0, %v2077
        %v2079 = vpop.f32.mrf.mxu0
        %v2080 = vadd.f32 0.0, %v2079
        %2081 = vmatprep.mubr.bf16.mxu0 0
        %2082 = vmatmul.mubr.bf16.gmra.mxu0 %v396
        %v2083 = vpop.f32.mrf.mxu0
        %v2084 = vadd.f32 0.0, %v2083
        %v2085 = vpop.f32.mrf.mxu0
        %v2086 = vadd.f32 0.0, %v2085
        %v2087 = vpop.f32.mrf.mxu0
        %v2088 = vadd.f32 0.0, %v2087
        %v2089 = vpop.f32.mrf.mxu0
        %v2090 = vadd.f32 0.0, %v2089
        %2091 = vmatprep.mubr.bf16.mxu0 0
        %2092 = vmatmul.mubr.bf16.gmra.mxu0 %v399
        %v2093 = vpop.f32.mrf.mxu0
        %v2094 = vadd.f32 0.0, %v2093
        %v2095 = vpop.f32.mrf.mxu0
        %v2096 = vadd.f32 0.0, %v2095
        %v2097 = vpop.f32.mrf.mxu0
        %v2098 = vadd.f32 0.0, %v2097
        %v2099 = vpop.f32.mrf.mxu0
        %v2100 = vadd.f32 0.0, %v2099
        %2101 = vmatprep.mubr.bf16.mxu0 0
        %2102 = vmatmul.mubr.bf16.gmra.mxu0 %v402
        %v2103 = vpop.f32.mrf.mxu0
        %v2104 = vadd.f32 0.0, %v2103
        %v2105 = vpop.f32.mrf.mxu0
        %v2106 = vadd.f32 0.0, %v2105
        %v2107 = vpop.f32.mrf.mxu0
        %v2108 = vadd.f32 0.0, %v2107
        %v2109 = vpop.f32.mrf.mxu0
        %v2110 = vadd.f32 0.0, %v2109
        %2111 = vmatprep.mubr.bf16.mxu0 0
        %2112 = vmatmul.mubr.bf16.gmra.mxu0 %v405
        %v2113 = vpop.f32.mrf.mxu0
        %v2114 = vadd.f32 0.0, %v2113
        %v2115 = vpop.f32.mrf.mxu0
        %v2116 = vadd.f32 0.0, %v2115
        %v2117 = vpop.f32.mrf.mxu0
        %v2118 = vadd.f32 0.0, %v2117
        %v2119 = vpop.f32.mrf.mxu0
        %v2120 = vadd.f32 0.0, %v2119
        %2121 = vmatprep.mubr.bf16.mxu0 0
        %2122 = vmatmul.mubr.bf16.gmra.mxu0 %v408
        %v2123 = vpop.f32.mrf.mxu0
        %v2124 = vadd.f32 0.0, %v2123
        %v2125 = vpop.f32.mrf.mxu0
        %v2126 = vadd.f32 0.0, %v2125
        %v2127 = vpop.f32.mrf.mxu0
        %v2128 = vadd.f32 0.0, %v2127
        %v2129 = vpop.f32.mrf.mxu0
        %v2130 = vadd.f32 0.0, %v2129
        %2131 = vmatprep.mubr.bf16.mxu0 0
        %2132 = vmatmul.mubr.bf16.gmra.mxu0 %v411
        %v2133 = vpop.f32.mrf.mxu0
        %v2134 = vadd.f32 0.0, %v2133
        %v2135 = vpop.f32.mrf.mxu0
        %v2136 = vadd.f32 0.0, %v2135
        %v2137 = vpop.f32.mrf.mxu0
        %v2138 = vadd.f32 0.0, %v2137
        %v2139 = vpop.f32.mrf.mxu0
        %v2140 = vadd.f32 0.0, %v2139
        %2141 = vmatprep.mubr.bf16.mxu0 0
        %2142 = vmatmul.mubr.bf16.gmra.mxu0 %v414
        %v2143 = vpop.f32.mrf.mxu0
        %v2144 = vadd.f32 0.0, %v2143
        %v2145 = vpop.f32.mrf.mxu0
        %v2146 = vadd.f32 0.0, %v2145
        %v2147 = vpop.f32.mrf.mxu0
        %v2148 = vadd.f32 0.0, %v2147
        %v2149 = vpop.f32.mrf.mxu0
        %v2150 = vadd.f32 0.0, %v2149
        %2151 = vmatprep.mubr.bf16.mxu0 0
        %2152 = vmatmul.mubr.bf16.gmra.mxu0 %v417
        %v2153 = vpop.f32.mrf.mxu0
        %v2154 = vadd.f32 0.0, %v2153
        %v2155 = vpop.f32.mrf.mxu0
        %v2156 = vadd.f32 0.0, %v2155
        %v2157 = vpop.f32.mrf.mxu0
        %v2158 = vadd.f32 0.0, %v2157
        %v2159 = vpop.f32.mrf.mxu0
        %v2160 = vadd.f32 0.0, %v2159
        %2161 = vmatprep.mubr.bf16.mxu0 0
        %2162 = vmatmul.mubr.bf16.gmra.mxu0 %v420
        %v2163 = vpop.f32.mrf.mxu0
        %v2164 = vadd.f32 0.0, %v2163
        %v2165 = vpop.f32.mrf.mxu0
        %v2166 = vadd.f32 0.0, %v2165
        %v2167 = vpop.f32.mrf.mxu0
        %v2168 = vadd.f32 0.0, %v2167
        %v2169 = vpop.f32.mrf.mxu0
        %v2170 = vadd.f32 0.0, %v2169
        %2171 = vmatprep.mubr.bf16.mxu0 0
        %2172 = vmatmul.mubr.bf16.gmra.mxu0 %v423
        %v2173 = vpop.f32.mrf.mxu0
        %v2174 = vadd.f32 0.0, %v2173
        %v2175 = vpop.f32.mrf.mxu0
        %v2176 = vadd.f32 0.0, %v2175
        %v2177 = vpop.f32.mrf.mxu0
        %v2178 = vadd.f32 0.0, %v2177
        %v2179 = vpop.f32.mrf.mxu0
        %v2180 = vadd.f32 0.0, %v2179
        %2181 = vmatprep.mubr.bf16.mxu0 0
        %2182 = vmatmul.mubr.bf16.gmra.mxu0 %v426
        %v2183 = vpop.f32.mrf.mxu0
        %v2184 = vadd.f32 0.0, %v2183
        %v2185 = vpop.f32.mrf.mxu0
        %v2186 = vadd.f32 0.0, %v2185
        %v2187 = vpop.f32.mrf.mxu0
        %v2188 = vadd.f32 0.0, %v2187
        %v2189 = vpop.f32.mrf.mxu0
        %v2190 = vadd.f32 0.0, %v2189
        %2191 = vmatprep.mubr.bf16.mxu0 0
        %2192 = vmatmul.mubr.bf16.gmra.mxu0 %v429
        %v2193 = vpop.f32.mrf.mxu0
        %v2194 = vadd.f32 0.0, %v2193
        %v2195 = vpop.f32.mrf.mxu0
        %v2196 = vadd.f32 0.0, %v2195
        %v2197 = vpop.f32.mrf.mxu0
        %v2198 = vadd.f32 0.0, %v2197
        %v2199 = vpop.f32.mrf.mxu0
        %v2200 = vadd.f32 0.0, %v2199
        %2201 = vdwg.mxu0
        %2202 = vmatprep.subr.bf16.mxu0 0
        %2203 = vmatpush1.bf16.msra.mxu0 0
        %2204 = vmatprep.subr.bf16.mxu0 0
        %2205 = vmatpush1.bf16.msra.mxu0 0
        %2206 = vmatprep.subr.bf16.mxu0 0
        %2207 = vmatpush1.bf16.msra.mxu0 0
        %2208 = vmatprep.subr.bf16.mxu0 0
        %2209 = vmatpush1.bf16.msra.mxu0 0
        %2210 = vmatprep.subr.bf16.mxu0 0
        %2211 = vmatpush1.bf16.msra.mxu0 0
        %2212 = vmatprep.subr.bf16.mxu0 0
        %2213 = vmatpush1.bf16.msra.mxu0 0
        %2214 = vmatprep.subr.bf16.mxu0 0
        %2215 = vmatpush1.bf16.msra.mxu0 0
        %2216 = vmatprep.subr.bf16.mxu0 %v1802
        %2217 = vmatpush1.bf16.msra.mxu0 %v1799
        %2218 = vmatprep.subr.bf16.mxu0 0
        %2219 = vmatpush2.bf16.msra.mxu0 0
        %2220 = vmatprep.subr.bf16.mxu0 0
        %2221 = vmatpush2.bf16.msra.mxu0 0
        %2222 = vmatprep.subr.bf16.mxu0 0
        %2223 = vmatpush2.bf16.msra.mxu0 0
        %2224 = vmatprep.subr.bf16.mxu0 0
        %2225 = vmatpush2.bf16.msra.mxu0 0
        %2226 = vmatprep.subr.bf16.mxu0 0
        %2227 = vmatpush2.bf16.msra.mxu0 0
        %2228 = vmatprep.subr.bf16.mxu0 0
        %2229 = vmatpush2.bf16.msra.mxu0 0
        %2230 = vmatprep.subr.bf16.mxu0 0
        %2231 = vmatpush2.bf16.msra.mxu0 0
        %2232 = vmatprep.subr.bf16.mxu0 0
        %2233 = vmatpush2.bf16.msra.mxu0 0
        %2234 = vmatprep.mubr.bf16.mxu0 0
        %2235 = vmatmul.mubr.bf16.gmra.mxu0 %v384
        %v2236 = vpop.f32.mrf.mxu0
        %v2237 = vadd.f32 0.0, %v2236
        %v2238 = vpop.f32.mrf.mxu0
        %v2239 = vadd.f32 0.0, %v2238
        %v2240 = vpop.f32.mrf.mxu0
        %v2241 = vadd.f32 0.0, %v2240
        %v2242 = vpop.f32.mrf.mxu0
        %v2243 = vadd.f32 0.0, %v2242
        %2244 = vmatprep.mubr.bf16.mxu0 0
        %2245 = vmatmul.mubr.bf16.gmra.mxu0 %v387
        %v2246 = vpop.f32.mrf.mxu0
        %v2247 = vadd.f32 0.0, %v2246
        %v2248 = vpop.f32.mrf.mxu0
        %v2249 = vadd.f32 0.0, %v2248
        %v2250 = vpop.f32.mrf.mxu0
        %v2251 = vadd.f32 0.0, %v2250
        %v2252 = vpop.f32.mrf.mxu0
        %v2253 = vadd.f32 0.0, %v2252
        %2254 = vmatprep.mubr.bf16.mxu0 0
        %2255 = vmatmul.mubr.bf16.gmra.mxu0 %v390
        %v2256 = vpop.f32.mrf.mxu0
        %v2257 = vadd.f32 0.0, %v2256
        %v2258 = vpop.f32.mrf.mxu0
        %v2259 = vadd.f32 0.0, %v2258
        %v2260 = vpop.f32.mrf.mxu0
        %v2261 = vadd.f32 0.0, %v2260
        %v2262 = vpop.f32.mrf.mxu0
        %v2263 = vadd.f32 0.0, %v2262
        %2264 = vmatprep.mubr.bf16.mxu0 0
        %2265 = vmatmul.mubr.bf16.gmra.mxu0 %v393
        %v2266 = vpop.f32.mrf.mxu0
        %v2267 = vadd.f32 0.0, %v2266
        %v2268 = vpop.f32.mrf.mxu0
        %v2269 = vadd.f32 0.0, %v2268
        %v2270 = vpop.f32.mrf.mxu0
        %v2271 = vadd.f32 0.0, %v2270
        %v2272 = vpop.f32.mrf.mxu0
        %v2273 = vadd.f32 0.0, %v2272
        %2274 = vmatprep.mubr.bf16.mxu0 0
        %2275 = vmatmul.mubr.bf16.gmra.mxu0 %v396
        %v2276 = vpop.f32.mrf.mxu0
        %v2277 = vadd.f32 0.0, %v2276
        %v2278 = vpop.f32.mrf.mxu0
        %v2279 = vadd.f32 0.0, %v2278
        %v2280 = vpop.f32.mrf.mxu0
        %v2281 = vadd.f32 0.0, %v2280
        %v2282 = vpop.f32.mrf.mxu0
        %v2283 = vadd.f32 0.0, %v2282
        %2284 = vmatprep.mubr.bf16.mxu0 0
        %2285 = vmatmul.mubr.bf16.gmra.mxu0 %v399
        %v2286 = vpop.f32.mrf.mxu0
        %v2287 = vadd.f32 0.0, %v2286
        %v2288 = vpop.f32.mrf.mxu0
        %v2289 = vadd.f32 0.0, %v2288
        %v2290 = vpop.f32.mrf.mxu0
        %v2291 = vadd.f32 0.0, %v2290
        %v2292 = vpop.f32.mrf.mxu0
        %v2293 = vadd.f32 0.0, %v2292
        %2294 = vmatprep.mubr.bf16.mxu0 0
        %2295 = vmatmul.mubr.bf16.gmra.mxu0 %v402
        %v2296 = vpop.f32.mrf.mxu0
        %v2297 = vadd.f32 0.0, %v2296
        %v2298 = vpop.f32.mrf.mxu0
        %v2299 = vadd.f32 0.0, %v2298
        %v2300 = vpop.f32.mrf.mxu0
        %v2301 = vadd.f32 0.0, %v2300
        %v2302 = vpop.f32.mrf.mxu0
        %v2303 = vadd.f32 0.0, %v2302
        %2304 = vmatprep.mubr.bf16.mxu0 0
        %2305 = vmatmul.mubr.bf16.gmra.mxu0 %v405
        %v2306 = vpop.f32.mrf.mxu0
        %v2307 = vadd.f32 0.0, %v2306
        %v2308 = vpop.f32.mrf.mxu0
        %v2309 = vadd.f32 0.0, %v2308
        %v2310 = vpop.f32.mrf.mxu0
        %v2311 = vadd.f32 0.0, %v2310
        %v2312 = vpop.f32.mrf.mxu0
        %v2313 = vadd.f32 0.0, %v2312
        %2314 = vmatprep.mubr.bf16.mxu0 0
        %2315 = vmatmul.mubr.bf16.gmra.mxu0 %v408
        %v2316 = vpop.f32.mrf.mxu0
        %v2317 = vadd.f32 0.0, %v2316
        %v2318 = vpop.f32.mrf.mxu0
        %v2319 = vadd.f32 0.0, %v2318
        %v2320 = vpop.f32.mrf.mxu0
        %v2321 = vadd.f32 0.0, %v2320
        %v2322 = vpop.f32.mrf.mxu0
        %v2323 = vadd.f32 0.0, %v2322
        %2324 = vmatprep.mubr.bf16.mxu0 0
        %2325 = vmatmul.mubr.bf16.gmra.mxu0 %v411
        %v2326 = vpop.f32.mrf.mxu0
        %v2327 = vadd.f32 0.0, %v2326
        %v2328 = vpop.f32.mrf.mxu0
        %v2329 = vadd.f32 0.0, %v2328
        %v2330 = vpop.f32.mrf.mxu0
        %v2331 = vadd.f32 0.0, %v2330
        %v2332 = vpop.f32.mrf.mxu0
        %v2333 = vadd.f32 0.0, %v2332
        %2334 = vmatprep.mubr.bf16.mxu0 0
        %2335 = vmatmul.mubr.bf16.gmra.mxu0 %v414
        %v2336 = vpop.f32.mrf.mxu0
        %v2337 = vadd.f32 0.0, %v2336
        %v2338 = vpop.f32.mrf.mxu0
        %v2339 = vadd.f32 0.0, %v2338
        %v2340 = vpop.f32.mrf.mxu0
        %v2341 = vadd.f32 0.0, %v2340
        %v2342 = vpop.f32.mrf.mxu0
        %v2343 = vadd.f32 0.0, %v2342
        %2344 = vmatprep.mubr.bf16.mxu0 0
        %2345 = vmatmul.mubr.bf16.gmra.mxu0 %v417
        %v2346 = vpop.f32.mrf.mxu0
        %v2347 = vadd.f32 0.0, %v2346
        %v2348 = vpop.f32.mrf.mxu0
        %v2349 = vadd.f32 0.0, %v2348
        %v2350 = vpop.f32.mrf.mxu0
        %v2351 = vadd.f32 0.0, %v2350
        %v2352 = vpop.f32.mrf.mxu0
        %v2353 = vadd.f32 0.0, %v2352
        %2354 = vmatprep.mubr.bf16.mxu0 0
        %2355 = vmatmul.mubr.bf16.gmra.mxu0 %v420
        %v2356 = vpop.f32.mrf.mxu0
        %v2357 = vadd.f32 0.0, %v2356
        %v2358 = vpop.f32.mrf.mxu0
        %v2359 = vadd.f32 0.0, %v2358
        %v2360 = vpop.f32.mrf.mxu0
        %v2361 = vadd.f32 0.0, %v2360
        %v2362 = vpop.f32.mrf.mxu0
        %v2363 = vadd.f32 0.0, %v2362
        %2364 = vmatprep.mubr.bf16.mxu0 0
        %2365 = vmatmul.mubr.bf16.gmra.mxu0 %v423
        %v2366 = vpop.f32.mrf.mxu0
        %v2367 = vadd.f32 0.0, %v2366
        %v2368 = vpop.f32.mrf.mxu0
        %v2369 = vadd.f32 0.0, %v2368
        %v2370 = vpop.f32.mrf.mxu0
        %v2371 = vadd.f32 0.0, %v2370
        %v2372 = vpop.f32.mrf.mxu0
        %v2373 = vadd.f32 0.0, %v2372
        %2374 = vmatprep.mubr.bf16.mxu0 0
        %2375 = vmatmul.mubr.bf16.gmra.mxu0 %v426
        %v2376 = vpop.f32.mrf.mxu0
        %v2377 = vadd.f32 0.0, %v2376
        %v2378 = vpop.f32.mrf.mxu0
        %v2379 = vadd.f32 0.0, %v2378
        %v2380 = vpop.f32.mrf.mxu0
        %v2381 = vadd.f32 0.0, %v2380
        %v2382 = vpop.f32.mrf.mxu0
        %v2383 = vadd.f32 0.0, %v2382
        %2384 = vmatprep.mubr.bf16.mxu0 0
        %2385 = vmatmul.mubr.bf16.gmra.mxu0 %v429
        %v2386 = vpop.f32.mrf.mxu0
        %v2387 = vadd.f32 0.0, %v2386
        %v2388 = vpop.f32.mrf.mxu0
        %v2389 = vadd.f32 0.0, %v2388
        %v2390 = vpop.f32.mrf.mxu0
        %v2391 = vadd.f32 0.0, %v2390
        %v2392 = vpop.f32.mrf.mxu0
        %v2393 = vadd.f32 0.0, %v2392
        %2394 = vdwg.mxu0
        %2395 = vmatprep.subr.bf16.mxu0 0
        %2396 = vmatpush1.bf16.msra.mxu0 0
        %2397 = vmatprep.subr.bf16.mxu0 0
        %2398 = vmatpush1.bf16.msra.mxu0 0
        %2399 = vmatprep.subr.bf16.mxu0 0
        %2400 = vmatpush1.bf16.msra.mxu0 0
        %2401 = vmatprep.subr.bf16.mxu0 0
        %2402 = vmatpush1.bf16.msra.mxu0 0
        %2403 = vmatprep.subr.bf16.mxu0 0
        %2404 = vmatpush1.bf16.msra.mxu0 0
        %2405 = vmatprep.subr.bf16.mxu0 0
        %2406 = vmatpush1.bf16.msra.mxu0 0
        %2407 = vmatprep.subr.bf16.mxu0 0
        %2408 = vmatpush1.bf16.msra.mxu0 0
        %2409 = vmatprep.subr.bf16.mxu0 %v1808
        %2410 = vmatpush1.bf16.msra.mxu0 %v1805
        %2411 = vmatprep.subr.bf16.mxu0 0
        %2412 = vmatpush2.bf16.msra.mxu0 0
        %2413 = vmatprep.subr.bf16.mxu0 0
        %2414 = vmatpush2.bf16.msra.mxu0 0
        %2415 = vmatprep.subr.bf16.mxu0 0
        %2416 = vmatpush2.bf16.msra.mxu0 0
        %2417 = vmatprep.subr.bf16.mxu0 0
        %2418 = vmatpush2.bf16.msra.mxu0 0
        %2419 = vmatprep.subr.bf16.mxu0 0
        %2420 = vmatpush2.bf16.msra.mxu0 0
        %2421 = vmatprep.subr.bf16.mxu0 0
        %2422 = vmatpush2.bf16.msra.mxu0 0
        %2423 = vmatprep.subr.bf16.mxu0 0
        %2424 = vmatpush2.bf16.msra.mxu0 0
        %2425 = vmatprep.subr.bf16.mxu0 0
        %2426 = vmatpush2.bf16.msra.mxu0 0
        %2427 = vmatprep.mubr.bf16.mxu0 0
        %2428 = vmatmul.mubr.bf16.gmra.mxu0 %v384
        %v2429 = vpop.f32.mrf.mxu0
        %v2430 = vadd.f32 0.0, %v2429
        %v2431 = vpop.f32.mrf.mxu0
        %v2432 = vadd.f32 0.0, %v2431
        %v2433 = vpop.f32.mrf.mxu0
        %v2434 = vadd.f32 0.0, %v2433
        %v2435 = vpop.f32.mrf.mxu0
        %v2436 = vadd.f32 0.0, %v2435
        %2437 = vmatprep.mubr.bf16.mxu0 0
        %2438 = vmatmul.mubr.bf16.gmra.mxu0 %v387
        %v2439 = vpop.f32.mrf.mxu0
        %v2440 = vadd.f32 0.0, %v2439
        %v2441 = vpop.f32.mrf.mxu0
        %v2442 = vadd.f32 0.0, %v2441
        %v2443 = vpop.f32.mrf.mxu0
        %v2444 = vadd.f32 0.0, %v2443
        %v2445 = vpop.f32.mrf.mxu0
        %v2446 = vadd.f32 0.0, %v2445
        %2447 = vmatprep.mubr.bf16.mxu0 0
        %2448 = vmatmul.mubr.bf16.gmra.mxu0 %v390
        %v2449 = vpop.f32.mrf.mxu0
        %v2450 = vadd.f32 0.0, %v2449
        %v2451 = vpop.f32.mrf.mxu0
        %v2452 = vadd.f32 0.0, %v2451
        %v2453 = vpop.f32.mrf.mxu0
        %v2454 = vadd.f32 0.0, %v2453
        %v2455 = vpop.f32.mrf.mxu0
        %v2456 = vadd.f32 0.0, %v2455
        %2457 = vmatprep.mubr.bf16.mxu0 0
        %2458 = vmatmul.mubr.bf16.gmra.mxu0 %v393
        %v2459 = vpop.f32.mrf.mxu0
        %v2460 = vadd.f32 0.0, %v2459
        %v2461 = vpop.f32.mrf.mxu0
        %v2462 = vadd.f32 0.0, %v2461
        %v2463 = vpop.f32.mrf.mxu0
        %v2464 = vadd.f32 0.0, %v2463
        %v2465 = vpop.f32.mrf.mxu0
        %v2466 = vadd.f32 0.0, %v2465
        %2467 = vmatprep.mubr.bf16.mxu0 0
        %2468 = vmatmul.mubr.bf16.gmra.mxu0 %v396
        %v2469 = vpop.f32.mrf.mxu0
        %v2470 = vadd.f32 0.0, %v2469
        %v2471 = vpop.f32.mrf.mxu0
        %v2472 = vadd.f32 0.0, %v2471
        %v2473 = vpop.f32.mrf.mxu0
        %v2474 = vadd.f32 0.0, %v2473
        %v2475 = vpop.f32.mrf.mxu0
        %v2476 = vadd.f32 0.0, %v2475
        %2477 = vmatprep.mubr.bf16.mxu0 0
        %2478 = vmatmul.mubr.bf16.gmra.mxu0 %v399
        %v2479 = vpop.f32.mrf.mxu0
        %v2480 = vadd.f32 0.0, %v2479
        %v2481 = vpop.f32.mrf.mxu0
        %v2482 = vadd.f32 0.0, %v2481
        %v2483 = vpop.f32.mrf.mxu0
        %v2484 = vadd.f32 0.0, %v2483
        %v2485 = vpop.f32.mrf.mxu0
        %v2486 = vadd.f32 0.0, %v2485
        %2487 = vmatprep.mubr.bf16.mxu0 0
        %2488 = vmatmul.mubr.bf16.gmra.mxu0 %v402
        %v2489 = vpop.f32.mrf.mxu0
        %v2490 = vadd.f32 0.0, %v2489
        %v2491 = vpop.f32.mrf.mxu0
        %v2492 = vadd.f32 0.0, %v2491
        %v2493 = vpop.f32.mrf.mxu0
        %v2494 = vadd.f32 0.0, %v2493
        %v2495 = vpop.f32.mrf.mxu0
        %v2496 = vadd.f32 0.0, %v2495
        %2497 = vmatprep.mubr.bf16.mxu0 0
        %2498 = vmatmul.mubr.bf16.gmra.mxu0 %v405
        %v2499 = vpop.f32.mrf.mxu0
        %v2500 = vadd.f32 0.0, %v2499
        %v2501 = vpop.f32.mrf.mxu0
        %v2502 = vadd.f32 0.0, %v2501
        %v2503 = vpop.f32.mrf.mxu0
        %v2504 = vadd.f32 0.0, %v2503
        %v2505 = vpop.f32.mrf.mxu0
        %v2506 = vadd.f32 0.0, %v2505
        %2507 = vmatprep.mubr.bf16.mxu0 0
        %2508 = vmatmul.mubr.bf16.gmra.mxu0 %v408
        %v2509 = vpop.f32.mrf.mxu0
        %v2510 = vadd.f32 0.0, %v2509
        %v2511 = vpop.f32.mrf.mxu0
        %v2512 = vadd.f32 0.0, %v2511
        %v2513 = vpop.f32.mrf.mxu0
        %v2514 = vadd.f32 0.0, %v2513
        %v2515 = vpop.f32.mrf.mxu0
        %v2516 = vadd.f32 0.0, %v2515
        %2517 = vmatprep.mubr.bf16.mxu0 0
        %2518 = vmatmul.mubr.bf16.gmra.mxu0 %v411
        %v2519 = vpop.f32.mrf.mxu0
        %v2520 = vadd.f32 0.0, %v2519
        %v2521 = vpop.f32.mrf.mxu0
        %v2522 = vadd.f32 0.0, %v2521
        %v2523 = vpop.f32.mrf.mxu0
        %v2524 = vadd.f32 0.0, %v2523
        %v2525 = vpop.f32.mrf.mxu0
        %v2526 = vadd.f32 0.0, %v2525
        %2527 = vmatprep.mubr.bf16.mxu0 0
        %2528 = vmatmul.mubr.bf16.gmra.mxu0 %v414
        %v2529 = vpop.f32.mrf.mxu0
        %v2530 = vadd.f32 0.0, %v2529
        %v2531 = vpop.f32.mrf.mxu0
        %v2532 = vadd.f32 0.0, %v2531
        %v2533 = vpop.f32.mrf.mxu0
        %v2534 = vadd.f32 0.0, %v2533
        %v2535 = vpop.f32.mrf.mxu0
        %v2536 = vadd.f32 0.0, %v2535
        %2537 = vmatprep.mubr.bf16.mxu0 0
        %2538 = vmatmul.mubr.bf16.gmra.mxu0 %v417
        %v2539 = vpop.f32.mrf.mxu0
        %v2540 = vadd.f32 0.0, %v2539
        %v2541 = vpop.f32.mrf.mxu0
        %v2542 = vadd.f32 0.0, %v2541
        %v2543 = vpop.f32.mrf.mxu0
        %v2544 = vadd.f32 0.0, %v2543
        %v2545 = vpop.f32.mrf.mxu0
        %v2546 = vadd.f32 0.0, %v2545
        %2547 = vmatprep.mubr.bf16.mxu0 0
        %2548 = vmatmul.mubr.bf16.gmra.mxu0 %v420
        %v2549 = vpop.f32.mrf.mxu0
        %v2550 = vadd.f32 0.0, %v2549
        %v2551 = vpop.f32.mrf.mxu0
        %v2552 = vadd.f32 0.0, %v2551
        %v2553 = vpop.f32.mrf.mxu0
        %v2554 = vadd.f32 0.0, %v2553
        %v2555 = vpop.f32.mrf.mxu0
        %v2556 = vadd.f32 0.0, %v2555
        %2557 = vmatprep.mubr.bf16.mxu0 0
        %2558 = vmatmul.mubr.bf16.gmra.mxu0 %v423
        %v2559 = vpop.f32.mrf.mxu0
        %v2560 = vadd.f32 0.0, %v2559
        %v2561 = vpop.f32.mrf.mxu0
        %v2562 = vadd.f32 0.0, %v2561
        %v2563 = vpop.f32.mrf.mxu0
        %v2564 = vadd.f32 0.0, %v2563
        %v2565 = vpop.f32.mrf.mxu0
        %v2566 = vadd.f32 0.0, %v2565
        %2567 = vmatprep.mubr.bf16.mxu0 0
        %2568 = vmatmul.mubr.bf16.gmra.mxu0 %v426
        %v2569 = vpop.f32.mrf.mxu0
        %v2570 = vadd.f32 0.0, %v2569
        %v2571 = vpop.f32.mrf.mxu0
        %v2572 = vadd.f32 0.0, %v2571
        %v2573 = vpop.f32.mrf.mxu0
        %v2574 = vadd.f32 0.0, %v2573
        %v2575 = vpop.f32.mrf.mxu0
        %v2576 = vadd.f32 0.0, %v2575
        %2577 = vmatprep.mubr.bf16.mxu0 0
        %2578 = vmatmul.mubr.bf16.gmra.mxu0 %v429
        %v2579 = vpop.f32.mrf.mxu0
        %v2580 = vadd.f32 0.0, %v2579
        %v2581 = vpop.f32.mrf.mxu0
        %v2582 = vadd.f32 0.0, %v2581
        %v2583 = vpop.f32.mrf.mxu0
        %v2584 = vadd.f32 0.0, %v2583
        %v2585 = vpop.f32.mrf.mxu0
        %v2586 = vadd.f32 0.0, %v2585
        %2587 = vdwg.mxu0
        %2588 = vmatprep.subr.bf16.mxu0 0
        %2589 = vmatpush1.bf16.msra.mxu0 0
        %2590 = vmatprep.subr.bf16.mxu0 0
        %2591 = vmatpush1.bf16.msra.mxu0 0
        %2592 = vmatprep.subr.bf16.mxu0 0
        %2593 = vmatpush1.bf16.msra.mxu0 0
        %2594 = vmatprep.subr.bf16.mxu0 0
        %2595 = vmatpush1.bf16.msra.mxu0 0
        %2596 = vmatprep.subr.bf16.mxu0 0
        %2597 = vmatpush1.bf16.msra.mxu0 0
        %2598 = vmatprep.subr.bf16.mxu0 0
        %2599 = vmatpush1.bf16.msra.mxu0 0
        %2600 = vmatprep.subr.bf16.mxu0 0
        %2601 = vmatpush1.bf16.msra.mxu0 0
        %2602 = vmatprep.subr.bf16.mxu0 %v1814
        %2603 = vmatpush1.bf16.msra.mxu0 %v1811
        %2604 = vmatprep.subr.bf16.mxu0 0
        %2605 = vmatpush2.bf16.msra.mxu0 0
        %2606 = vmatprep.subr.bf16.mxu0 0
        %2607 = vmatpush2.bf16.msra.mxu0 0
        %2608 = vmatprep.subr.bf16.mxu0 0
        %2609 = vmatpush2.bf16.msra.mxu0 0
        %2610 = vmatprep.subr.bf16.mxu0 0
        %2611 = vmatpush2.bf16.msra.mxu0 0
        %2612 = vmatprep.subr.bf16.mxu0 0
        %2613 = vmatpush2.bf16.msra.mxu0 0
        %2614 = vmatprep.subr.bf16.mxu0 0
        %2615 = vmatpush2.bf16.msra.mxu0 0
        %2616 = vmatprep.subr.bf16.mxu0 0
        %2617 = vmatpush2.bf16.msra.mxu0 0
        %2618 = vmatprep.subr.bf16.mxu0 0
        %2619 = vmatpush2.bf16.msra.mxu0 0
        %2620 = vmatprep.mubr.bf16.mxu0 0
        %2621 = vmatmul.mubr.bf16.gmra.mxu0 %v384
        %v2622 = vpop.f32.mrf.mxu0
        %v2623 = vadd.f32 0.0, %v2622
        %v2624 = vpop.f32.mrf.mxu0
        %v2625 = vadd.f32 0.0, %v2624
        %v2626 = vpop.f32.mrf.mxu0
        %v2627 = vadd.f32 0.0, %v2626
        %v2628 = vpop.f32.mrf.mxu0
        %v2629 = vadd.f32 0.0, %v2628
        %2630 = vmatprep.mubr.bf16.mxu0 0
        %2631 = vmatmul.mubr.bf16.gmra.mxu0 %v387
        %v2632 = vpop.f32.mrf.mxu0
        %v2633 = vadd.f32 0.0, %v2632
        %v2634 = vpop.f32.mrf.mxu0
        %v2635 = vadd.f32 0.0, %v2634
        %v2636 = vpop.f32.mrf.mxu0
        %v2637 = vadd.f32 0.0, %v2636
        %v2638 = vpop.f32.mrf.mxu0
        %v2639 = vadd.f32 0.0, %v2638
        %2640 = vmatprep.mubr.bf16.mxu0 0
        %2641 = vmatmul.mubr.bf16.gmra.mxu0 %v390
        %v2642 = vpop.f32.mrf.mxu0
        %v2643 = vadd.f32 0.0, %v2642
        %v2644 = vpop.f32.mrf.mxu0
        %v2645 = vadd.f32 0.0, %v2644
        %v2646 = vpop.f32.mrf.mxu0
        %v2647 = vadd.f32 0.0, %v2646
        %v2648 = vpop.f32.mrf.mxu0
        %v2649 = vadd.f32 0.0, %v2648
        %2650 = vmatprep.mubr.bf16.mxu0 0
        %2651 = vmatmul.mubr.bf16.gmra.mxu0 %v393
        %v2652 = vpop.f32.mrf.mxu0
        %v2653 = vadd.f32 0.0, %v2652
        %v2654 = vpop.f32.mrf.mxu0
        %v2655 = vadd.f32 0.0, %v2654
        %v2656 = vpop.f32.mrf.mxu0
        %v2657 = vadd.f32 0.0, %v2656
        %v2658 = vpop.f32.mrf.mxu0
        %v2659 = vadd.f32 0.0, %v2658
        %2660 = vmatprep.mubr.bf16.mxu0 0
        %2661 = vmatmul.mubr.bf16.gmra.mxu0 %v396
        %v2662 = vpop.f32.mrf.mxu0
        %v2663 = vadd.f32 0.0, %v2662
        %v2664 = vpop.f32.mrf.mxu0
        %v2665 = vadd.f32 0.0, %v2664
        %v2666 = vpop.f32.mrf.mxu0
        %v2667 = vadd.f32 0.0, %v2666
        %v2668 = vpop.f32.mrf.mxu0
        %v2669 = vadd.f32 0.0, %v2668
        %2670 = vmatprep.mubr.bf16.mxu0 0
        %2671 = vmatmul.mubr.bf16.gmra.mxu0 %v399
        %v2672 = vpop.f32.mrf.mxu0
        %v2673 = vadd.f32 0.0, %v2672
        %v2674 = vpop.f32.mrf.mxu0
        %v2675 = vadd.f32 0.0, %v2674
        %v2676 = vpop.f32.mrf.mxu0
        %v2677 = vadd.f32 0.0, %v2676
        %v2678 = vpop.f32.mrf.mxu0
        %v2679 = vadd.f32 0.0, %v2678
        %2680 = vmatprep.mubr.bf16.mxu0 0
        %2681 = vmatmul.mubr.bf16.gmra.mxu0 %v402
        %v2682 = vpop.f32.mrf.mxu0
        %v2683 = vadd.f32 0.0, %v2682
        %v2684 = vpop.f32.mrf.mxu0
        %v2685 = vadd.f32 0.0, %v2684
        %v2686 = vpop.f32.mrf.mxu0
        %v2687 = vadd.f32 0.0, %v2686
        %v2688 = vpop.f32.mrf.mxu0
        %v2689 = vadd.f32 0.0, %v2688
        %2690 = vmatprep.mubr.bf16.mxu0 0
        %2691 = vmatmul.mubr.bf16.gmra.mxu0 %v405
        %v2692 = vpop.f32.mrf.mxu0
        %v2693 = vadd.f32 0.0, %v2692
        %v2694 = vpop.f32.mrf.mxu0
        %v2695 = vadd.f32 0.0, %v2694
        %v2696 = vpop.f32.mrf.mxu0
        %v2697 = vadd.f32 0.0, %v2696
        %v2698 = vpop.f32.mrf.mxu0
        %v2699 = vadd.f32 0.0, %v2698
        %2700 = vmatprep.mubr.bf16.mxu0 0
        %2701 = vmatmul.mubr.bf16.gmra.mxu0 %v408
        %v2702 = vpop.f32.mrf.mxu0
        %v2703 = vadd.f32 0.0, %v2702
        %v2704 = vpop.f32.mrf.mxu0
        %v2705 = vadd.f32 0.0, %v2704
        %v2706 = vpop.f32.mrf.mxu0
        %v2707 = vadd.f32 0.0, %v2706
        %v2708 = vpop.f32.mrf.mxu0
        %v2709 = vadd.f32 0.0, %v2708
        %2710 = vmatprep.mubr.bf16.mxu0 0
        %2711 = vmatmul.mubr.bf16.gmra.mxu0 %v411
        %v2712 = vpop.f32.mrf.mxu0
        %v2713 = vadd.f32 0.0, %v2712
        %v2714 = vpop.f32.mrf.mxu0
        %v2715 = vadd.f32 0.0, %v2714
        %v2716 = vpop.f32.mrf.mxu0
        %v2717 = vadd.f32 0.0, %v2716
        %v2718 = vpop.f32.mrf.mxu0
        %v2719 = vadd.f32 0.0, %v2718
        %2720 = vmatprep.mubr.bf16.mxu0 0
        %2721 = vmatmul.mubr.bf16.gmra.mxu0 %v414
        %v2722 = vpop.f32.mrf.mxu0
        %v2723 = vadd.f32 0.0, %v2722
        %v2724 = vpop.f32.mrf.mxu0
        %v2725 = vadd.f32 0.0, %v2724
        %v2726 = vpop.f32.mrf.mxu0
        %v2727 = vadd.f32 0.0, %v2726
        %v2728 = vpop.f32.mrf.mxu0
        %v2729 = vadd.f32 0.0, %v2728
        %2730 = vmatprep.mubr.bf16.mxu0 0
        %2731 = vmatmul.mubr.bf16.gmra.mxu0 %v417
        %v2732 = vpop.f32.mrf.mxu0
        %v2733 = vadd.f32 0.0, %v2732
        %v2734 = vpop.f32.mrf.mxu0
        %v2735 = vadd.f32 0.0, %v2734
        %v2736 = vpop.f32.mrf.mxu0
        %v2737 = vadd.f32 0.0, %v2736
        %v2738 = vpop.f32.mrf.mxu0
        %v2739 = vadd.f32 0.0, %v2738
        %2740 = vmatprep.mubr.bf16.mxu0 0
        %2741 = vmatmul.mubr.bf16.gmra.mxu0 %v420
        %v2742 = vpop.f32.mrf.mxu0
        %v2743 = vadd.f32 0.0, %v2742
        %v2744 = vpop.f32.mrf.mxu0
        %v2745 = vadd.f32 0.0, %v2744
        %v2746 = vpop.f32.mrf.mxu0
        %v2747 = vadd.f32 0.0, %v2746
        %v2748 = vpop.f32.mrf.mxu0
        %v2749 = vadd.f32 0.0, %v2748
        %2750 = vmatprep.mubr.bf16.mxu0 0
        %2751 = vmatmul.mubr.bf16.gmra.mxu0 %v423
        %v2752 = vpop.f32.mrf.mxu0
        %v2753 = vadd.f32 0.0, %v2752
        %v2754 = vpop.f32.mrf.mxu0
        %v2755 = vadd.f32 0.0, %v2754
        %v2756 = vpop.f32.mrf.mxu0
        %v2757 = vadd.f32 0.0, %v2756
        %v2758 = vpop.f32.mrf.mxu0
        %v2759 = vadd.f32 0.0, %v2758
        %2760 = vmatprep.mubr.bf16.mxu0 0
        %2761 = vmatmul.mubr.bf16.gmra.mxu0 %v426
        %v2762 = vpop.f32.mrf.mxu0
        %v2763 = vadd.f32 0.0, %v2762
        %v2764 = vpop.f32.mrf.mxu0
        %v2765 = vadd.f32 0.0, %v2764
        %v2766 = vpop.f32.mrf.mxu0
        %v2767 = vadd.f32 0.0, %v2766
        %v2768 = vpop.f32.mrf.mxu0
        %v2769 = vadd.f32 0.0, %v2768
        %2770 = vmatprep.mubr.bf16.mxu0 0
        %2771 = vmatmul.mubr.bf16.gmra.mxu0 %v429
        %v2772 = vpop.f32.mrf.mxu0
        %v2773 = vadd.f32 0.0, %v2772
        %v2774 = vpop.f32.mrf.mxu0
        %v2775 = vadd.f32 0.0, %v2774
        %v2776 = vpop.f32.mrf.mxu0
        %v2777 = vadd.f32 0.0, %v2776
        %v2778 = vpop.f32.mrf.mxu0
        %v2779 = vadd.f32 0.0, %v2778
        %2780 = vdwg.mxu0
        %v2781 = vmul.f32 %v1851, 0.5
        %v2782 = vmul.f32 %v1853, 0.5
        %v2783 = vmul.f32 %v2044, 0.5
        %v2784 = vmul.f32 %v2046, 0.5
        %v2785 = vmul.f32 %v2237, 0.5
        %v2786 = vmul.f32 %v2239, 0.5
        %v2787 = vmul.f32 %v2430, 0.5
        %v2788 = vmul.f32 %v2432, 0.5
        %v2789 = vmul.f32 %v2623, 0.5
        %v2790 = vmul.f32 %v2625, 0.5
        %v2791 = vmul.f32 %v1855, 0.5
        %v2792 = vmul.f32 %v1857, 0.5
        %v2793 = vmul.f32 %v2048, 0.5
        %v2794 = vmul.f32 %v2050, 0.5
        %v2795 = vmul.f32 %v2241, 0.5
        %v2796 = vmul.f32 %v2243, 0.5
        %v2797 = vmul.f32 %v2434, 0.5
        %v2798 = vmul.f32 %v2436, 0.5
        %v2799 = vmul.f32 %v2627, 0.5
        %v2800 = vmul.f32 %v2629, 0.5
        %v2801 = vmul.f32 %v1861, 0.5
        %v2802 = vmul.f32 %v1863, 0.5
        %v2803 = vmul.f32 %v2054, 0.5
        %v2804 = vmul.f32 %v2056, 0.5
        %v2805 = vmul.f32 %v2247, 0.5
        %v2806 = vmul.f32 %v2249, 0.5
        %v2807 = vmul.f32 %v2440, 0.5
        %v2808 = vmul.f32 %v2442, 0.5
        %v2809 = vmul.f32 %v2633, 0.5
        %v2810 = vmul.f32 %v2635, 0.5
        %v2811 = vmul.f32 %v1865, 0.5
        %v2812 = vmul.f32 %v1867, 0.5
        %v2813 = vmul.f32 %v2058, 0.5
        %v2814 = vmul.f32 %v2060, 0.5
        %v2815 = vmul.f32 %v2251, 0.5
        %v2816 = vmul.f32 %v2253, 0.5
        %v2817 = vmul.f32 %v2444, 0.5
        %v2818 = vmul.f32 %v2446, 0.5
        %v2819 = vmul.f32 %v2637, 0.5
        %v2820 = vmul.f32 %v2639, 0.5
        %v2821 = vmul.f32 %v1871, 0.5
        %v2822 = vmul.f32 %v1873, 0.5
        %v2823 = vmul.f32 %v2064, 0.5
        %v2824 = vmul.f32 %v2066, 0.5
        %v2825 = vmul.f32 %v2257, 0.5
        %v2826 = vmul.f32 %v2259, 0.5
        %v2827 = vmul.f32 %v2450, 0.5
        %v2828 = vmul.f32 %v2452, 0.5
        %v2829 = vmul.f32 %v2643, 0.5
        %v2830 = vmul.f32 %v2645, 0.5
        %v2831 = vmul.f32 %v1875, 0.5
        %v2832 = vmul.f32 %v1877, 0.5
        %v2833 = vmul.f32 %v2068, 0.5
        %v2834 = vmul.f32 %v2070, 0.5
        %v2835 = vmul.f32 %v2261, 0.5
        %v2836 = vmul.f32 %v2263, 0.5
        %v2837 = vmul.f32 %v2454, 0.5
        %v2838 = vmul.f32 %v2456, 0.5
        %v2839 = vmul.f32 %v2647, 0.5
        %v2840 = vmul.f32 %v2649, 0.5
        %v2841 = vmul.f32 %v1881, 0.5
        %v2842 = vmul.f32 %v1883, 0.5
        %v2843 = vmul.f32 %v2074, 0.5
        %v2844 = vmul.f32 %v2076, 0.5
        %v2845 = vmul.f32 %v2267, 0.5
        %v2846 = vmul.f32 %v2269, 0.5
        %v2847 = vmul.f32 %v2460, 0.5
        %v2848 = vmul.f32 %v2462, 0.5
        %v2849 = vmul.f32 %v2653, 0.5
        %v2850 = vmul.f32 %v2655, 0.5
        %v2851 = vmul.f32 %v1885, 0.5
        %v2852 = vmul.f32 %v1887, 0.5
        %v2853 = vmul.f32 %v2078, 0.5
        %v2854 = vmul.f32 %v2080, 0.5
        %v2855 = vmul.f32 %v2271, 0.5
        %v2856 = vmul.f32 %v2273, 0.5
        %v2857 = vmul.f32 %v2464, 0.5
        %v2858 = vmul.f32 %v2466, 0.5
        %v2859 = vmul.f32 %v2657, 0.5
        %v2860 = vmul.f32 %v2659, 0.5
        %v2861 = vmul.f32 %v1891, 0.5
        %v2862 = vmul.f32 %v1893, 0.5
        %v2863 = vmul.f32 %v2084, 0.5
        %v2864 = vmul.f32 %v2086, 0.5
        %v2865 = vmul.f32 %v2277, 0.5
        %v2866 = vmul.f32 %v2279, 0.5
        %v2867 = vmul.f32 %v2470, 0.5
        %v2868 = vmul.f32 %v2472, 0.5
        %v2869 = vmul.f32 %v2663, 0.5
        %v2870 = vmul.f32 %v2665, 0.5
        %v2871 = vmul.f32 %v1895, 0.5
        %v2872 = vmul.f32 %v1897, 0.5
        %v2873 = vmul.f32 %v2088, 0.5
        %v2874 = vmul.f32 %v2090, 0.5
        %v2875 = vmul.f32 %v2281, 0.5
        %v2876 = vmul.f32 %v2283, 0.5
        %v2877 = vmul.f32 %v2474, 0.5
        %v2878 = vmul.f32 %v2476, 0.5
        %v2879 = vmul.f32 %v2667, 0.5
        %v2880 = vmul.f32 %v2669, 0.5
        %v2881 = vmul.f32 %v1901, 0.5
        %v2882 = vmul.f32 %v1903, 0.5
        %v2883 = vmul.f32 %v2094, 0.5
        %v2884 = vmul.f32 %v2096, 0.5
        %v2885 = vmul.f32 %v2287, 0.5
        %v2886 = vmul.f32 %v2289, 0.5
        %v2887 = vmul.f32 %v2480, 0.5
        %v2888 = vmul.f32 %v2482, 0.5
        %v2889 = vmul.f32 %v2673, 0.5
        %v2890 = vmul.f32 %v2675, 0.5
        %v2891 = vmul.f32 %v1905, 0.5
        %v2892 = vmul.f32 %v1907, 0.5
        %v2893 = vmul.f32 %v2098, 0.5
        %v2894 = vmul.f32 %v2100, 0.5
        %v2895 = vmul.f32 %v2291, 0.5
        %v2896 = vmul.f32 %v2293, 0.5
        %v2897 = vmul.f32 %v2484, 0.5
        %v2898 = vmul.f32 %v2486, 0.5
        %v2899 = vmul.f32 %v2677, 0.5
        %v2900 = vmul.f32 %v2679, 0.5
        %v2901 = vmul.f32 %v1911, 0.5
        %v2902 = vmul.f32 %v1913, 0.5
        %v2903 = vmul.f32 %v2104, 0.5
        %v2904 = vmul.f32 %v2106, 0.5
        %v2905 = vmul.f32 %v2297, 0.5
        %v2906 = vmul.f32 %v2299, 0.5
        %v2907 = vmul.f32 %v2490, 0.5
        %v2908 = vmul.f32 %v2492, 0.5
        %v2909 = vmul.f32 %v2683, 0.5
        %v2910 = vmul.f32 %v2685, 0.5
        %v2911 = vmul.f32 %v1915, 0.5
        %v2912 = vmul.f32 %v1917, 0.5
        %v2913 = vmul.f32 %v2108, 0.5
        %v2914 = vmul.f32 %v2110, 0.5
        %v2915 = vmul.f32 %v2301, 0.5
        %v2916 = vmul.f32 %v2303, 0.5
        %v2917 = vmul.f32 %v2494, 0.5
        %v2918 = vmul.f32 %v2496, 0.5
        %v2919 = vmul.f32 %v2687, 0.5
        %v2920 = vmul.f32 %v2689, 0.5
        %v2921 = vmul.f32 %v1921, 0.5
        %v2922 = vmul.f32 %v1923, 0.5
        %v2923 = vmul.f32 %v2114, 0.5
        %v2924 = vmul.f32 %v2116, 0.5
        %v2925 = vmul.f32 %v2307, 0.5
        %v2926 = vmul.f32 %v2309, 0.5
        %v2927 = vmul.f32 %v2500, 0.5
        %v2928 = vmul.f32 %v2502, 0.5
        %v2929 = vmul.f32 %v2693, 0.5
        %v2930 = vmul.f32 %v2695, 0.5
        %v2931 = vmul.f32 %v1925, 0.5
        %v2932 = vmul.f32 %v1927, 0.5
        %v2933 = vmul.f32 %v2118, 0.5
        %v2934 = vmul.f32 %v2120, 0.5
        %v2935 = vmul.f32 %v2311, 0.5
        %v2936 = vmul.f32 %v2313, 0.5
        %v2937 = vmul.f32 %v2504, 0.5
        %v2938 = vmul.f32 %v2506, 0.5
        %v2939 = vmul.f32 %v2697, 0.5
        %v2940 = vmul.f32 %v2699, 0.5
        %v2941 = vmul.f32 %v1931, 0.5
        %v2942 = vmul.f32 %v1933, 0.5
        %v2943 = vmul.f32 %v2124, 0.5
        %v2944 = vmul.f32 %v2126, 0.5
        %v2945 = vmul.f32 %v2317, 0.5
        %v2946 = vmul.f32 %v2319, 0.5
        %v2947 = vmul.f32 %v2510, 0.5
        %v2948 = vmul.f32 %v2512, 0.5
        %v2949 = vmul.f32 %v2703, 0.5
        %v2950 = vmul.f32 %v2705, 0.5
        %v2951 = vmul.f32 %v1935, 0.5
        %v2952 = vmul.f32 %v1937, 0.5
        %v2953 = vmul.f32 %v2128, 0.5
        %v2954 = vmul.f32 %v2130, 0.5
        %v2955 = vmul.f32 %v2321, 0.5
        %v2956 = vmul.f32 %v2323, 0.5
        %v2957 = vmul.f32 %v2514, 0.5
        %v2958 = vmul.f32 %v2516, 0.5
        %v2959 = vmul.f32 %v2707, 0.5
        %v2960 = vmul.f32 %v2709, 0.5
        %v2961 = vmul.f32 %v1941, 0.5
        %v2962 = vmul.f32 %v1943, 0.5
        %v2963 = vmul.f32 %v2134, 0.5
        %v2964 = vmul.f32 %v2136, 0.5
        %v2965 = vmul.f32 %v2327, 0.5
        %v2966 = vmul.f32 %v2329, 0.5
        %v2967 = vmul.f32 %v2520, 0.5
        %v2968 = vmul.f32 %v2522, 0.5
        %v2969 = vmul.f32 %v2713, 0.5
        %v2970 = vmul.f32 %v2715, 0.5
        %v2971 = vmul.f32 %v1945, 0.5
        %v2972 = vmul.f32 %v1947, 0.5
        %v2973 = vmul.f32 %v2138, 0.5
        %v2974 = vmul.f32 %v2140, 0.5
        %v2975 = vmul.f32 %v2331, 0.5
        %v2976 = vmul.f32 %v2333, 0.5
        %v2977 = vmul.f32 %v2524, 0.5
        %v2978 = vmul.f32 %v2526, 0.5
        %v2979 = vmul.f32 %v2717, 0.5
        %v2980 = vmul.f32 %v2719, 0.5
        %v2981 = vmul.f32 %v1951, 0.5
        %v2982 = vmul.f32 %v1953, 0.5
        %v2983 = vmul.f32 %v2144, 0.5
        %v2984 = vmul.f32 %v2146, 0.5
        %v2985 = vmul.f32 %v2337, 0.5
        %v2986 = vmul.f32 %v2339, 0.5
        %v2987 = vmul.f32 %v2530, 0.5
        %v2988 = vmul.f32 %v2532, 0.5
        %v2989 = vmul.f32 %v2723, 0.5
        %v2990 = vmul.f32 %v2725, 0.5
        %v2991 = vmul.f32 %v1955, 0.5
        %v2992 = vmul.f32 %v1957, 0.5
        %v2993 = vmul.f32 %v2148, 0.5
        %v2994 = vmul.f32 %v2150, 0.5
        %v2995 = vmul.f32 %v2341, 0.5
        %v2996 = vmul.f32 %v2343, 0.5
        %v2997 = vmul.f32 %v2534, 0.5
        %v2998 = vmul.f32 %v2536, 0.5
        %v2999 = vmul.f32 %v2727, 0.5
        %v3000 = vmul.f32 %v2729, 0.5
        %v3001 = vmul.f32 %v1961, 0.5
        %v3002 = vmul.f32 %v1963, 0.5
        %v3003 = vmul.f32 %v2154, 0.5
        %v3004 = vmul.f32 %v2156, 0.5
        %v3005 = vmul.f32 %v2347, 0.5
        %v3006 = vmul.f32 %v2349, 0.5
        %v3007 = vmul.f32 %v2540, 0.5
        %v3008 = vmul.f32 %v2542, 0.5
        %v3009 = vmul.f32 %v2733, 0.5
        %v3010 = vmul.f32 %v2735, 0.5
        %v3011 = vmul.f32 %v1965, 0.5
        %v3012 = vmul.f32 %v1967, 0.5
        %v3013 = vmul.f32 %v2158, 0.5
        %v3014 = vmul.f32 %v2160, 0.5
        %v3015 = vmul.f32 %v2351, 0.5
        %v3016 = vmul.f32 %v2353, 0.5
        %v3017 = vmul.f32 %v2544, 0.5
        %v3018 = vmul.f32 %v2546, 0.5
        %v3019 = vmul.f32 %v2737, 0.5
        %v3020 = vmul.f32 %v2739, 0.5
        %v3021 = vmul.f32 %v1971, 0.5
        %v3022 = vmul.f32 %v1973, 0.5
        %v3023 = vmul.f32 %v2164, 0.5
        %v3024 = vmul.f32 %v2166, 0.5
        %v3025 = vmul.f32 %v2357, 0.5
        %v3026 = vmul.f32 %v2359, 0.5
        %v3027 = vmul.f32 %v2550, 0.5
        %v3028 = vmul.f32 %v2552, 0.5
        %v3029 = vmul.f32 %v2743, 0.5
        %v3030 = vmul.f32 %v2745, 0.5
        %v3031 = vmul.f32 %v1975, 0.5
        %v3032 = vmul.f32 %v1977, 0.5
        %v3033 = vmul.f32 %v2168, 0.5
        %v3034 = vmul.f32 %v2170, 0.5
        %v3035 = vmul.f32 %v2361, 0.5
        %v3036 = vmul.f32 %v2363, 0.5
        %v3037 = vmul.f32 %v2554, 0.5
        %v3038 = vmul.f32 %v2556, 0.5
        %v3039 = vmul.f32 %v2747, 0.5
        %v3040 = vmul.f32 %v2749, 0.5
        %v3041 = vmul.f32 %v1981, 0.5
        %v3042 = vmul.f32 %v1983, 0.5
        %v3043 = vmul.f32 %v2174, 0.5
        %v3044 = vmul.f32 %v2176, 0.5
        %v3045 = vmul.f32 %v2367, 0.5
        %v3046 = vmul.f32 %v2369, 0.5
        %v3047 = vmul.f32 %v2560, 0.5
        %v3048 = vmul.f32 %v2562, 0.5
        %v3049 = vmul.f32 %v2753, 0.5
        %v3050 = vmul.f32 %v2755, 0.5
        %v3051 = vmul.f32 %v1985, 0.5
        %v3052 = vmul.f32 %v1987, 0.5
        %v3053 = vmul.f32 %v2178, 0.5
        %v3054 = vmul.f32 %v2180, 0.5
        %v3055 = vmul.f32 %v2371, 0.5
        %v3056 = vmul.f32 %v2373, 0.5
        %v3057 = vmul.f32 %v2564, 0.5
        %v3058 = vmul.f32 %v2566, 0.5
        %v3059 = vmul.f32 %v2757, 0.5
        %v3060 = vmul.f32 %v2759, 0.5
        %v3061 = vmul.f32 %v1991, 0.5
        %v3062 = vmul.f32 %v1993, 0.5
        %v3063 = vmul.f32 %v2184, 0.5
        %v3064 = vmul.f32 %v2186, 0.5
        %v3065 = vmul.f32 %v2377, 0.5
        %v3066 = vmul.f32 %v2379, 0.5
        %v3067 = vmul.f32 %v2570, 0.5
        %v3068 = vmul.f32 %v2572, 0.5
        %v3069 = vmul.f32 %v2763, 0.5
        %v3070 = vmul.f32 %v2765, 0.5
        %v3071 = vmul.f32 %v1995, 0.5
        %v3072 = vmul.f32 %v1997, 0.5
        %v3073 = vmul.f32 %v2188, 0.5
        %v3074 = vmul.f32 %v2190, 0.5
        %v3075 = vmul.f32 %v2381, 0.5
        %v3076 = vmul.f32 %v2383, 0.5
        %v3077 = vmul.f32 %v2574, 0.5
        %v3078 = vmul.f32 %v2576, 0.5
        %v3079 = vmul.f32 %v2767, 0.5
        %v3080 = vmul.f32 %v2769, 0.5
        %v3081 = vmul.f32 %v2001, 0.5
        %v3082 = vmul.f32 %v2003, 0.5
        %v3083 = vmul.f32 %v2194, 0.5
        %v3084 = vmul.f32 %v2196, 0.5
        %v3085 = vmul.f32 %v2387, 0.5
        %v3086 = vmul.f32 %v2389, 0.5
        %v3087 = vmul.f32 %v2580, 0.5
        %v3088 = vmul.f32 %v2582, 0.5
        %v3089 = vmul.f32 %v2773, 0.5
        %v3090 = vmul.f32 %v2775, 0.5
        %v3091 = vmul.f32 %v2005, 0.5
        %v3092 = vmul.f32 %v2007, 0.5
        %v3093 = vmul.f32 %v2198, 0.5
        %v3094 = vmul.f32 %v2200, 0.5
        %v3095 = vmul.f32 %v2391, 0.5
        %v3096 = vmul.f32 %v2393, 0.5
        %v3097 = vmul.f32 %v2584, 0.5
        %v3098 = vmul.f32 %v2586, 0.5
        %v3099 = vmul.f32 %v2777, 0.5
        %v3100 = vmul.f32 %v2779, 0.5
        %v3101 = vtanh.pop %v2781
        %v3102 = vtanh.pop %v2782
        %v3103 = vtanh.pop %v2783
        %v3104 = vtanh.pop %v2784
        %v3105 = vtanh.pop %v2785
        %v3106 = vtanh.pop %v2786
        %v3107 = vtanh.pop %v2787
        %v3108 = vtanh.pop %v2788
        %v3109 = vtanh.pop %v2789
        %v3110 = vtanh.pop %v2790
        %v3111 = vtanh.pop %v2791
        %v3112 = vtanh.pop %v2792
        %v3113 = vtanh.pop %v2793
        %v3114 = vtanh.pop %v2794
        %v3115 = vtanh.pop %v2795
        %v3116 = vtanh.pop %v2796
        %v3117 = vtanh.pop %v2797
        %v3118 = vtanh.pop %v2798
        %v3119 = vtanh.pop %v2799
        %v3120 = vtanh.pop %v2800
        %v3121 = vtanh.pop %v2801
        %v3122 = vtanh.pop %v2802
        %v3123 = vtanh.pop %v2803
        %v3124 = vtanh.pop %v2804
        %v3125 = vtanh.pop %v2805
        %v3126 = vtanh.pop %v2806
        %v3127 = vtanh.pop %v2807
        %v3128 = vtanh.pop %v2808
        %v3129 = vtanh.pop %v2809
        %v3130 = vtanh.pop %v2810
        %v3131 = vtanh.pop %v2811
        %v3132 = vtanh.pop %v2812
        %v3133 = vtanh.pop %v2813
        %v3134 = vtanh.pop %v2814
        %v3135 = vtanh.pop %v2815
        %v3136 = vtanh.pop %v2816
        %v3137 = vtanh.pop %v2817
        %v3138 = vtanh.pop %v2818
        %v3139 = vtanh.pop %v2819
        %v3140 = vtanh.pop %v2820
        %v3141 = vtanh.pop %v2821
        %v3142 = vtanh.pop %v2822
        %v3143 = vtanh.pop %v2823
        %v3144 = vtanh.pop %v2824
        %v3145 = vtanh.pop %v2825
        %v3146 = vtanh.pop %v2826
        %v3147 = vtanh.pop %v2827
        %v3148 = vtanh.pop %v2828
        %v3149 = vtanh.pop %v2829
        %v3150 = vtanh.pop %v2830
        %v3151 = vtanh.pop %v2831
        %v3152 = vtanh.pop %v2832
        %v3153 = vtanh.pop %v2833
        %v3154 = vtanh.pop %v2834
        %v3155 = vtanh.pop %v2835
        %v3156 = vtanh.pop %v2836
        %v3157 = vtanh.pop %v2837
        %v3158 = vtanh.pop %v2838
        %v3159 = vtanh.pop %v2839
        %v3160 = vtanh.pop %v2840
        %v3161 = vtanh.pop %v2841
        %v3162 = vtanh.pop %v2842
        %v3163 = vtanh.pop %v2843
        %v3164 = vtanh.pop %v2844
        %v3165 = vtanh.pop %v2845
        %v3166 = vtanh.pop %v2846
        %v3167 = vtanh.pop %v2847
        %v3168 = vtanh.pop %v2848
        %v3169 = vtanh.pop %v2849
        %v3170 = vtanh.pop %v2850
        %v3171 = vtanh.pop %v2851
        %v3172 = vtanh.pop %v2852
        %v3173 = vtanh.pop %v2853
        %v3174 = vtanh.pop %v2854
        %v3175 = vtanh.pop %v2855
        %v3176 = vtanh.pop %v2856
        %v3177 = vtanh.pop %v2857
        %v3178 = vtanh.pop %v2858
        %v3179 = vtanh.pop %v2859
        %v3180 = vtanh.pop %v2860
        %v3181 = vtanh.pop %v2861
        %v3182 = vtanh.pop %v2862
        %v3183 = vtanh.pop %v2863
        %v3184 = vtanh.pop %v2864
        %v3185 = vtanh.pop %v2865
        %v3186 = vtanh.pop %v2866
        %v3187 = vtanh.pop %v2867
        %v3188 = vtanh.pop %v2868
        %v3189 = vtanh.pop %v2869
        %v3190 = vtanh.pop %v2870
        %v3191 = vtanh.pop %v2871
        %v3192 = vtanh.pop %v2872
        %v3193 = vtanh.pop %v2873
        %v3194 = vtanh.pop %v2874
        %v3195 = vtanh.pop %v2875
        %v3196 = vtanh.pop %v2876
        %v3197 = vtanh.pop %v2877
        %v3198 = vtanh.pop %v2878
        %v3199 = vtanh.pop %v2879
        %v3200 = vtanh.pop %v2880
        %v3201 = vtanh.pop %v2881
        %v3202 = vtanh.pop %v2882
        %v3203 = vtanh.pop %v2883
        %v3204 = vtanh.pop %v2884
        %v3205 = vtanh.pop %v2885
        %v3206 = vtanh.pop %v2886
        %v3207 = vtanh.pop %v2887
        %v3208 = vtanh.pop %v2888
        %v3209 = vtanh.pop %v2889
        %v3210 = vtanh.pop %v2890
        %v3211 = vtanh.pop %v2891
        %v3212 = vtanh.pop %v2892
        %v3213 = vtanh.pop %v2893
        %v3214 = vtanh.pop %v2894
        %v3215 = vtanh.pop %v2895
        %v3216 = vtanh.pop %v2896
        %v3217 = vtanh.pop %v2897
        %v3218 = vtanh.pop %v2898
        %v3219 = vtanh.pop %v2899
        %v3220 = vtanh.pop %v2900
        %v3221 = vtanh.pop %v2901
        %v3222 = vtanh.pop %v2902
        %v3223 = vtanh.pop %v2903
        %v3224 = vtanh.pop %v2904
        %v3225 = vtanh.pop %v2905
        %v3226 = vtanh.pop %v2906
        %v3227 = vtanh.pop %v2907
        %v3228 = vtanh.pop %v2908
        %v3229 = vtanh.pop %v2909
        %v3230 = vtanh.pop %v2910
        %v3231 = vtanh.pop %v2911
        %v3232 = vtanh.pop %v2912
        %v3233 = vtanh.pop %v2913
        %v3234 = vtanh.pop %v2914
        %v3235 = vtanh.pop %v2915
        %v3236 = vtanh.pop %v2916
        %v3237 = vtanh.pop %v2917
        %v3238 = vtanh.pop %v2918
        %v3239 = vtanh.pop %v2919
        %v3240 = vtanh.pop %v2920
        %v3241 = vtanh.pop %v2921
        %v3242 = vtanh.pop %v2922
        %v3243 = vtanh.pop %v2923
        %v3244 = vtanh.pop %v2924
        %v3245 = vtanh.pop %v2925
        %v3246 = vtanh.pop %v2926
        %v3247 = vtanh.pop %v2927
        %v3248 = vtanh.pop %v2928
        %v3249 = vtanh.pop %v2929
        %v3250 = vtanh.pop %v2930
        %v3251 = vtanh.pop %v2931
        %v3252 = vtanh.pop %v2932
        %v3253 = vtanh.pop %v2933
        %v3254 = vtanh.pop %v2934
        %v3255 = vtanh.pop %v2935
        %v3256 = vtanh.pop %v2936
        %v3257 = vtanh.pop %v2937
        %v3258 = vtanh.pop %v2938
        %v3259 = vtanh.pop %v2939
        %v3260 = vtanh.pop %v2940
        %v3261 = vtanh.pop %v2941
        %v3262 = vtanh.pop %v2942
        %v3263 = vtanh.pop %v2943
        %v3264 = vtanh.pop %v2944
        %v3265 = vtanh.pop %v2945
        %v3266 = vtanh.pop %v2946
        %v3267 = vtanh.pop %v2947
        %v3268 = vtanh.pop %v2948
        %v3269 = vtanh.pop %v2949
        %v3270 = vtanh.pop %v2950
        %v3271 = vtanh.pop %v2951
        %v3272 = vtanh.pop %v2952
        %v3273 = vtanh.pop %v2953
        %v3274 = vtanh.pop %v2954
        %v3275 = vtanh.pop %v2955
        %v3276 = vtanh.pop %v2956
        %v3277 = vtanh.pop %v2957
        %v3278 = vtanh.pop %v2958
        %v3279 = vtanh.pop %v2959
        %v3280 = vtanh.pop %v2960
        %v3281 = vtanh.pop %v2961
        %v3282 = vtanh.pop %v2962
        %v3283 = vtanh.pop %v2963
        %v3284 = vtanh.pop %v2964
        %v3285 = vtanh.pop %v2965
        %v3286 = vtanh.pop %v2966
        %v3287 = vtanh.pop %v2967
        %v3288 = vtanh.pop %v2968
        %v3289 = vtanh.pop %v2969
        %v3290 = vtanh.pop %v2970
        %v3291 = vtanh.pop %v2971
        %v3292 = vtanh.pop %v2972
        %v3293 = vtanh.pop %v2973
        %v3294 = vtanh.pop %v2974
        %v3295 = vtanh.pop %v2975
        %v3296 = vtanh.pop %v2976
        %v3297 = vtanh.pop %v2977
        %v3298 = vtanh.pop %v2978
        %v3299 = vtanh.pop %v2979
        %v3300 = vtanh.pop %v2980
        %v3301 = vtanh.pop %v2981
        %v3302 = vtanh.pop %v2982
        %v3303 = vtanh.pop %v2983
        %v3304 = vtanh.pop %v2984
        %v3305 = vtanh.pop %v2985
        %v3306 = vtanh.pop %v2986
        %v3307 = vtanh.pop %v2987
        %v3308 = vtanh.pop %v2988
        %v3309 = vtanh.pop %v2989
        %v3310 = vtanh.pop %v2990
        %v3311 = vtanh.pop %v2991
        %v3312 = vtanh.pop %v2992
        %v3313 = vtanh.pop %v2993
        %v3314 = vtanh.pop %v2994
        %v3315 = vtanh.pop %v2995
        %v3316 = vtanh.pop %v2996
        %v3317 = vtanh.pop %v2997
        %v3318 = vtanh.pop %v2998
        %v3319 = vtanh.pop %v2999
        %v3320 = vtanh.pop %v3000
        %v3321 = vtanh.pop %v3001
        %v3322 = vtanh.pop %v3002
        %v3323 = vtanh.pop %v3003
        %v3324 = vtanh.pop %v3004
        %v3325 = vtanh.pop %v3005
        %v3326 = vtanh.pop %v3006
        %v3327 = vtanh.pop %v3007
        %v3328 = vtanh.pop %v3008
        %v3329 = vtanh.pop %v3009
        %v3330 = vtanh.pop %v3010
        %v3331 = vtanh.pop %v3011
        %v3332 = vtanh.pop %v3012
        %v3333 = vtanh.pop %v3013
        %v3334 = vtanh.pop %v3014
        %v3335 = vtanh.pop %v3015
        %v3336 = vtanh.pop %v3016
        %v3337 = vtanh.pop %v3017
        %v3338 = vtanh.pop %v3018
        %v3339 = vtanh.pop %v3019
        %v3340 = vtanh.pop %v3020
        %v3341 = vtanh.pop %v3021
        %v3342 = vtanh.pop %v3022
        %v3343 = vtanh.pop %v3023
        %v3344 = vtanh.pop %v3024
        %v3345 = vtanh.pop %v3025
        %v3346 = vtanh.pop %v3026
        %v3347 = vtanh.pop %v3027
        %v3348 = vtanh.pop %v3028
        %v3349 = vtanh.pop %v3029
        %v3350 = vtanh.pop %v3030
        %v3351 = vtanh.pop %v3031
        %v3352 = vtanh.pop %v3032
        %v3353 = vtanh.pop %v3033
        %v3354 = vtanh.pop %v3034
        %v3355 = vtanh.pop %v3035
        %v3356 = vtanh.pop %v3036
        %v3357 = vtanh.pop %v3037
        %v3358 = vtanh.pop %v3038
        %v3359 = vtanh.pop %v3039
        %v3360 = vtanh.pop %v3040
        %v3361 = vtanh.pop %v3041
        %v3362 = vtanh.pop %v3042
        %v3363 = vtanh.pop %v3043
        %v3364 = vtanh.pop %v3044
        %v3365 = vtanh.pop %v3045
        %v3366 = vtanh.pop %v3046
        %v3367 = vtanh.pop %v3047
        %v3368 = vtanh.pop %v3048
        %v3369 = vtanh.pop %v3049
        %v3370 = vtanh.pop %v3050
        %v3371 = vtanh.pop %v3051
        %v3372 = vtanh.pop %v3052
        %v3373 = vtanh.pop %v3053
        %v3374 = vtanh.pop %v3054
        %v3375 = vtanh.pop %v3055
        %v3376 = vtanh.pop %v3056
        %v3377 = vtanh.pop %v3057
        %v3378 = vtanh.pop %v3058
        %v3379 = vtanh.pop %v3059
        %v3380 = vtanh.pop %v3060
        %v3381 = vtanh.pop %v3061
        %v3382 = vtanh.pop %v3062
        %v3383 = vtanh.pop %v3063
        %v3384 = vtanh.pop %v3064
        %v3385 = vtanh.pop %v3065
        %v3386 = vtanh.pop %v3066
        %v3387 = vtanh.pop %v3067
        %v3388 = vtanh.pop %v3068
        %v3389 = vtanh.pop %v3069
        %v3390 = vtanh.pop %v3070
        %v3391 = vtanh.pop %v3071
        %v3392 = vtanh.pop %v3072
        %v3393 = vtanh.pop %v3073
        %v3394 = vtanh.pop %v3074
        %v3395 = vtanh.pop %v3075
        %v3396 = vtanh.pop %v3076
        %v3397 = vtanh.pop %v3077
        %v3398 = vtanh.pop %v3078
        %v3399 = vtanh.pop %v3079
        %v3400 = vtanh.pop %v3080
        %v3401 = vtanh.pop %v3081
        %v3402 = vtanh.pop %v3082
        %v3403 = vtanh.pop %v3083
        %v3404 = vtanh.pop %v3084
        %v3405 = vtanh.pop %v3085
        %v3406 = vtanh.pop %v3086
        %v3407 = vtanh.pop %v3087
        %v3408 = vtanh.pop %v3088
        %v3409 = vtanh.pop %v3089
        %v3410 = vtanh.pop %v3090
        %v3411 = vtanh.pop %v3091
        %v3412 = vtanh.pop %v3092
        %v3413 = vtanh.pop %v3093
        %v3414 = vtanh.pop %v3094
        %v3415 = vtanh.pop %v3095
        %v3416 = vtanh.pop %v3096
        %v3417 = vtanh.pop %v3097
        %v3418 = vtanh.pop %v3098
        %v3419 = vtanh.pop %v3099
        %v3420 = vtanh.pop %v3100
        %v3421 = vadd.f32 %v3101, 1.0
        %v3422 = vadd.f32 %v3102, 1.0
        %v3423 = vadd.f32 %v3103, 1.0
        %v3424 = vadd.f32 %v3104, 1.0
        %v3425 = vadd.f32 %v3105, 1.0
        %v3426 = vadd.f32 %v3106, 1.0
        %v3427 = vadd.f32 %v3107, 1.0
        %v3428 = vadd.f32 %v3108, 1.0
        %v3429 = vadd.f32 %v3109, 1.0
        %v3430 = vadd.f32 %v3110, 1.0
        %v3431 = vadd.f32 %v3111, 1.0
        %v3432 = vadd.f32 %v3112, 1.0
        %v3433 = vadd.f32 %v3113, 1.0
        %v3434 = vadd.f32 %v3114, 1.0
        %v3435 = vadd.f32 %v3115, 1.0
        %v3436 = vadd.f32 %v3116, 1.0
        %v3437 = vadd.f32 %v3117, 1.0
        %v3438 = vadd.f32 %v3118, 1.0
        %v3439 = vadd.f32 %v3119, 1.0
        %v3440 = vadd.f32 %v3120, 1.0
        %v3441 = vadd.f32 %v3121, 1.0
        %v3442 = vadd.f32 %v3122, 1.0
        %v3443 = vadd.f32 %v3123, 1.0
        %v3444 = vadd.f32 %v3124, 1.0
        %v3445 = vadd.f32 %v3125, 1.0
        %v3446 = vadd.f32 %v3126, 1.0
        %v3447 = vadd.f32 %v3127, 1.0
        %v3448 = vadd.f32 %v3128, 1.0
        %v3449 = vadd.f32 %v3129, 1.0
        %v3450 = vadd.f32 %v3130, 1.0
        %v3451 = vadd.f32 %v3131, 1.0
        %v3452 = vadd.f32 %v3132, 1.0
        %v3453 = vadd.f32 %v3133, 1.0
        %v3454 = vadd.f32 %v3134, 1.0
        %v3455 = vadd.f32 %v3135, 1.0
        %v3456 = vadd.f32 %v3136, 1.0
        %v3457 = vadd.f32 %v3137, 1.0
        %v3458 = vadd.f32 %v3138, 1.0
        %v3459 = vadd.f32 %v3139, 1.0
        %v3460 = vadd.f32 %v3140, 1.0
        %v3461 = vadd.f32 %v3141, 1.0
        %v3462 = vadd.f32 %v3142, 1.0
        %v3463 = vadd.f32 %v3143, 1.0
        %v3464 = vadd.f32 %v3144, 1.0
        %v3465 = vadd.f32 %v3145, 1.0
        %v3466 = vadd.f32 %v3146, 1.0
        %v3467 = vadd.f32 %v3147, 1.0
        %v3468 = vadd.f32 %v3148, 1.0
        %v3469 = vadd.f32 %v3149, 1.0
        %v3470 = vadd.f32 %v3150, 1.0
        %v3471 = vadd.f32 %v3151, 1.0
        %v3472 = vadd.f32 %v3152, 1.0
        %v3473 = vadd.f32 %v3153, 1.0
        %v3474 = vadd.f32 %v3154, 1.0
        %v3475 = vadd.f32 %v3155, 1.0
        %v3476 = vadd.f32 %v3156, 1.0
        %v3477 = vadd.f32 %v3157, 1.0
        %v3478 = vadd.f32 %v3158, 1.0
        %v3479 = vadd.f32 %v3159, 1.0
        %v3480 = vadd.f32 %v3160, 1.0
        %v3481 = vadd.f32 %v3161, 1.0
        %v3482 = vadd.f32 %v3162, 1.0
        %v3483 = vadd.f32 %v3163, 1.0
        %v3484 = vadd.f32 %v3164, 1.0
        %v3485 = vadd.f32 %v3165, 1.0
        %v3486 = vadd.f32 %v3166, 1.0
        %v3487 = vadd.f32 %v3167, 1.0
        %v3488 = vadd.f32 %v3168, 1.0
        %v3489 = vadd.f32 %v3169, 1.0
        %v3490 = vadd.f32 %v3170, 1.0
        %v3491 = vadd.f32 %v3171, 1.0
        %v3492 = vadd.f32 %v3172, 1.0
        %v3493 = vadd.f32 %v3173, 1.0
        %v3494 = vadd.f32 %v3174, 1.0
        %v3495 = vadd.f32 %v3175, 1.0
        %v3496 = vadd.f32 %v3176, 1.0
        %v3497 = vadd.f32 %v3177, 1.0
        %v3498 = vadd.f32 %v3178, 1.0
        %v3499 = vadd.f32 %v3179, 1.0
        %v3500 = vadd.f32 %v3180, 1.0
        %v3501 = vadd.f32 %v3181, 1.0
        %v3502 = vadd.f32 %v3182, 1.0
        %v3503 = vadd.f32 %v3183, 1.0
        %v3504 = vadd.f32 %v3184, 1.0
        %v3505 = vadd.f32 %v3185, 1.0
        %v3506 = vadd.f32 %v3186, 1.0
        %v3507 = vadd.f32 %v3187, 1.0
        %v3508 = vadd.f32 %v3188, 1.0
        %v3509 = vadd.f32 %v3189, 1.0
        %v3510 = vadd.f32 %v3190, 1.0
        %v3511 = vadd.f32 %v3191, 1.0
        %v3512 = vadd.f32 %v3192, 1.0
        %v3513 = vadd.f32 %v3193, 1.0
        %v3514 = vadd.f32 %v3194, 1.0
        %v3515 = vadd.f32 %v3195, 1.0
        %v3516 = vadd.f32 %v3196, 1.0
        %v3517 = vadd.f32 %v3197, 1.0
        %v3518 = vadd.f32 %v3198, 1.0
        %v3519 = vadd.f32 %v3199, 1.0
        %v3520 = vadd.f32 %v3200, 1.0
        %v3521 = vadd.f32 %v3201, 1.0
        %v3522 = vadd.f32 %v3202, 1.0
        %v3523 = vadd.f32 %v3203, 1.0
        %v3524 = vadd.f32 %v3204, 1.0
        %v3525 = vadd.f32 %v3205, 1.0
        %v3526 = vadd.f32 %v3206, 1.0
        %v3527 = vadd.f32 %v3207, 1.0
        %v3528 = vadd.f32 %v3208, 1.0
        %v3529 = vadd.f32 %v3209, 1.0
        %v3530 = vadd.f32 %v3210, 1.0
        %v3531 = vadd.f32 %v3211, 1.0
        %v3532 = vadd.f32 %v3212, 1.0
        %v3533 = vadd.f32 %v3213, 1.0
        %v3534 = vadd.f32 %v3214, 1.0
        %v3535 = vadd.f32 %v3215, 1.0
        %v3536 = vadd.f32 %v3216, 1.0
        %v3537 = vadd.f32 %v3217, 1.0
        %v3538 = vadd.f32 %v3218, 1.0
        %v3539 = vadd.f32 %v3219, 1.0
        %v3540 = vadd.f32 %v3220, 1.0
        %v3541 = vadd.f32 %v3221, 1.0
        %v3542 = vadd.f32 %v3222, 1.0
        %v3543 = vadd.f32 %v3223, 1.0
        %v3544 = vadd.f32 %v3224, 1.0
        %v3545 = vadd.f32 %v3225, 1.0
        %v3546 = vadd.f32 %v3226, 1.0
        %v3547 = vadd.f32 %v3227, 1.0
        %v3548 = vadd.f32 %v3228, 1.0
        %v3549 = vadd.f32 %v3229, 1.0
        %v3550 = vadd.f32 %v3230, 1.0
        %v3551 = vadd.f32 %v3231, 1.0
        %v3552 = vadd.f32 %v3232, 1.0
        %v3553 = vadd.f32 %v3233, 1.0
        %v3554 = vadd.f32 %v3234, 1.0
        %v3555 = vadd.f32 %v3235, 1.0
        %v3556 = vadd.f32 %v3236, 1.0
        %v3557 = vadd.f32 %v3237, 1.0
        %v3558 = vadd.f32 %v3238, 1.0
        %v3559 = vadd.f32 %v3239, 1.0
        %v3560 = vadd.f32 %v3240, 1.0
        %v3561 = vadd.f32 %v3241, 1.0
        %v3562 = vadd.f32 %v3242, 1.0
        %v3563 = vadd.f32 %v3243, 1.0
        %v3564 = vadd.f32 %v3244, 1.0
        %v3565 = vadd.f32 %v3245, 1.0
        %v3566 = vadd.f32 %v3246, 1.0
        %v3567 = vadd.f32 %v3247, 1.0
        %v3568 = vadd.f32 %v3248, 1.0
        %v3569 = vadd.f32 %v3249, 1.0
        %v3570 = vadd.f32 %v3250, 1.0
        %v3571 = vadd.f32 %v3251, 1.0
        %v3572 = vadd.f32 %v3252, 1.0
        %v3573 = vadd.f32 %v3253, 1.0
        %v3574 = vadd.f32 %v3254, 1.0
        %v3575 = vadd.f32 %v3255, 1.0
        %v3576 = vadd.f32 %v3256, 1.0
        %v3577 = vadd.f32 %v3257, 1.0
        %v3578 = vadd.f32 %v3258, 1.0
        %v3579 = vadd.f32 %v3259, 1.0
        %v3580 = vadd.f32 %v3260, 1.0
        %v3581 = vadd.f32 %v3261, 1.0
        %v3582 = vadd.f32 %v3262, 1.0
        %v3583 = vadd.f32 %v3263, 1.0
        %v3584 = vadd.f32 %v3264, 1.0
        %v3585 = vadd.f32 %v3265, 1.0
        %v3586 = vadd.f32 %v3266, 1.0
        %v3587 = vadd.f32 %v3267, 1.0
        %v3588 = vadd.f32 %v3268, 1.0
        %v3589 = vadd.f32 %v3269, 1.0
        %v3590 = vadd.f32 %v3270, 1.0
        %v3591 = vadd.f32 %v3271, 1.0
        %v3592 = vadd.f32 %v3272, 1.0
        %v3593 = vadd.f32 %v3273, 1.0
        %v3594 = vadd.f32 %v3274, 1.0
        %v3595 = vadd.f32 %v3275, 1.0
        %v3596 = vadd.f32 %v3276, 1.0
        %v3597 = vadd.f32 %v3277, 1.0
        %v3598 = vadd.f32 %v3278, 1.0
        %v3599 = vadd.f32 %v3279, 1.0
        %v3600 = vadd.f32 %v3280, 1.0
        %v3601 = vadd.f32 %v3281, 1.0
        %v3602 = vadd.f32 %v3282, 1.0
        %v3603 = vadd.f32 %v3283, 1.0
        %v3604 = vadd.f32 %v3284, 1.0
        %v3605 = vadd.f32 %v3285, 1.0
        %v3606 = vadd.f32 %v3286, 1.0
        %v3607 = vadd.f32 %v3287, 1.0
        %v3608 = vadd.f32 %v3288, 1.0
        %v3609 = vadd.f32 %v3289, 1.0
        %v3610 = vadd.f32 %v3290, 1.0
        %v3611 = vadd.f32 %v3291, 1.0
        %v3612 = vadd.f32 %v3292, 1.0
        %v3613 = vadd.f32 %v3293, 1.0
        %v3614 = vadd.f32 %v3294, 1.0
        %v3615 = vadd.f32 %v3295, 1.0
        %v3616 = vadd.f32 %v3296, 1.0
        %v3617 = vadd.f32 %v3297, 1.0
        %v3618 = vadd.f32 %v3298, 1.0
        %v3619 = vadd.f32 %v3299, 1.0
        %v3620 = vadd.f32 %v3300, 1.0
        %v3621 = vadd.f32 %v3301, 1.0
        %v3622 = vadd.f32 %v3302, 1.0
        %v3623 = vadd.f32 %v3303, 1.0
        %v3624 = vadd.f32 %v3304, 1.0
        %v3625 = vadd.f32 %v3305, 1.0
        %v3626 = vadd.f32 %v3306, 1.0
        %v3627 = vadd.f32 %v3307, 1.0
        %v3628 = vadd.f32 %v3308, 1.0
        %v3629 = vadd.f32 %v3309, 1.0
        %v3630 = vadd.f32 %v3310, 1.0
        %v3631 = vadd.f32 %v3311, 1.0
        %v3632 = vadd.f32 %v3312, 1.0
        %v3633 = vadd.f32 %v3313, 1.0
        %v3634 = vadd.f32 %v3314, 1.0
        %v3635 = vadd.f32 %v3315, 1.0
        %v3636 = vadd.f32 %v3316, 1.0
        %v3637 = vadd.f32 %v3317, 1.0
        %v3638 = vadd.f32 %v3318, 1.0
        %v3639 = vadd.f32 %v3319, 1.0
        %v3640 = vadd.f32 %v3320, 1.0
        %v3641 = vadd.f32 %v3321, 1.0
        %v3642 = vadd.f32 %v3322, 1.0
        %v3643 = vadd.f32 %v3323, 1.0
        %v3644 = vadd.f32 %v3324, 1.0
        %v3645 = vadd.f32 %v3325, 1.0
        %v3646 = vadd.f32 %v3326, 1.0
        %v3647 = vadd.f32 %v3327, 1.0
        %v3648 = vadd.f32 %v3328, 1.0
        %v3649 = vadd.f32 %v3329, 1.0
        %v3650 = vadd.f32 %v3330, 1.0
        %v3651 = vadd.f32 %v3331, 1.0
        %v3652 = vadd.f32 %v3332, 1.0
        %v3653 = vadd.f32 %v3333, 1.0
        %v3654 = vadd.f32 %v3334, 1.0
        %v3655 = vadd.f32 %v3335, 1.0
        %v3656 = vadd.f32 %v3336, 1.0
        %v3657 = vadd.f32 %v3337, 1.0
        %v3658 = vadd.f32 %v3338, 1.0
        %v3659 = vadd.f32 %v3339, 1.0
        %v3660 = vadd.f32 %v3340, 1.0
        %v3661 = vadd.f32 %v3341, 1.0
        %v3662 = vadd.f32 %v3342, 1.0
        %v3663 = vadd.f32 %v3343, 1.0
        %v3664 = vadd.f32 %v3344, 1.0
        %v3665 = vadd.f32 %v3345, 1.0
        %v3666 = vadd.f32 %v3346, 1.0
        %v3667 = vadd.f32 %v3347, 1.0
        %v3668 = vadd.f32 %v3348, 1.0
        %v3669 = vadd.f32 %v3349, 1.0
        %v3670 = vadd.f32 %v3350, 1.0
        %v3671 = vadd.f32 %v3351, 1.0
        %v3672 = vadd.f32 %v3352, 1.0
        %v3673 = vadd.f32 %v3353, 1.0
        %v3674 = vadd.f32 %v3354, 1.0
        %v3675 = vadd.f32 %v3355, 1.0
        %v3676 = vadd.f32 %v3356, 1.0
        %v3677 = vadd.f32 %v3357, 1.0
        %v3678 = vadd.f32 %v3358, 1.0
        %v3679 = vadd.f32 %v3359, 1.0
        %v3680 = vadd.f32 %v3360, 1.0
        %v3681 = vadd.f32 %v3361, 1.0
        %v3682 = vadd.f32 %v3362, 1.0
        %v3683 = vadd.f32 %v3363, 1.0
        %v3684 = vadd.f32 %v3364, 1.0
        %v3685 = vadd.f32 %v3365, 1.0
        %v3686 = vadd.f32 %v3366, 1.0
        %v3687 = vadd.f32 %v3367, 1.0
        %v3688 = vadd.f32 %v3368, 1.0
        %v3689 = vadd.f32 %v3369, 1.0
        %v3690 = vadd.f32 %v3370, 1.0
        %v3691 = vadd.f32 %v3371, 1.0
        %v3692 = vadd.f32 %v3372, 1.0
        %v3693 = vadd.f32 %v3373, 1.0
        %v3694 = vadd.f32 %v3374, 1.0
        %v3695 = vadd.f32 %v3375, 1.0
        %v3696 = vadd.f32 %v3376, 1.0
        %v3697 = vadd.f32 %v3377, 1.0
        %v3698 = vadd.f32 %v3378, 1.0
        %v3699 = vadd.f32 %v3379, 1.0
        %v3700 = vadd.f32 %v3380, 1.0
        %v3701 = vadd.f32 %v3381, 1.0
        %v3702 = vadd.f32 %v3382, 1.0
        %v3703 = vadd.f32 %v3383, 1.0
        %v3704 = vadd.f32 %v3384, 1.0
        %v3705 = vadd.f32 %v3385, 1.0
        %v3706 = vadd.f32 %v3386, 1.0
        %v3707 = vadd.f32 %v3387, 1.0
        %v3708 = vadd.f32 %v3388, 1.0
        %v3709 = vadd.f32 %v3389, 1.0
        %v3710 = vadd.f32 %v3390, 1.0
        %v3711 = vadd.f32 %v3391, 1.0
        %v3712 = vadd.f32 %v3392, 1.0
        %v3713 = vadd.f32 %v3393, 1.0
        %v3714 = vadd.f32 %v3394, 1.0
        %v3715 = vadd.f32 %v3395, 1.0
        %v3716 = vadd.f32 %v3396, 1.0
        %v3717 = vadd.f32 %v3397, 1.0
        %v3718 = vadd.f32 %v3398, 1.0
        %v3719 = vadd.f32 %v3399, 1.0
        %v3720 = vadd.f32 %v3400, 1.0
        %v3721 = vadd.f32 %v3401, 1.0
        %v3722 = vadd.f32 %v3402, 1.0
        %v3723 = vadd.f32 %v3403, 1.0
        %v3724 = vadd.f32 %v3404, 1.0
        %v3725 = vadd.f32 %v3405, 1.0
        %v3726 = vadd.f32 %v3406, 1.0
        %v3727 = vadd.f32 %v3407, 1.0
        %v3728 = vadd.f32 %v3408, 1.0
        %v3729 = vadd.f32 %v3409, 1.0
        %v3730 = vadd.f32 %v3410, 1.0
        %v3731 = vadd.f32 %v3411, 1.0
        %v3732 = vadd.f32 %v3412, 1.0
        %v3733 = vadd.f32 %v3413, 1.0
        %v3734 = vadd.f32 %v3414, 1.0
        %v3735 = vadd.f32 %v3415, 1.0
        %v3736 = vadd.f32 %v3416, 1.0
        %v3737 = vadd.f32 %v3417, 1.0
        %v3738 = vadd.f32 %v3418, 1.0
        %v3739 = vadd.f32 %v3419, 1.0
        %v3740 = vadd.f32 %v3420, 1.0
        %v3741 = vmul.f32 %v3421, 0.5
        %v3742 = vmul.f32 %v3422, 0.5
        %v3743 = vmul.f32 %v3423, 0.5
        %v3744 = vmul.f32 %v3424, 0.5
        %v3745 = vmul.f32 %v3425, 0.5
        %v3746 = vmul.f32 %v3426, 0.5
        %v3747 = vmul.f32 %v3427, 0.5
        %v3748 = vmul.f32 %v3428, 0.5
        %v3749 = vmul.f32 %v3429, 0.5
        %v3750 = vmul.f32 %v3430, 0.5
        %v3751 = vmul.f32 %v3431, 0.5
        %v3752 = vmul.f32 %v3432, 0.5
        %v3753 = vmul.f32 %v3433, 0.5
        %v3754 = vmul.f32 %v3434, 0.5
        %v3755 = vmul.f32 %v3435, 0.5
        %v3756 = vmul.f32 %v3436, 0.5
        %v3757 = vmul.f32 %v3437, 0.5
        %v3758 = vmul.f32 %v3438, 0.5
        %v3759 = vmul.f32 %v3439, 0.5
        %v3760 = vmul.f32 %v3440, 0.5
        %v3761 = vmul.f32 %v3441, 0.5
        %v3762 = vmul.f32 %v3442, 0.5
        %v3763 = vmul.f32 %v3443, 0.5
        %v3764 = vmul.f32 %v3444, 0.5
        %v3765 = vmul.f32 %v3445, 0.5
        %v3766 = vmul.f32 %v3446, 0.5
        %v3767 = vmul.f32 %v3447, 0.5
        %v3768 = vmul.f32 %v3448, 0.5
        %v3769 = vmul.f32 %v3449, 0.5
        %v3770 = vmul.f32 %v3450, 0.5
        %v3771 = vmul.f32 %v3451, 0.5
        %v3772 = vmul.f32 %v3452, 0.5
        %v3773 = vmul.f32 %v3453, 0.5
        %v3774 = vmul.f32 %v3454, 0.5
        %v3775 = vmul.f32 %v3455, 0.5
        %v3776 = vmul.f32 %v3456, 0.5
        %v3777 = vmul.f32 %v3457, 0.5
        %v3778 = vmul.f32 %v3458, 0.5
        %v3779 = vmul.f32 %v3459, 0.5
        %v3780 = vmul.f32 %v3460, 0.5
        %v3781 = vmul.f32 %v3461, 0.5
        %v3782 = vmul.f32 %v3462, 0.5
        %v3783 = vmul.f32 %v3463, 0.5
        %v3784 = vmul.f32 %v3464, 0.5
        %v3785 = vmul.f32 %v3465, 0.5
        %v3786 = vmul.f32 %v3466, 0.5
        %v3787 = vmul.f32 %v3467, 0.5
        %v3788 = vmul.f32 %v3468, 0.5
        %v3789 = vmul.f32 %v3469, 0.5
        %v3790 = vmul.f32 %v3470, 0.5
        %v3791 = vmul.f32 %v3471, 0.5
        %v3792 = vmul.f32 %v3472, 0.5
        %v3793 = vmul.f32 %v3473, 0.5
        %v3794 = vmul.f32 %v3474, 0.5
        %v3795 = vmul.f32 %v3475, 0.5
        %v3796 = vmul.f32 %v3476, 0.5
        %v3797 = vmul.f32 %v3477, 0.5
        %v3798 = vmul.f32 %v3478, 0.5
        %v3799 = vmul.f32 %v3479, 0.5
        %v3800 = vmul.f32 %v3480, 0.5
        %v3801 = vmul.f32 %v3481, 0.5
        %v3802 = vmul.f32 %v3482, 0.5
        %v3803 = vmul.f32 %v3483, 0.5
        %v3804 = vmul.f32 %v3484, 0.5
        %v3805 = vmul.f32 %v3485, 0.5
        %v3806 = vmul.f32 %v3486, 0.5
        %v3807 = vmul.f32 %v3487, 0.5
        %v3808 = vmul.f32 %v3488, 0.5
        %v3809 = vmul.f32 %v3489, 0.5
        %v3810 = vmul.f32 %v3490, 0.5
        %v3811 = vmul.f32 %v3491, 0.5
        %v3812 = vmul.f32 %v3492, 0.5
        %v3813 = vmul.f32 %v3493, 0.5
        %v3814 = vmul.f32 %v3494, 0.5
        %v3815 = vmul.f32 %v3495, 0.5
        %v3816 = vmul.f32 %v3496, 0.5
        %v3817 = vmul.f32 %v3497, 0.5
        %v3818 = vmul.f32 %v3498, 0.5
        %v3819 = vmul.f32 %v3499, 0.5
        %v3820 = vmul.f32 %v3500, 0.5
        %v3821 = vmul.f32 %v3501, 0.5
        %v3822 = vmul.f32 %v3502, 0.5
        %v3823 = vmul.f32 %v3503, 0.5
        %v3824 = vmul.f32 %v3504, 0.5
        %v3825 = vmul.f32 %v3505, 0.5
        %v3826 = vmul.f32 %v3506, 0.5
        %v3827 = vmul.f32 %v3507, 0.5
        %v3828 = vmul.f32 %v3508, 0.5
        %v3829 = vmul.f32 %v3509, 0.5
        %v3830 = vmul.f32 %v3510, 0.5
        %v3831 = vmul.f32 %v3511, 0.5
        %v3832 = vmul.f32 %v3512, 0.5
        %v3833 = vmul.f32 %v3513, 0.5
        %v3834 = vmul.f32 %v3514, 0.5
        %v3835 = vmul.f32 %v3515, 0.5
        %v3836 = vmul.f32 %v3516, 0.5
        %v3837 = vmul.f32 %v3517, 0.5
        %v3838 = vmul.f32 %v3518, 0.5
        %v3839 = vmul.f32 %v3519, 0.5
        %v3840 = vmul.f32 %v3520, 0.5
        %v3841 = vmul.f32 %v3521, 0.5
        %v3842 = vmul.f32 %v3522, 0.5
        %v3843 = vmul.f32 %v3523, 0.5
        %v3844 = vmul.f32 %v3524, 0.5
        %v3845 = vmul.f32 %v3525, 0.5
        %v3846 = vmul.f32 %v3526, 0.5
        %v3847 = vmul.f32 %v3527, 0.5
        %v3848 = vmul.f32 %v3528, 0.5
        %v3849 = vmul.f32 %v3529, 0.5
        %v3850 = vmul.f32 %v3530, 0.5
        %v3851 = vmul.f32 %v3531, 0.5
        %v3852 = vmul.f32 %v3532, 0.5
        %v3853 = vmul.f32 %v3533, 0.5
        %v3854 = vmul.f32 %v3534, 0.5
        %v3855 = vmul.f32 %v3535, 0.5
        %v3856 = vmul.f32 %v3536, 0.5
        %v3857 = vmul.f32 %v3537, 0.5
        %v3858 = vmul.f32 %v3538, 0.5
        %v3859 = vmul.f32 %v3539, 0.5
        %v3860 = vmul.f32 %v3540, 0.5
        %v3861 = vmul.f32 %v3541, 0.5
        %v3862 = vmul.f32 %v3542, 0.5
        %v3863 = vmul.f32 %v3543, 0.5
        %v3864 = vmul.f32 %v3544, 0.5
        %v3865 = vmul.f32 %v3545, 0.5
        %v3866 = vmul.f32 %v3546, 0.5
        %v3867 = vmul.f32 %v3547, 0.5
        %v3868 = vmul.f32 %v3548, 0.5
        %v3869 = vmul.f32 %v3549, 0.5
        %v3870 = vmul.f32 %v3550, 0.5
        %v3871 = vmul.f32 %v3551, 0.5
        %v3872 = vmul.f32 %v3552, 0.5
        %v3873 = vmul.f32 %v3553, 0.5
        %v3874 = vmul.f32 %v3554, 0.5
        %v3875 = vmul.f32 %v3555, 0.5
        %v3876 = vmul.f32 %v3556, 0.5
        %v3877 = vmul.f32 %v3557, 0.5
        %v3878 = vmul.f32 %v3558, 0.5
        %v3879 = vmul.f32 %v3559, 0.5
        %v3880 = vmul.f32 %v3560, 0.5
        %v3881 = vmul.f32 %v3561, 0.5
        %v3882 = vmul.f32 %v3562, 0.5
        %v3883 = vmul.f32 %v3563, 0.5
        %v3884 = vmul.f32 %v3564, 0.5
        %v3885 = vmul.f32 %v3565, 0.5
        %v3886 = vmul.f32 %v3566, 0.5
        %v3887 = vmul.f32 %v3567, 0.5
        %v3888 = vmul.f32 %v3568, 0.5
        %v3889 = vmul.f32 %v3569, 0.5
        %v3890 = vmul.f32 %v3570, 0.5
        %v3891 = vmul.f32 %v3571, 0.5
        %v3892 = vmul.f32 %v3572, 0.5
        %v3893 = vmul.f32 %v3573, 0.5
        %v3894 = vmul.f32 %v3574, 0.5
        %v3895 = vmul.f32 %v3575, 0.5
        %v3896 = vmul.f32 %v3576, 0.5
        %v3897 = vmul.f32 %v3577, 0.5
        %v3898 = vmul.f32 %v3578, 0.5
        %v3899 = vmul.f32 %v3579, 0.5
        %v3900 = vmul.f32 %v3580, 0.5
        %v3901 = vmul.f32 %v3581, 0.5
        %v3902 = vmul.f32 %v3582, 0.5
        %v3903 = vmul.f32 %v3583, 0.5
        %v3904 = vmul.f32 %v3584, 0.5
        %v3905 = vmul.f32 %v3585, 0.5
        %v3906 = vmul.f32 %v3586, 0.5
        %v3907 = vmul.f32 %v3587, 0.5
        %v3908 = vmul.f32 %v3588, 0.5
        %v3909 = vmul.f32 %v3589, 0.5
        %v3910 = vmul.f32 %v3590, 0.5
        %v3911 = vmul.f32 %v3591, 0.5
        %v3912 = vmul.f32 %v3592, 0.5
        %v3913 = vmul.f32 %v3593, 0.5
        %v3914 = vmul.f32 %v3594, 0.5
        %v3915 = vmul.f32 %v3595, 0.5
        %v3916 = vmul.f32 %v3596, 0.5
        %v3917 = vmul.f32 %v3597, 0.5
        %v3918 = vmul.f32 %v3598, 0.5
        %v3919 = vmul.f32 %v3599, 0.5
        %v3920 = vmul.f32 %v3600, 0.5
        %v3921 = vmul.f32 %v3601, 0.5
        %v3922 = vmul.f32 %v3602, 0.5
        %v3923 = vmul.f32 %v3603, 0.5
        %v3924 = vmul.f32 %v3604, 0.5
        %v3925 = vmul.f32 %v3605, 0.5
        %v3926 = vmul.f32 %v3606, 0.5
        %v3927 = vmul.f32 %v3607, 0.5
        %v3928 = vmul.f32 %v3608, 0.5
        %v3929 = vmul.f32 %v3609, 0.5
        %v3930 = vmul.f32 %v3610, 0.5
        %v3931 = vmul.f32 %v3611, 0.5
        %v3932 = vmul.f32 %v3612, 0.5
        %v3933 = vmul.f32 %v3613, 0.5
        %v3934 = vmul.f32 %v3614, 0.5
        %v3935 = vmul.f32 %v3615, 0.5
        %v3936 = vmul.f32 %v3616, 0.5
        %v3937 = vmul.f32 %v3617, 0.5
        %v3938 = vmul.f32 %v3618, 0.5
        %v3939 = vmul.f32 %v3619, 0.5
        %v3940 = vmul.f32 %v3620, 0.5
        %v3941 = vmul.f32 %v3621, 0.5
        %v3942 = vmul.f32 %v3622, 0.5
        %v3943 = vmul.f32 %v3623, 0.5
        %v3944 = vmul.f32 %v3624, 0.5
        %v3945 = vmul.f32 %v3625, 0.5
        %v3946 = vmul.f32 %v3626, 0.5
        %v3947 = vmul.f32 %v3627, 0.5
        %v3948 = vmul.f32 %v3628, 0.5
        %v3949 = vmul.f32 %v3629, 0.5
        %v3950 = vmul.f32 %v3630, 0.5
        %v3951 = vmul.f32 %v3631, 0.5
        %v3952 = vmul.f32 %v3632, 0.5
        %v3953 = vmul.f32 %v3633, 0.5
        %v3954 = vmul.f32 %v3634, 0.5
        %v3955 = vmul.f32 %v3635, 0.5
        %v3956 = vmul.f32 %v3636, 0.5
        %v3957 = vmul.f32 %v3637, 0.5
        %v3958 = vmul.f32 %v3638, 0.5
        %v3959 = vmul.f32 %v3639, 0.5
        %v3960 = vmul.f32 %v3640, 0.5
        %v3961 = vmul.f32 %v3641, 0.5
        %v3962 = vmul.f32 %v3642, 0.5
        %v3963 = vmul.f32 %v3643, 0.5
        %v3964 = vmul.f32 %v3644, 0.5
        %v3965 = vmul.f32 %v3645, 0.5
        %v3966 = vmul.f32 %v3646, 0.5
        %v3967 = vmul.f32 %v3647, 0.5
        %v3968 = vmul.f32 %v3648, 0.5
        %v3969 = vmul.f32 %v3649, 0.5
        %v3970 = vmul.f32 %v3650, 0.5
        %v3971 = vmul.f32 %v3651, 0.5
        %v3972 = vmul.f32 %v3652, 0.5
        %v3973 = vmul.f32 %v3653, 0.5
        %v3974 = vmul.f32 %v3654, 0.5
        %v3975 = vmul.f32 %v3655, 0.5
        %v3976 = vmul.f32 %v3656, 0.5
        %v3977 = vmul.f32 %v3657, 0.5
        %v3978 = vmul.f32 %v3658, 0.5
        %v3979 = vmul.f32 %v3659, 0.5
        %v3980 = vmul.f32 %v3660, 0.5
        %v3981 = vmul.f32 %v3661, 0.5
        %v3982 = vmul.f32 %v3662, 0.5
        %v3983 = vmul.f32 %v3663, 0.5
        %v3984 = vmul.f32 %v3664, 0.5
        %v3985 = vmul.f32 %v3665, 0.5
        %v3986 = vmul.f32 %v3666, 0.5
        %v3987 = vmul.f32 %v3667, 0.5
        %v3988 = vmul.f32 %v3668, 0.5
        %v3989 = vmul.f32 %v3669, 0.5
        %v3990 = vmul.f32 %v3670, 0.5
        %v3991 = vmul.f32 %v3671, 0.5
        %v3992 = vmul.f32 %v3672, 0.5
        %v3993 = vmul.f32 %v3673, 0.5
        %v3994 = vmul.f32 %v3674, 0.5
        %v3995 = vmul.f32 %v3675, 0.5
        %v3996 = vmul.f32 %v3676, 0.5
        %v3997 = vmul.f32 %v3677, 0.5
        %v3998 = vmul.f32 %v3678, 0.5
        %v3999 = vmul.f32 %v3679, 0.5
        %v4000 = vmul.f32 %v3680, 0.5
        %v4001 = vmul.f32 %v3681, 0.5
        %v4002 = vmul.f32 %v3682, 0.5
        %v4003 = vmul.f32 %v3683, 0.5
        %v4004 = vmul.f32 %v3684, 0.5
        %v4005 = vmul.f32 %v3685, 0.5
        %v4006 = vmul.f32 %v3686, 0.5
        %v4007 = vmul.f32 %v3687, 0.5
        %v4008 = vmul.f32 %v3688, 0.5
        %v4009 = vmul.f32 %v3689, 0.5
        %v4010 = vmul.f32 %v3690, 0.5
        %v4011 = vmul.f32 %v3691, 0.5
        %v4012 = vmul.f32 %v3692, 0.5
        %v4013 = vmul.f32 %v3693, 0.5
        %v4014 = vmul.f32 %v3694, 0.5
        %v4015 = vmul.f32 %v3695, 0.5
        %v4016 = vmul.f32 %v3696, 0.5
        %v4017 = vmul.f32 %v3697, 0.5
        %v4018 = vmul.f32 %v3698, 0.5
        %v4019 = vmul.f32 %v3699, 0.5
        %v4020 = vmul.f32 %v3700, 0.5
        %v4021 = vmul.f32 %v3701, 0.5
        %v4022 = vmul.f32 %v3702, 0.5
        %v4023 = vmul.f32 %v3703, 0.5
        %v4024 = vmul.f32 %v3704, 0.5
        %v4025 = vmul.f32 %v3705, 0.5
        %v4026 = vmul.f32 %v3706, 0.5
        %v4027 = vmul.f32 %v3707, 0.5
        %v4028 = vmul.f32 %v3708, 0.5
        %v4029 = vmul.f32 %v3709, 0.5
        %v4030 = vmul.f32 %v3710, 0.5
        %v4031 = vmul.f32 %v3711, 0.5
        %v4032 = vmul.f32 %v3712, 0.5
        %v4033 = vmul.f32 %v3713, 0.5
        %v4034 = vmul.f32 %v3714, 0.5
        %v4035 = vmul.f32 %v3715, 0.5
        %v4036 = vmul.f32 %v3716, 0.5
        %v4037 = vmul.f32 %v3717, 0.5
        %v4038 = vmul.f32 %v3718, 0.5
        %v4039 = vmul.f32 %v3719, 0.5
        %v4040 = vmul.f32 %v3720, 0.5
        %v4041 = vmul.f32 %v3721, 0.5
        %v4042 = vmul.f32 %v3722, 0.5
        %v4043 = vmul.f32 %v3723, 0.5
        %v4044 = vmul.f32 %v3724, 0.5
        %v4045 = vmul.f32 %v3725, 0.5
        %v4046 = vmul.f32 %v3726, 0.5
        %v4047 = vmul.f32 %v3727, 0.5
        %v4048 = vmul.f32 %v3728, 0.5
        %v4049 = vmul.f32 %v3729, 0.5
        %v4050 = vmul.f32 %v3730, 0.5
        %v4051 = vmul.f32 %v3731, 0.5
        %v4052 = vmul.f32 %v3732, 0.5
        %v4053 = vmul.f32 %v3733, 0.5
        %v4054 = vmul.f32 %v3734, 0.5
        %v4055 = vmul.f32 %v3735, 0.5
        %v4056 = vmul.f32 %v3736, 0.5
        %v4057 = vmul.f32 %v3737, 0.5
        %v4058 = vmul.f32 %v3738, 0.5
        %v4059 = vmul.f32 %v3739, 0.5
        %v4060 = vmul.f32 %v3740, 0.5
        %v4061 = vmul.f32 %v1851, %v3741
        %v4062 = vmul.f32 %v1853, %v3742
        %v4063 = vmul.f32 %v2044, %v3743
        %v4064 = vmul.f32 %v2046, %v3744
        %v4065 = vmul.f32 %v2237, %v3745
        %v4066 = vmul.f32 %v2239, %v3746
        %v4067 = vmul.f32 %v2430, %v3747
        %v4068 = vmul.f32 %v2432, %v3748
        %v4069 = vmul.f32 %v2623, %v3749
        %v4070 = vmul.f32 %v2625, %v3750
        %v4071 = vmul.f32 %v1855, %v3751
        %v4072 = vmul.f32 %v1857, %v3752
        %v4073 = vmul.f32 %v2048, %v3753
        %v4074 = vmul.f32 %v2050, %v3754
        %v4075 = vmul.f32 %v2241, %v3755
        %v4076 = vmul.f32 %v2243, %v3756
        %v4077 = vmul.f32 %v2434, %v3757
        %v4078 = vmul.f32 %v2436, %v3758
        %v4079 = vmul.f32 %v2627, %v3759
        %v4080 = vmul.f32 %v2629, %v3760
        %v4081 = vmul.f32 %v1861, %v3761
        %v4082 = vmul.f32 %v1863, %v3762
        %v4083 = vmul.f32 %v2054, %v3763
        %v4084 = vmul.f32 %v2056, %v3764
        %v4085 = vmul.f32 %v2247, %v3765
        %v4086 = vmul.f32 %v2249, %v3766
        %v4087 = vmul.f32 %v2440, %v3767
        %v4088 = vmul.f32 %v2442, %v3768
        %v4089 = vmul.f32 %v2633, %v3769
        %v4090 = vmul.f32 %v2635, %v3770
        %v4091 = vmul.f32 %v1865, %v3771
        %v4092 = vmul.f32 %v1867, %v3772
        %v4093 = vmul.f32 %v2058, %v3773
        %v4094 = vmul.f32 %v2060, %v3774
        %v4095 = vmul.f32 %v2251, %v3775
        %v4096 = vmul.f32 %v2253, %v3776
        %v4097 = vmul.f32 %v2444, %v3777
        %v4098 = vmul.f32 %v2446, %v3778
        %v4099 = vmul.f32 %v2637, %v3779
        %v4100 = vmul.f32 %v2639, %v3780
        %v4101 = vmul.f32 %v1871, %v3781
        %v4102 = vmul.f32 %v1873, %v3782
        %v4103 = vmul.f32 %v2064, %v3783
        %v4104 = vmul.f32 %v2066, %v3784
        %v4105 = vmul.f32 %v2257, %v3785
        %v4106 = vmul.f32 %v2259, %v3786
        %v4107 = vmul.f32 %v2450, %v3787
        %v4108 = vmul.f32 %v2452, %v3788
        %v4109 = vmul.f32 %v2643, %v3789
        %v4110 = vmul.f32 %v2645, %v3790
        %v4111 = vmul.f32 %v1875, %v3791
        %v4112 = vmul.f32 %v1877, %v3792
        %v4113 = vmul.f32 %v2068, %v3793
        %v4114 = vmul.f32 %v2070, %v3794
        %v4115 = vmul.f32 %v2261, %v3795
        %v4116 = vmul.f32 %v2263, %v3796
        %v4117 = vmul.f32 %v2454, %v3797
        %v4118 = vmul.f32 %v2456, %v3798
        %v4119 = vmul.f32 %v2647, %v3799
        %v4120 = vmul.f32 %v2649, %v3800
        %v4121 = vmul.f32 %v1881, %v3801
        %v4122 = vmul.f32 %v1883, %v3802
        %v4123 = vmul.f32 %v2074, %v3803
        %v4124 = vmul.f32 %v2076, %v3804
        %v4125 = vmul.f32 %v2267, %v3805
        %v4126 = vmul.f32 %v2269, %v3806
        %v4127 = vmul.f32 %v2460, %v3807
        %v4128 = vmul.f32 %v2462, %v3808
        %v4129 = vmul.f32 %v2653, %v3809
        %v4130 = vmul.f32 %v2655, %v3810
        %v4131 = vmul.f32 %v1885, %v3811
        %v4132 = vmul.f32 %v1887, %v3812
        %v4133 = vmul.f32 %v2078, %v3813
        %v4134 = vmul.f32 %v2080, %v3814
        %v4135 = vmul.f32 %v2271, %v3815
        %v4136 = vmul.f32 %v2273, %v3816
        %v4137 = vmul.f32 %v2464, %v3817
        %v4138 = vmul.f32 %v2466, %v3818
        %v4139 = vmul.f32 %v2657, %v3819
        %v4140 = vmul.f32 %v2659, %v3820
        %v4141 = vmul.f32 %v1891, %v3821
        %v4142 = vmul.f32 %v1893, %v3822
        %v4143 = vmul.f32 %v2084, %v3823
        %v4144 = vmul.f32 %v2086, %v3824
        %v4145 = vmul.f32 %v2277, %v3825
        %v4146 = vmul.f32 %v2279, %v3826
        %v4147 = vmul.f32 %v2470, %v3827
        %v4148 = vmul.f32 %v2472, %v3828
        %v4149 = vmul.f32 %v2663, %v3829
        %v4150 = vmul.f32 %v2665, %v3830
        %v4151 = vmul.f32 %v1895, %v3831
        %v4152 = vmul.f32 %v1897, %v3832
        %v4153 = vmul.f32 %v2088, %v3833
        %v4154 = vmul.f32 %v2090, %v3834
        %v4155 = vmul.f32 %v2281, %v3835
        %v4156 = vmul.f32 %v2283, %v3836
        %v4157 = vmul.f32 %v2474, %v3837
        %v4158 = vmul.f32 %v2476, %v3838
        %v4159 = vmul.f32 %v2667, %v3839
        %v4160 = vmul.f32 %v2669, %v3840
        %v4161 = vmul.f32 %v1901, %v3841
        %v4162 = vmul.f32 %v1903, %v3842
        %v4163 = vmul.f32 %v2094, %v3843
        %v4164 = vmul.f32 %v2096, %v3844
        %v4165 = vmul.f32 %v2287, %v3845
        %v4166 = vmul.f32 %v2289, %v3846
        %v4167 = vmul.f32 %v2480, %v3847
        %v4168 = vmul.f32 %v2482, %v3848
        %v4169 = vmul.f32 %v2673, %v3849
        %v4170 = vmul.f32 %v2675, %v3850
        %v4171 = vmul.f32 %v1905, %v3851
        %v4172 = vmul.f32 %v1907, %v3852
        %v4173 = vmul.f32 %v2098, %v3853
        %v4174 = vmul.f32 %v2100, %v3854
        %v4175 = vmul.f32 %v2291, %v3855
        %v4176 = vmul.f32 %v2293, %v3856
        %v4177 = vmul.f32 %v2484, %v3857
        %v4178 = vmul.f32 %v2486, %v3858
        %v4179 = vmul.f32 %v2677, %v3859
        %v4180 = vmul.f32 %v2679, %v3860
        %v4181 = vmul.f32 %v1911, %v3861
        %v4182 = vmul.f32 %v1913, %v3862
        %v4183 = vmul.f32 %v2104, %v3863
        %v4184 = vmul.f32 %v2106, %v3864
        %v4185 = vmul.f32 %v2297, %v3865
        %v4186 = vmul.f32 %v2299, %v3866
        %v4187 = vmul.f32 %v2490, %v3867
        %v4188 = vmul.f32 %v2492, %v3868
        %v4189 = vmul.f32 %v2683, %v3869
        %v4190 = vmul.f32 %v2685, %v3870
        %v4191 = vmul.f32 %v1915, %v3871
        %v4192 = vmul.f32 %v1917, %v3872
        %v4193 = vmul.f32 %v2108, %v3873
        %v4194 = vmul.f32 %v2110, %v3874
        %v4195 = vmul.f32 %v2301, %v3875
        %v4196 = vmul.f32 %v2303, %v3876
        %v4197 = vmul.f32 %v2494, %v3877
        %v4198 = vmul.f32 %v2496, %v3878
        %v4199 = vmul.f32 %v2687, %v3879
        %v4200 = vmul.f32 %v2689, %v3880
        %v4201 = vmul.f32 %v1921, %v3881
        %v4202 = vmul.f32 %v1923, %v3882
        %v4203 = vmul.f32 %v2114, %v3883
        %v4204 = vmul.f32 %v2116, %v3884
        %v4205 = vmul.f32 %v2307, %v3885
        %v4206 = vmul.f32 %v2309, %v3886
        %v4207 = vmul.f32 %v2500, %v3887
        %v4208 = vmul.f32 %v2502, %v3888
        %v4209 = vmul.f32 %v2693, %v3889
        %v4210 = vmul.f32 %v2695, %v3890
        %v4211 = vmul.f32 %v1925, %v3891
        %v4212 = vmul.f32 %v1927, %v3892
        %v4213 = vmul.f32 %v2118, %v3893
        %v4214 = vmul.f32 %v2120, %v3894
        %v4215 = vmul.f32 %v2311, %v3895
        %v4216 = vmul.f32 %v2313, %v3896
        %v4217 = vmul.f32 %v2504, %v3897
        %v4218 = vmul.f32 %v2506, %v3898
        %v4219 = vmul.f32 %v2697, %v3899
        %v4220 = vmul.f32 %v2699, %v3900
        %v4221 = vmul.f32 %v1931, %v3901
        %v4222 = vmul.f32 %v1933, %v3902
        %v4223 = vmul.f32 %v2124, %v3903
        %v4224 = vmul.f32 %v2126, %v3904
        %v4225 = vmul.f32 %v2317, %v3905
        %v4226 = vmul.f32 %v2319, %v3906
        %v4227 = vmul.f32 %v2510, %v3907
        %v4228 = vmul.f32 %v2512, %v3908
        %v4229 = vmul.f32 %v2703, %v3909
        %v4230 = vmul.f32 %v2705, %v3910
        %v4231 = vmul.f32 %v1935, %v3911
        %v4232 = vmul.f32 %v1937, %v3912
        %v4233 = vmul.f32 %v2128, %v3913
        %v4234 = vmul.f32 %v2130, %v3914
        %v4235 = vmul.f32 %v2321, %v3915
        %v4236 = vmul.f32 %v2323, %v3916
        %v4237 = vmul.f32 %v2514, %v3917
        %v4238 = vmul.f32 %v2516, %v3918
        %v4239 = vmul.f32 %v2707, %v3919
        %v4240 = vmul.f32 %v2709, %v3920
        %v4241 = vmul.f32 %v1941, %v3921
        %v4242 = vmul.f32 %v1943, %v3922
        %v4243 = vmul.f32 %v2134, %v3923
        %v4244 = vmul.f32 %v2136, %v3924
        %v4245 = vmul.f32 %v2327, %v3925
        %v4246 = vmul.f32 %v2329, %v3926
        %v4247 = vmul.f32 %v2520, %v3927
        %v4248 = vmul.f32 %v2522, %v3928
        %v4249 = vmul.f32 %v2713, %v3929
        %v4250 = vmul.f32 %v2715, %v3930
        %v4251 = vmul.f32 %v1945, %v3931
        %v4252 = vmul.f32 %v1947, %v3932
        %v4253 = vmul.f32 %v2138, %v3933
        %v4254 = vmul.f32 %v2140, %v3934
        %v4255 = vmul.f32 %v2331, %v3935
        %v4256 = vmul.f32 %v2333, %v3936
        %v4257 = vmul.f32 %v2524, %v3937
        %v4258 = vmul.f32 %v2526, %v3938
        %v4259 = vmul.f32 %v2717, %v3939
        %v4260 = vmul.f32 %v2719, %v3940
        %v4261 = vmul.f32 %v1951, %v3941
        %v4262 = vmul.f32 %v1953, %v3942
        %v4263 = vmul.f32 %v2144, %v3943
        %v4264 = vmul.f32 %v2146, %v3944
        %v4265 = vmul.f32 %v2337, %v3945
        %v4266 = vmul.f32 %v2339, %v3946
        %v4267 = vmul.f32 %v2530, %v3947
        %v4268 = vmul.f32 %v2532, %v3948
        %v4269 = vmul.f32 %v2723, %v3949
        %v4270 = vmul.f32 %v2725, %v3950
        %v4271 = vmul.f32 %v1955, %v3951
        %v4272 = vmul.f32 %v1957, %v3952
        %v4273 = vmul.f32 %v2148, %v3953
        %v4274 = vmul.f32 %v2150, %v3954
        %v4275 = vmul.f32 %v2341, %v3955
        %v4276 = vmul.f32 %v2343, %v3956
        %v4277 = vmul.f32 %v2534, %v3957
        %v4278 = vmul.f32 %v2536, %v3958
        %v4279 = vmul.f32 %v2727, %v3959
        %v4280 = vmul.f32 %v2729, %v3960
        %v4281 = vmul.f32 %v1961, %v3961
        %v4282 = vmul.f32 %v1963, %v3962
        %v4283 = vmul.f32 %v2154, %v3963
        %v4284 = vmul.f32 %v2156, %v3964
        %v4285 = vmul.f32 %v2347, %v3965
        %v4286 = vmul.f32 %v2349, %v3966
        %v4287 = vmul.f32 %v2540, %v3967
        %v4288 = vmul.f32 %v2542, %v3968
        %v4289 = vmul.f32 %v2733, %v3969
        %v4290 = vmul.f32 %v2735, %v3970
        %v4291 = vmul.f32 %v1965, %v3971
        %v4292 = vmul.f32 %v1967, %v3972
        %v4293 = vmul.f32 %v2158, %v3973
        %v4294 = vmul.f32 %v2160, %v3974
        %v4295 = vmul.f32 %v2351, %v3975
        %v4296 = vmul.f32 %v2353, %v3976
        %v4297 = vmul.f32 %v2544, %v3977
        %v4298 = vmul.f32 %v2546, %v3978
        %v4299 = vmul.f32 %v2737, %v3979
        %v4300 = vmul.f32 %v2739, %v3980
        %v4301 = vmul.f32 %v1971, %v3981
        %v4302 = vmul.f32 %v1973, %v3982
        %v4303 = vmul.f32 %v2164, %v3983
        %v4304 = vmul.f32 %v2166, %v3984
        %v4305 = vmul.f32 %v2357, %v3985
        %v4306 = vmul.f32 %v2359, %v3986
        %v4307 = vmul.f32 %v2550, %v3987
        %v4308 = vmul.f32 %v2552, %v3988
        %v4309 = vmul.f32 %v2743, %v3989
        %v4310 = vmul.f32 %v2745, %v3990
        %v4311 = vmul.f32 %v1975, %v3991
        %v4312 = vmul.f32 %v1977, %v3992
        %v4313 = vmul.f32 %v2168, %v3993
        %v4314 = vmul.f32 %v2170, %v3994
        %v4315 = vmul.f32 %v2361, %v3995
        %v4316 = vmul.f32 %v2363, %v3996
        %v4317 = vmul.f32 %v2554, %v3997
        %v4318 = vmul.f32 %v2556, %v3998
        %v4319 = vmul.f32 %v2747, %v3999
        %v4320 = vmul.f32 %v2749, %v4000
        %v4321 = vmul.f32 %v1981, %v4001
        %v4322 = vmul.f32 %v1983, %v4002
        %v4323 = vmul.f32 %v2174, %v4003
        %v4324 = vmul.f32 %v2176, %v4004
        %v4325 = vmul.f32 %v2367, %v4005
        %v4326 = vmul.f32 %v2369, %v4006
        %v4327 = vmul.f32 %v2560, %v4007
        %v4328 = vmul.f32 %v2562, %v4008
        %v4329 = vmul.f32 %v2753, %v4009
        %v4330 = vmul.f32 %v2755, %v4010
        %v4331 = vmul.f32 %v1985, %v4011
        %v4332 = vmul.f32 %v1987, %v4012
        %v4333 = vmul.f32 %v2178, %v4013
        %v4334 = vmul.f32 %v2180, %v4014
        %v4335 = vmul.f32 %v2371, %v4015
        %v4336 = vmul.f32 %v2373, %v4016
        %v4337 = vmul.f32 %v2564, %v4017
        %v4338 = vmul.f32 %v2566, %v4018
        %v4339 = vmul.f32 %v2757, %v4019
        %v4340 = vmul.f32 %v2759, %v4020
        %v4341 = vmul.f32 %v1991, %v4021
        %v4342 = vmul.f32 %v1993, %v4022
        %v4343 = vmul.f32 %v2184, %v4023
        %v4344 = vmul.f32 %v2186, %v4024
        %v4345 = vmul.f32 %v2377, %v4025
        %v4346 = vmul.f32 %v2379, %v4026
        %v4347 = vmul.f32 %v2570, %v4027
        %v4348 = vmul.f32 %v2572, %v4028
        %v4349 = vmul.f32 %v2763, %v4029
        %v4350 = vmul.f32 %v2765, %v4030
        %v4351 = vmul.f32 %v1995, %v4031
        %v4352 = vmul.f32 %v1997, %v4032
        %v4353 = vmul.f32 %v2188, %v4033
        %v4354 = vmul.f32 %v2190, %v4034
        %v4355 = vmul.f32 %v2381, %v4035
        %v4356 = vmul.f32 %v2383, %v4036
        %v4357 = vmul.f32 %v2574, %v4037
        %v4358 = vmul.f32 %v2576, %v4038
        %v4359 = vmul.f32 %v2767, %v4039
        %v4360 = vmul.f32 %v2769, %v4040
        %v4361 = vmul.f32 %v2001, %v4041
        %v4362 = vmul.f32 %v2003, %v4042
        %v4363 = vmul.f32 %v2194, %v4043
        %v4364 = vmul.f32 %v2196, %v4044
        %v4365 = vmul.f32 %v2387, %v4045
        %v4366 = vmul.f32 %v2389, %v4046
        %v4367 = vmul.f32 %v2580, %v4047
        %v4368 = vmul.f32 %v2582, %v4048
        %v4369 = vmul.f32 %v2773, %v4049
        %v4370 = vmul.f32 %v2775, %v4050
        %v4371 = vmul.f32 %v2005, %v4051
        %v4372 = vmul.f32 %v2007, %v4052
        %v4373 = vmul.f32 %v2198, %v4053
        %v4374 = vmul.f32 %v2200, %v4054
        %v4375 = vmul.f32 %v2391, %v4055
        %v4376 = vmul.f32 %v2393, %v4056
        %v4377 = vmul.f32 %v2584, %v4057
        %v4378 = vmul.f32 %v2586, %v4058
        %v4379 = vmul.f32 %v2777, %v4059
        %v4380 = vmul.f32 %v2779, %v4060
        %v4381 = vld [vmem:[#allocation3] sm:$0xff]
        %v4382 = vld [vmem:[#allocation3 + $0x8] sm:$0xff]
        %v4383 = vld [vmem:[#allocation3 + $0x10] sm:$0xff]
        %v4384 = vld [vmem:[#allocation3 + $0x18] sm:$0xff]
        %v4385 = vld [vmem:[#allocation3 + $0x20] sm:$0xff]
        %v4386 = vld [vmem:[#allocation3 + $0x28] sm:$0xff]
        %v4387 = vld [vmem:[#allocation3 + $0x30] sm:$0xff]
        %v4388 = vld [vmem:[#allocation3 + $0x38] sm:$0xff]
        %v4389 = vld [vmem:[#allocation3 + $0x40] sm:$0xff]
        %v4390 = vld [vmem:[#allocation3 + $0x48] sm:$0xff]
        %v4391 = vadd.f32 %v4061, %v4071
        %v4392 = vadd.f32 %v4391, %v4081
        %v4393 = vadd.f32 %v4392, %v4091
        %v4394 = vadd.f32 %v4393, %v4101
        %v4395 = vadd.f32 %v4394, %v4111
        %v4396 = vadd.f32 %v4395, %v4121
        %v4397 = vadd.f32 %v4396, %v4131
        %v4398 = vadd.f32 %v4397, %v4141
        %v4399 = vadd.f32 %v4398, %v4151
        %v4400 = vadd.f32 %v4399, %v4161
        %v4401 = vadd.f32 %v4400, %v4171
        %v4402 = vadd.f32 %v4401, %v4181
        %v4403 = vadd.f32 %v4402, %v4191
        %v4404 = vadd.f32 %v4403, %v4201
        %v4405 = vadd.f32 %v4404, %v4211
        %v4406 = vadd.f32 %v4405, %v4221
        %v4407 = vadd.f32 %v4406, %v4231
        %v4408 = vadd.f32 %v4407, %v4241
        %v4409 = vadd.f32 %v4408, %v4251
        %v4410 = vadd.f32 %v4409, %v4261
        %v4411 = vadd.f32 %v4410, %v4271
        %v4412 = vadd.f32 %v4411, %v4281
        %v4413 = vadd.f32 %v4412, %v4291
        %v4414 = vadd.f32 %v4413, %v4301
        %v4415 = vadd.f32 %v4414, %v4311
        %v4416 = vadd.f32 %v4415, %v4321
        %v4417 = vadd.f32 %v4416, %v4331
        %v4418 = vadd.f32 %v4417, %v4341
        %v4419 = vadd.f32 %v4418, %v4351
        %v4420 = vadd.f32 %v4419, %v4361
        %v4421 = vadd.f32 %v4420, %v4371
        %v4422 = vadd.f32 %v4062, %v4072
        %v4423 = vadd.f32 %v4422, %v4082
        %v4424 = vadd.f32 %v4423, %v4092
        %v4425 = vadd.f32 %v4424, %v4102
        %v4426 = vadd.f32 %v4425, %v4112
        %v4427 = vadd.f32 %v4426, %v4122
        %v4428 = vadd.f32 %v4427, %v4132
        %v4429 = vadd.f32 %v4428, %v4142
        %v4430 = vadd.f32 %v4429, %v4152
        %v4431 = vadd.f32 %v4430, %v4162
        %v4432 = vadd.f32 %v4431, %v4172
        %v4433 = vadd.f32 %v4432, %v4182
        %v4434 = vadd.f32 %v4433, %v4192
        %v4435 = vadd.f32 %v4434, %v4202
        %v4436 = vadd.f32 %v4435, %v4212
        %v4437 = vadd.f32 %v4436, %v4222
        %v4438 = vadd.f32 %v4437, %v4232
        %v4439 = vadd.f32 %v4438, %v4242
        %v4440 = vadd.f32 %v4439, %v4252
        %v4441 = vadd.f32 %v4440, %v4262
        %v4442 = vadd.f32 %v4441, %v4272
        %v4443 = vadd.f32 %v4442, %v4282
        %v4444 = vadd.f32 %v4443, %v4292
        %v4445 = vadd.f32 %v4444, %v4302
        %v4446 = vadd.f32 %v4445, %v4312
        %v4447 = vadd.f32 %v4446, %v4322
        %v4448 = vadd.f32 %v4447, %v4332
        %v4449 = vadd.f32 %v4448, %v4342
        %v4450 = vadd.f32 %v4449, %v4352
        %v4451 = vadd.f32 %v4450, %v4362
        %v4452 = vadd.f32 %v4451, %v4372
        %v4453 = vadd.f32 %v4063, %v4073
        %v4454 = vadd.f32 %v4453, %v4083
        %v4455 = vadd.f32 %v4454, %v4093
        %v4456 = vadd.f32 %v4455, %v4103
        %v4457 = vadd.f32 %v4456, %v4113
        %v4458 = vadd.f32 %v4457, %v4123
        %v4459 = vadd.f32 %v4458, %v4133
        %v4460 = vadd.f32 %v4459, %v4143
        %v4461 = vadd.f32 %v4460, %v4153
        %v4462 = vadd.f32 %v4461, %v4163
        %v4463 = vadd.f32 %v4462, %v4173
        %v4464 = vadd.f32 %v4463, %v4183
        %v4465 = vadd.f32 %v4464, %v4193
        %v4466 = vadd.f32 %v4465, %v4203
        %v4467 = vadd.f32 %v4466, %v4213
        %v4468 = vadd.f32 %v4467, %v4223
        %v4469 = vadd.f32 %v4468, %v4233
        %v4470 = vadd.f32 %v4469, %v4243
        %v4471 = vadd.f32 %v4470, %v4253
        %v4472 = vadd.f32 %v4471, %v4263
        %v4473 = vadd.f32 %v4472, %v4273
        %v4474 = vadd.f32 %v4473, %v4283
        %v4475 = vadd.f32 %v4474, %v4293
        %v4476 = vadd.f32 %v4475, %v4303
        %v4477 = vadd.f32 %v4476, %v4313
        %v4478 = vadd.f32 %v4477, %v4323
        %v4479 = vadd.f32 %v4478, %v4333
        %v4480 = vadd.f32 %v4479, %v4343
        %v4481 = vadd.f32 %v4480, %v4353
        %v4482 = vadd.f32 %v4481, %v4363
        %v4483 = vadd.f32 %v4482, %v4373
        %v4484 = vadd.f32 %v4064, %v4074
        %v4485 = vadd.f32 %v4484, %v4084
        %v4486 = vadd.f32 %v4485, %v4094
        %v4487 = vadd.f32 %v4486, %v4104
        %v4488 = vadd.f32 %v4487, %v4114
        %v4489 = vadd.f32 %v4488, %v4124
        %v4490 = vadd.f32 %v4489, %v4134
        %v4491 = vadd.f32 %v4490, %v4144
        %v4492 = vadd.f32 %v4491, %v4154
        %v4493 = vadd.f32 %v4492, %v4164
        %v4494 = vadd.f32 %v4493, %v4174
        %v4495 = vadd.f32 %v4494, %v4184
        %v4496 = vadd.f32 %v4495, %v4194
        %v4497 = vadd.f32 %v4496, %v4204
        %v4498 = vadd.f32 %v4497, %v4214
        %v4499 = vadd.f32 %v4498, %v4224
        %v4500 = vadd.f32 %v4499, %v4234
        %v4501 = vadd.f32 %v4500, %v4244
        %v4502 = vadd.f32 %v4501, %v4254
        %v4503 = vadd.f32 %v4502, %v4264
        %v4504 = vadd.f32 %v4503, %v4274
        %v4505 = vadd.f32 %v4504, %v4284
        %v4506 = vadd.f32 %v4505, %v4294
        %v4507 = vadd.f32 %v4506, %v4304
        %v4508 = vadd.f32 %v4507, %v4314
        %v4509 = vadd.f32 %v4508, %v4324
        %v4510 = vadd.f32 %v4509, %v4334
        %v4511 = vadd.f32 %v4510, %v4344
        %v4512 = vadd.f32 %v4511, %v4354
        %v4513 = vadd.f32 %v4512, %v4364
        %v4514 = vadd.f32 %v4513, %v4374
        %v4515 = vadd.f32 %v4065, %v4075
        %v4516 = vadd.f32 %v4515, %v4085
        %v4517 = vadd.f32 %v4516, %v4095
        %v4518 = vadd.f32 %v4517, %v4105
        %v4519 = vadd.f32 %v4518, %v4115
        %v4520 = vadd.f32 %v4519, %v4125
        %v4521 = vadd.f32 %v4520, %v4135
        %v4522 = vadd.f32 %v4521, %v4145
        %v4523 = vadd.f32 %v4522, %v4155
        %v4524 = vadd.f32 %v4523, %v4165
        %v4525 = vadd.f32 %v4524, %v4175
        %v4526 = vadd.f32 %v4525, %v4185
        %v4527 = vadd.f32 %v4526, %v4195
        %v4528 = vadd.f32 %v4527, %v4205
        %v4529 = vadd.f32 %v4528, %v4215
        %v4530 = vadd.f32 %v4529, %v4225
        %v4531 = vadd.f32 %v4530, %v4235
        %v4532 = vadd.f32 %v4531, %v4245
        %v4533 = vadd.f32 %v4532, %v4255
        %v4534 = vadd.f32 %v4533, %v4265
        %v4535 = vadd.f32 %v4534, %v4275
        %v4536 = vadd.f32 %v4535, %v4285
        %v4537 = vadd.f32 %v4536, %v4295
        %v4538 = vadd.f32 %v4537, %v4305
        %v4539 = vadd.f32 %v4538, %v4315
        %v4540 = vadd.f32 %v4539, %v4325
        %v4541 = vadd.f32 %v4540, %v4335
        %v4542 = vadd.f32 %v4541, %v4345
        %v4543 = vadd.f32 %v4542, %v4355
        %v4544 = vadd.f32 %v4543, %v4365
        %v4545 = vadd.f32 %v4544, %v4375
        %v4546 = vadd.f32 %v4066, %v4076
        %v4547 = vadd.f32 %v4546, %v4086
        %v4548 = vadd.f32 %v4547, %v4096
        %v4549 = vadd.f32 %v4548, %v4106
        %v4550 = vadd.f32 %v4549, %v4116
        %v4551 = vadd.f32 %v4550, %v4126
        %v4552 = vadd.f32 %v4551, %v4136
        %v4553 = vadd.f32 %v4552, %v4146
        %v4554 = vadd.f32 %v4553, %v4156
        %v4555 = vadd.f32 %v4554, %v4166
        %v4556 = vadd.f32 %v4555, %v4176
        %v4557 = vadd.f32 %v4556, %v4186
        %v4558 = vadd.f32 %v4557, %v4196
        %v4559 = vadd.f32 %v4558, %v4206
        %v4560 = vadd.f32 %v4559, %v4216
        %v4561 = vadd.f32 %v4560, %v4226
        %v4562 = vadd.f32 %v4561, %v4236
        %v4563 = vadd.f32 %v4562, %v4246
        %v4564 = vadd.f32 %v4563, %v4256
        %v4565 = vadd.f32 %v4564, %v4266
        %v4566 = vadd.f32 %v4565, %v4276
        %v4567 = vadd.f32 %v4566, %v4286
        %v4568 = vadd.f32 %v4567, %v4296
        %v4569 = vadd.f32 %v4568, %v4306
        %v4570 = vadd.f32 %v4569, %v4316
        %v4571 = vadd.f32 %v4570, %v4326
        %v4572 = vadd.f32 %v4571, %v4336
        %v4573 = vadd.f32 %v4572, %v4346
        %v4574 = vadd.f32 %v4573, %v4356
        %v4575 = vadd.f32 %v4574, %v4366
        %v4576 = vadd.f32 %v4575, %v4376
        %v4577 = vadd.f32 %v4067, %v4077
        %v4578 = vadd.f32 %v4577, %v4087
        %v4579 = vadd.f32 %v4578, %v4097
        %v4580 = vadd.f32 %v4579, %v4107
        %v4581 = vadd.f32 %v4580, %v4117
        %v4582 = vadd.f32 %v4581, %v4127
        %v4583 = vadd.f32 %v4582, %v4137
        %v4584 = vadd.f32 %v4583, %v4147
        %v4585 = vadd.f32 %v4584, %v4157
        %v4586 = vadd.f32 %v4585, %v4167
        %v4587 = vadd.f32 %v4586, %v4177
        %v4588 = vadd.f32 %v4587, %v4187
        %v4589 = vadd.f32 %v4588, %v4197
        %v4590 = vadd.f32 %v4589, %v4207
        %v4591 = vadd.f32 %v4590, %v4217
        %v4592 = vadd.f32 %v4591, %v4227
        %v4593 = vadd.f32 %v4592, %v4237
        %v4594 = vadd.f32 %v4593, %v4247
        %v4595 = vadd.f32 %v4594, %v4257
        %v4596 = vadd.f32 %v4595, %v4267
        %v4597 = vadd.f32 %v4596, %v4277
        %v4598 = vadd.f32 %v4597, %v4287
        %v4599 = vadd.f32 %v4598, %v4297
        %v4600 = vadd.f32 %v4599, %v4307
        %v4601 = vadd.f32 %v4600, %v4317
        %v4602 = vadd.f32 %v4601, %v4327
        %v4603 = vadd.f32 %v4602, %v4337
        %v4604 = vadd.f32 %v4603, %v4347
        %v4605 = vadd.f32 %v4604, %v4357
        %v4606 = vadd.f32 %v4605, %v4367
        %v4607 = vadd.f32 %v4606, %v4377
        %v4608 = vadd.f32 %v4068, %v4078
        %v4609 = vadd.f32 %v4608, %v4088
        %v4610 = vadd.f32 %v4609, %v4098
        %v4611 = vadd.f32 %v4610, %v4108
        %v4612 = vadd.f32 %v4611, %v4118
        %v4613 = vadd.f32 %v4612, %v4128
        %v4614 = vadd.f32 %v4613, %v4138
        %v4615 = vadd.f32 %v4614, %v4148
        %v4616 = vadd.f32 %v4615, %v4158
        %v4617 = vadd.f32 %v4616, %v4168
        %v4618 = vadd.f32 %v4617, %v4178
        %v4619 = vadd.f32 %v4618, %v4188
        %v4620 = vadd.f32 %v4619, %v4198
        %v4621 = vadd.f32 %v4620, %v4208
        %v4622 = vadd.f32 %v4621, %v4218
        %v4623 = vadd.f32 %v4622, %v4228
        %v4624 = vadd.f32 %v4623, %v4238
        %v4625 = vadd.f32 %v4624, %v4248
        %v4626 = vadd.f32 %v4625, %v4258
        %v4627 = vadd.f32 %v4626, %v4268
        %v4628 = vadd.f32 %v4627, %v4278
        %v4629 = vadd.f32 %v4628, %v4288
        %v4630 = vadd.f32 %v4629, %v4298
        %v4631 = vadd.f32 %v4630, %v4308
        %v4632 = vadd.f32 %v4631, %v4318
        %v4633 = vadd.f32 %v4632, %v4328
        %v4634 = vadd.f32 %v4633, %v4338
        %v4635 = vadd.f32 %v4634, %v4348
        %v4636 = vadd.f32 %v4635, %v4358
        %v4637 = vadd.f32 %v4636, %v4368
        %v4638 = vadd.f32 %v4637, %v4378
        %v4639 = vadd.f32 %v4069, %v4079
        %v4640 = vadd.f32 %v4639, %v4089
        %v4641 = vadd.f32 %v4640, %v4099
        %v4642 = vadd.f32 %v4641, %v4109
        %v4643 = vadd.f32 %v4642, %v4119
        %v4644 = vadd.f32 %v4643, %v4129
        %v4645 = vadd.f32 %v4644, %v4139
        %v4646 = vadd.f32 %v4645, %v4149
        %v4647 = vadd.f32 %v4646, %v4159
        %v4648 = vadd.f32 %v4647, %v4169
        %v4649 = vadd.f32 %v4648, %v4179
        %v4650 = vadd.f32 %v4649, %v4189
        %v4651 = vadd.f32 %v4650, %v4199
        %v4652 = vadd.f32 %v4651, %v4209
        %v4653 = vadd.f32 %v4652, %v4219
        %v4654 = vadd.f32 %v4653, %v4229
        %v4655 = vadd.f32 %v4654, %v4239
        %v4656 = vadd.f32 %v4655, %v4249
        %v4657 = vadd.f32 %v4656, %v4259
        %v4658 = vadd.f32 %v4657, %v4269
        %v4659 = vadd.f32 %v4658, %v4279
        %v4660 = vadd.f32 %v4659, %v4289
        %v4661 = vadd.f32 %v4660, %v4299
        %v4662 = vadd.f32 %v4661, %v4309
        %v4663 = vadd.f32 %v4662, %v4319
        %v4664 = vadd.f32 %v4663, %v4329
        %v4665 = vadd.f32 %v4664, %v4339
        %v4666 = vadd.f32 %v4665, %v4349
        %v4667 = vadd.f32 %v4666, %v4359
        %v4668 = vadd.f32 %v4667, %v4369
        %v4669 = vadd.f32 %v4668, %v4379
        %v4670 = vadd.f32 %v4070, %v4080
        %v4671 = vadd.f32 %v4670, %v4090
        %v4672 = vadd.f32 %v4671, %v4100
        %v4673 = vadd.f32 %v4672, %v4110
        %v4674 = vadd.f32 %v4673, %v4120
        %v4675 = vadd.f32 %v4674, %v4130
        %v4676 = vadd.f32 %v4675, %v4140
        %v4677 = vadd.f32 %v4676, %v4150
        %v4678 = vadd.f32 %v4677, %v4160
        %v4679 = vadd.f32 %v4678, %v4170
        %v4680 = vadd.f32 %v4679, %v4180
        %v4681 = vadd.f32 %v4680, %v4190
        %v4682 = vadd.f32 %v4681, %v4200
        %v4683 = vadd.f32 %v4682, %v4210
        %v4684 = vadd.f32 %v4683, %v4220
        %v4685 = vadd.f32 %v4684, %v4230
        %v4686 = vadd.f32 %v4685, %v4240
        %v4687 = vadd.f32 %v4686, %v4250
        %v4688 = vadd.f32 %v4687, %v4260
        %v4689 = vadd.f32 %v4688, %v4270
        %v4690 = vadd.f32 %v4689, %v4280
        %v4691 = vadd.f32 %v4690, %v4290
        %v4692 = vadd.f32 %v4691, %v4300
        %v4693 = vadd.f32 %v4692, %v4310
        %v4694 = vadd.f32 %v4693, %v4320
        %v4695 = vadd.f32 %v4694, %v4330
        %v4696 = vadd.f32 %v4695, %v4340
        %v4697 = vadd.f32 %v4696, %v4350
        %v4698 = vadd.f32 %v4697, %v4360
        %v4699 = vadd.f32 %v4698, %v4370
        %v4700 = vadd.f32 %v4699, %v4380
        %v4701 = vadd.f32 %v4381, %v4421
        %v4702 = vadd.f32 %v4382, %v4452
        %v4703 = vadd.f32 %v4383, %v4483
        %v4704 = vadd.f32 %v4384, %v4514
        %v4705 = vadd.f32 %v4385, %v4545
        %v4706 = vadd.f32 %v4386, %v4576
        %v4707 = vadd.f32 %v4387, %v4607
        %v4708 = vadd.f32 %v4388, %v4638
        %v4709 = vadd.f32 %v4389, %v4669
        %v4710 = vadd.f32 %v4390, %v4700
        %4711 = vst [vmem:[#allocation3] sm:$0xff] %v4701
        %4712 = vst [vmem:[#allocation3 + $0x8] sm:$0xff] %v4702
        %4713 = vst [vmem:[#allocation3 + $0x10] sm:$0xff] %v4703
        %4714 = vst [vmem:[#allocation3 + $0x18] sm:$0xff] %v4704
        %4715 = vst [vmem:[#allocation3 + $0x20] sm:$0xff] %v4705
        %4716 = vst [vmem:[#allocation3 + $0x28] sm:$0xff] %v4706
        %4717 = vst [vmem:[#allocation3 + $0x30] sm:$0xff] %v4707
        %4718 = vst [vmem:[#allocation3 + $0x38] sm:$0xff] %v4708
        %4719 = vst [vmem:[#allocation3 + $0x40] sm:$0xff] %v4709
        %4720 = vst [vmem:[#allocation3 + $0x48] sm:$0xff] %v4710
        // Predicated region
        $region41: #{tpu_custom_call.1} parent=35 // pred_check
          %p4721 = pneg %p224
        $region42: #{tpu_custom_call.1} parent=35 // pred_check_branch
          %4723 = sbr.rel (%p4721) target = $region44
        $region43: #{tpu_custom_call.1} parent=35 // pred_region
          %v4724 = vld [vmem:[#allocation2] sm:$0xff]
          %v4725 = vld [vmem:[#allocation2 + $0x8] sm:$0xff]
          %v4726 = vld [vmem:[#allocation2 + $0x10] sm:$0xff]
          %v4727 = vld [vmem:[#allocation2 + $0x18] sm:$0xff]
          %v4728 = vld [vmem:[#allocation2 + $0x20] sm:$0xff]
          %v4729 = vld [vmem:[#allocation2 + $0x28] sm:$0xff]
          %v4730 = vld [vmem:[#allocation2 + $0x30] sm:$0xff]
          %v4731 = vld [vmem:[#allocation2 + $0x38] sm:$0xff]
          %v4732 = vrot.slane %v4724, 4
          %v4733 = vadd.f32 %v4724, %v4732
          %v4734 = vrot.slane %v4733, 2
          %v4735 = vadd.f32 %v4733, %v4734
          %v4736 = vrot.slane %v4735, 1
          %v4737 = vadd.f32 %v4735, %v4736
          %v4738 = vrot.slane %v4725, 4
          %v4739 = vadd.f32 %v4725, %v4738
          %v4740 = vrot.slane %v4739, 2
          %v4741 = vadd.f32 %v4739, %v4740
          %v4742 = vrot.slane %v4741, 1
          %v4743 = vadd.f32 %v4741, %v4742
          %v4744 = vrot.slane %v4726, 4
          %v4745 = vadd.f32 %v4726, %v4744
          %v4746 = vrot.slane %v4745, 2
          %v4747 = vadd.f32 %v4745, %v4746
          %v4748 = vrot.slane %v4747, 1
          %v4749 = vadd.f32 %v4747, %v4748
          %v4750 = vrot.slane %v4727, 4
          %v4751 = vadd.f32 %v4727, %v4750
          %v4752 = vrot.slane %v4751, 2
          %v4753 = vadd.f32 %v4751, %v4752
          %v4754 = vrot.slane %v4753, 1
          %v4755 = vadd.f32 %v4753, %v4754
          %v4756 = vrot.slane %v4728, 4
          %v4757 = vadd.f32 %v4728, %v4756
          %v4758 = vrot.slane %v4757, 2
          %v4759 = vadd.f32 %v4757, %v4758
          %v4760 = vrot.slane %v4759, 1
          %v4761 = vadd.f32 %v4759, %v4760
          %v4762 = vrot.slane %v4729, 4
          %v4763 = vadd.f32 %v4729, %v4762
          %v4764 = vrot.slane %v4763, 2
          %v4765 = vadd.f32 %v4763, %v4764
          %v4766 = vrot.slane %v4765, 1
          %v4767 = vadd.f32 %v4765, %v4766
          %v4768 = vrot.slane %v4730, 4
          %v4769 = vadd.f32 %v4730, %v4768
          %v4770 = vrot.slane %v4769, 2
          %v4771 = vadd.f32 %v4769, %v4770
          %v4772 = vrot.slane %v4771, 1
          %v4773 = vadd.f32 %v4771, %v4772
          %v4774 = vrot.slane %v4731, 4
          %v4775 = vadd.f32 %v4731, %v4774
          %v4776 = vrot.slane %v4775, 2
          %v4777 = vadd.f32 %v4775, %v4776
          %v4778 = vrot.slane %v4777, 1
          %v4779 = vadd.f32 %v4777, %v4778
          %v4780 = vld [vmem:[#allocation3] sm:$0xff]
          %v4781 = vld [vmem:[#allocation3 + $0x8] sm:$0xff]
          %v4782 = vld [vmem:[#allocation3 + $0x10] sm:$0xff]
          %v4783 = vld [vmem:[#allocation3 + $0x18] sm:$0xff]
          %v4784 = vld [vmem:[#allocation3 + $0x20] sm:$0xff]
          %v4785 = vld [vmem:[#allocation3 + $0x28] sm:$0xff]
          %v4786 = vld [vmem:[#allocation3 + $0x30] sm:$0xff]
          %v4787 = vld [vmem:[#allocation3 + $0x38] sm:$0xff]
          %v4788 = vld [vmem:[#allocation3 + $0x40] sm:$0xff]
          %v4789 = vld [vmem:[#allocation3 + $0x48] sm:$0xff]
          %v4790 = vrot.slane %v4780, 4
          %v4791 = vadd.f32 %v4780, %v4790
          %v4792 = vrot.slane %v4791, 2
          %v4793 = vadd.f32 %v4791, %v4792
          %v4794 = vrot.slane %v4793, 1
          %v4795 = vadd.f32 %v4793, %v4794
          %v4796 = vrot.slane %v4781, 4
          %v4797 = vadd.f32 %v4781, %v4796
          %v4798 = vrot.slane %v4797, 2
          %v4799 = vadd.f32 %v4797, %v4798
          %v4800 = vrot.slane %v4799, 1
          %v4801 = vadd.f32 %v4799, %v4800
          %v4802 = vrot.slane %v4782, 4
          %v4803 = vadd.f32 %v4782, %v4802
          %v4804 = vrot.slane %v4803, 2
          %v4805 = vadd.f32 %v4803, %v4804
          %v4806 = vrot.slane %v4805, 1
          %v4807 = vadd.f32 %v4805, %v4806
          %v4808 = vrot.slane %v4783, 4
          %v4809 = vadd.f32 %v4783, %v4808
          %v4810 = vrot.slane %v4809, 2
          %v4811 = vadd.f32 %v4809, %v4810
          %v4812 = vrot.slane %v4811, 1
          %v4813 = vadd.f32 %v4811, %v4812
          %v4814 = vrot.slane %v4784, 4
          %v4815 = vadd.f32 %v4784, %v4814
          %v4816 = vrot.slane %v4815, 2
          %v4817 = vadd.f32 %v4815, %v4816
          %v4818 = vrot.slane %v4817, 1
          %v4819 = vadd.f32 %v4817, %v4818
          %v4820 = vrot.slane %v4785, 4
          %v4821 = vadd.f32 %v4785, %v4820
          %v4822 = vrot.slane %v4821, 2
          %v4823 = vadd.f32 %v4821, %v4822
          %v4824 = vrot.slane %v4823, 1
          %v4825 = vadd.f32 %v4823, %v4824
          %v4826 = vrot.slane %v4786, 4
          %v4827 = vadd.f32 %v4786, %v4826
          %v4828 = vrot.slane %v4827, 2
          %v4829 = vadd.f32 %v4827, %v4828
          %v4830 = vrot.slane %v4829, 1
          %v4831 = vadd.f32 %v4829, %v4830
          %v4832 = vrot.slane %v4787, 4
          %v4833 = vadd.f32 %v4787, %v4832
          %v4834 = vrot.slane %v4833, 2
          %v4835 = vadd.f32 %v4833, %v4834
          %v4836 = vrot.slane %v4835, 1
          %v4837 = vadd.f32 %v4835, %v4836
          %v4838 = vrot.slane %v4788, 4
          %v4839 = vadd.f32 %v4788, %v4838
          %v4840 = vrot.slane %v4839, 2
          %v4841 = vadd.f32 %v4839, %v4840
          %v4842 = vrot.slane %v4841, 1
          %v4843 = vadd.f32 %v4841, %v4842
          %v4844 = vrot.slane %v4789, 4
          %v4845 = vadd.f32 %v4789, %v4844
          %v4846 = vrot.slane %v4845, 2
          %v4847 = vadd.f32 %v4845, %v4846
          %v4848 = vrot.slane %v4847, 1
          %v4849 = vadd.f32 %v4847, %v4848
          %v4850 = vld [vmem:[%s2] sm:$0xff]
          %v4851 = vld [vmem:[%s2 + $0x8] sm:$0xff]
          %v4852 = vld [vmem:[%s2 + $0x10] sm:$0xff]
          %v4853 = vld [vmem:[%s2 + $0x18] sm:$0xff]
          %v4854 = vld [vmem:[%s2 + $0x20] sm:$0xff]
          %v4855 = vld [vmem:[%s2 + $0x28] sm:$0xff]
          %v4856 = vld [vmem:[%s2 + $0x30] sm:$0xff]
          %v4857 = vld [vmem:[%s2 + $0x38] sm:$0xff]
          %v4858 = vld [vmem:[%s2 + $0x40] sm:$0xff]
          %v4859 = vld [vmem:[%s2 + $0x48] sm:$0xff]
          %v4860 = vld [vmem:[%s2 + $0x50] sm:$0xff]
          %v4861 = vld [vmem:[%s2 + $0x58] sm:$0xff]
          %v4862 = vld [vmem:[%s2 + $0x60] sm:$0xff]
          %v4863 = vld [vmem:[%s2 + $0x68] sm:$0xff]
          %v4864 = vld [vmem:[%s2 + $0x70] sm:$0xff]
          %v4865 = vld [vmem:[%s2 + $0x78] sm:$0xff]
          %v4866 = vld [vmem:[%s2 + $0x80] sm:$0xff]
          %v4867 = vld [vmem:[%s2 + $0x88] sm:$0xff]
          %v4868 = vld [vmem:[%s2 + $0x90] sm:$0xff]
          %v4869 = vld [vmem:[%s2 + $0x98] sm:$0xff]
          %v4870 = vld [vmem:[%s2 + $0xa0] sm:$0xff]
          %v4871 = vld [vmem:[%s2 + $0xa8] sm:$0xff]
          %v4872 = vld [vmem:[%s2 + $0xb0] sm:$0xff]
          %v4873 = vld [vmem:[%s2 + $0xb8] sm:$0xff]
          %v4874 = vld [vmem:[%s2 + $0xc0] sm:$0xff]
          %v4875 = vld [vmem:[%s2 + $0xc8] sm:$0xff]
          %v4876 = vld [vmem:[%s2 + $0xd0] sm:$0xff]
          %v4877 = vld [vmem:[%s2 + $0xd8] sm:$0xff]
          %v4878 = vld [vmem:[%s2 + $0xe0] sm:$0xff]
          %v4879 = vld [vmem:[%s2 + $0xe8] sm:$0xff]
          %v4880 = vld [vmem:[%s2 + $0xf0] sm:$0xff]
          %v4881 = vld [vmem:[%s2 + $0xf8] sm:$0xff]
          %v4882 = vld [vmem:[%s2 + $0x100] sm:$0xff]
          %v4883 = vld [vmem:[%s2 + $0x108] sm:$0xff]
          %v4884 = vld [vmem:[%s2 + $0x110] sm:$0xff]
          %v4885 = vld [vmem:[%s2 + $0x118] sm:$0xff]
          %v4886 = vld [vmem:[%s2 + $0x120] sm:$0xff]
          %v4887 = vld [vmem:[%s2 + $0x128] sm:$0xff]
          %v4888 = vld [vmem:[%s2 + $0x130] sm:$0xff]
          %v4889 = vld [vmem:[%s2 + $0x138] sm:$0xff]
          %v4890 = vld [vmem:[%s2 + $0x140] sm:$0xff]
          %v4891 = vld [vmem:[%s2 + $0x148] sm:$0xff]
          %v4892 = vld [vmem:[%s2 + $0x150] sm:$0xff]
          %v4893 = vld [vmem:[%s2 + $0x158] sm:$0xff]
          %v4894 = vld [vmem:[%s2 + $0x160] sm:$0xff]
          %v4895 = vld [vmem:[%s2 + $0x168] sm:$0xff]
          %v4896 = vld [vmem:[%s2 + $0x170] sm:$0xff]
          %v4897 = vld [vmem:[%s2 + $0x178] sm:$0xff]
          %v4898 = vld [vmem:[%s2 + $0x180] sm:$0xff]
          %v4899 = vld [vmem:[%s2 + $0x188] sm:$0xff]
          %v4900 = vld [vmem:[%s2 + $0x190] sm:$0xff]
          %v4901 = vld [vmem:[%s2 + $0x198] sm:$0xff]
          %v4902 = vld [vmem:[%s2 + $0x1a0] sm:$0xff]
          %v4903 = vld [vmem:[%s2 + $0x1a8] sm:$0xff]
          %v4904 = vld [vmem:[%s2 + $0x1b0] sm:$0xff]
          %v4905 = vld [vmem:[%s2 + $0x1b8] sm:$0xff]
          %v4906 = vld [vmem:[%s2 + $0x1c0] sm:$0xff]
          %v4907 = vld [vmem:[%s2 + $0x1c8] sm:$0xff]
          %v4908 = vld [vmem:[%s2 + $0x1d0] sm:$0xff]
          %v4909 = vld [vmem:[%s2 + $0x1d8] sm:$0xff]
          %v4910 = vld [vmem:[%s2 + $0x1e0] sm:$0xff]
          %v4911 = vld [vmem:[%s2 + $0x1e8] sm:$0xff]
          %v4912 = vld [vmem:[%s2 + $0x1f0] sm:$0xff]
          %v4913 = vld [vmem:[%s2 + $0x1f8] sm:$0xff]
          %v4914 = vld [vmem:[%s2 + $0x200] sm:$0xff]
          %v4915 = vld [vmem:[%s2 + $0x208] sm:$0xff]
          %v4916 = vld [vmem:[%s2 + $0x210] sm:$0xff]
          %v4917 = vld [vmem:[%s2 + $0x218] sm:$0xff]
          %v4918 = vld [vmem:[%s2 + $0x220] sm:$0xff]
          %v4919 = vld [vmem:[%s2 + $0x228] sm:$0xff]
          %v4920 = vld [vmem:[%s2 + $0x230] sm:$0xff]
          %v4921 = vld [vmem:[%s2 + $0x238] sm:$0xff]
          %v4922 = vld [vmem:[%s2 + $0x240] sm:$0xff]
          %v4923 = vld [vmem:[%s2 + $0x248] sm:$0xff]
          %v4924 = vld [vmem:[%s2 + $0x250] sm:$0xff]
          %v4925 = vld [vmem:[%s2 + $0x258] sm:$0xff]
          %v4926 = vld [vmem:[%s2 + $0x260] sm:$0xff]
          %v4927 = vld [vmem:[%s2 + $0x268] sm:$0xff]
          %v4928 = vld [vmem:[%s2 + $0x270] sm:$0xff]
          %v4929 = vld [vmem:[%s2 + $0x278] sm:$0xff]
          %v4930 = vld [vmem:[%s2 + $0x280] sm:$0xff]
          %v4931 = vld [vmem:[%s2 + $0x288] sm:$0xff]
          %v4932 = vld [vmem:[%s2 + $0x290] sm:$0xff]
          %v4933 = vld [vmem:[%s2 + $0x298] sm:$0xff]
          %v4934 = vld [vmem:[%s2 + $0x2a0] sm:$0xff]
          %v4935 = vld [vmem:[%s2 + $0x2a8] sm:$0xff]
          %v4936 = vld [vmem:[%s2 + $0x2b0] sm:$0xff]
          %v4937 = vld [vmem:[%s2 + $0x2b8] sm:$0xff]
          %v4938 = vld [vmem:[%s2 + $0x2c0] sm:$0xff]
          %v4939 = vld [vmem:[%s2 + $0x2c8] sm:$0xff]
          %v4940 = vld [vmem:[%s2 + $0x2d0] sm:$0xff]
          %v4941 = vld [vmem:[%s2 + $0x2d8] sm:$0xff]
          %v4942 = vld [vmem:[%s2 + $0x2e0] sm:$0xff]
          %v4943 = vld [vmem:[%s2 + $0x2e8] sm:$0xff]
          %v4944 = vld [vmem:[%s2 + $0x2f0] sm:$0xff]
          %v4945 = vld [vmem:[%s2 + $0x2f8] sm:$0xff]
          %v4946 = vld [vmem:[%s2 + $0x300] sm:$0xff]
          %v4947 = vld [vmem:[%s2 + $0x308] sm:$0xff]
          %v4948 = vld [vmem:[%s2 + $0x310] sm:$0xff]
          %v4949 = vld [vmem:[%s2 + $0x318] sm:$0xff]
          %v4950 = vld [vmem:[%s2 + $0x320] sm:$0xff]
          %v4951 = vld [vmem:[%s2 + $0x328] sm:$0xff]
          %v4952 = vld [vmem:[%s2 + $0x330] sm:$0xff]
          %v4953 = vld [vmem:[%s2 + $0x338] sm:$0xff]
          %v4954 = vld [vmem:[%s2 + $0x340] sm:$0xff]
          %v4955 = vld [vmem:[%s2 + $0x348] sm:$0xff]
          %v4956 = vld [vmem:[%s2 + $0x350] sm:$0xff]
          %v4957 = vld [vmem:[%s2 + $0x358] sm:$0xff]
          %v4958 = vld [vmem:[%s2 + $0x360] sm:$0xff]
          %v4959 = vld [vmem:[%s2 + $0x368] sm:$0xff]
          %v4960 = vld [vmem:[%s2 + $0x370] sm:$0xff]
          %v4961 = vld [vmem:[%s2 + $0x378] sm:$0xff]
          %v4962 = vld [vmem:[%s2 + $0x380] sm:$0xff]
          %v4963 = vld [vmem:[%s2 + $0x388] sm:$0xff]
          %v4964 = vld [vmem:[%s2 + $0x390] sm:$0xff]
          %v4965 = vld [vmem:[%s2 + $0x398] sm:$0xff]
          %v4966 = vld [vmem:[%s2 + $0x3a0] sm:$0xff]
          %v4967 = vld [vmem:[%s2 + $0x3a8] sm:$0xff]
          %v4968 = vld [vmem:[%s2 + $0x3b0] sm:$0xff]
          %v4969 = vld [vmem:[%s2 + $0x3b8] sm:$0xff]
          %v4970 = vld [vmem:[%s2 + $0x3c0] sm:$0xff]
          %v4971 = vld [vmem:[%s2 + $0x3c8] sm:$0xff]
          %v4972 = vld [vmem:[%s2 + $0x3d0] sm:$0xff]
          %v4973 = vld [vmem:[%s2 + $0x3d8] sm:$0xff]
          %v4974 = vld [vmem:[%s2 + $0x3e0] sm:$0xff]
          %v4975 = vld [vmem:[%s2 + $0x3e8] sm:$0xff]
          %v4976 = vld [vmem:[%s2 + $0x3f0] sm:$0xff]
          %v4977 = vld [vmem:[%s2 + $0x3f8] sm:$0xff]
          %v4978 = vld [vmem:[%s2 + $0x400] sm:$0xff]
          %v4979 = vld [vmem:[%s2 + $0x408] sm:$0xff]
          %v4980 = vld [vmem:[%s2 + $0x410] sm:$0xff]
          %v4981 = vld [vmem:[%s2 + $0x418] sm:$0xff]
          %v4982 = vld [vmem:[%s2 + $0x420] sm:$0xff]
          %v4983 = vld [vmem:[%s2 + $0x428] sm:$0xff]
          %v4984 = vld [vmem:[%s2 + $0x430] sm:$0xff]
          %v4985 = vld [vmem:[%s2 + $0x438] sm:$0xff]
          %v4986 = vld [vmem:[%s2 + $0x440] sm:$0xff]
          %v4987 = vld [vmem:[%s2 + $0x448] sm:$0xff]
          %v4988 = vld [vmem:[%s2 + $0x450] sm:$0xff]
          %v4989 = vld [vmem:[%s2 + $0x458] sm:$0xff]
          %v4990 = vld [vmem:[%s2 + $0x460] sm:$0xff]
          %v4991 = vld [vmem:[%s2 + $0x468] sm:$0xff]
          %v4992 = vld [vmem:[%s2 + $0x470] sm:$0xff]
          %v4993 = vld [vmem:[%s2 + $0x478] sm:$0xff]
          %v4994 = vld [vmem:[%s2 + $0x480] sm:$0xff]
          %v4995 = vld [vmem:[%s2 + $0x488] sm:$0xff]
          %v4996 = vld [vmem:[%s2 + $0x490] sm:$0xff]
          %v4997 = vld [vmem:[%s2 + $0x498] sm:$0xff]
          %v4998 = vld [vmem:[%s2 + $0x4a0] sm:$0xff]
          %v4999 = vld [vmem:[%s2 + $0x4a8] sm:$0xff]
          %v5000 = vld [vmem:[%s2 + $0x4b0] sm:$0xff]
          %v5001 = vld [vmem:[%s2 + $0x4b8] sm:$0xff]
          %v5002 = vld [vmem:[%s2 + $0x4c0] sm:$0xff]
          %v5003 = vld [vmem:[%s2 + $0x4c8] sm:$0xff]
          %v5004 = vld [vmem:[%s2 + $0x4d0] sm:$0xff]
          %v5005 = vld [vmem:[%s2 + $0x4d8] sm:$0xff]
          %v5006 = vld [vmem:[%s2 + $0x4e0] sm:$0xff]
          %v5007 = vld [vmem:[%s2 + $0x4e8] sm:$0xff]
          %v5008 = vld [vmem:[%s2 + $0x4f0] sm:$0xff]
          %v5009 = vld [vmem:[%s2 + $0x4f8] sm:$0xff]
          %v5010 = vld [vmem:[%s2 + $0x500] sm:$0xff]
          %v5011 = vld [vmem:[%s2 + $0x508] sm:$0xff]
          %v5012 = vld [vmem:[%s2 + $0x510] sm:$0xff]
          %v5013 = vld [vmem:[%s2 + $0x518] sm:$0xff]
          %v5014 = vld [vmem:[%s2 + $0x520] sm:$0xff]
          %v5015 = vld [vmem:[%s2 + $0x528] sm:$0xff]
          %v5016 = vld [vmem:[%s2 + $0x530] sm:$0xff]
          %v5017 = vld [vmem:[%s2 + $0x538] sm:$0xff]
          %v5018 = vld [vmem:[%s2 + $0x540] sm:$0xff]
          %v5019 = vld [vmem:[%s2 + $0x548] sm:$0xff]
          %v5020 = vld [vmem:[%s2 + $0x550] sm:$0xff]
          %v5021 = vld [vmem:[%s2 + $0x558] sm:$0xff]
          %v5022 = vld [vmem:[%s2 + $0x560] sm:$0xff]
          %v5023 = vld [vmem:[%s2 + $0x568] sm:$0xff]
          %v5024 = vld [vmem:[%s2 + $0x570] sm:$0xff]
          %v5025 = vld [vmem:[%s2 + $0x578] sm:$0xff]
          %v5026 = vld [vmem:[%s2 + $0x580] sm:$0xff]
          %v5027 = vld [vmem:[%s2 + $0x588] sm:$0xff]
          %v5028 = vld [vmem:[%s2 + $0x590] sm:$0xff]
          %v5029 = vld [vmem:[%s2 + $0x598] sm:$0xff]
          %v5030 = vld [vmem:[%s2 + $0x5a0] sm:$0xff]
          %v5031 = vld [vmem:[%s2 + $0x5a8] sm:$0xff]
          %v5032 = vld [vmem:[%s2 + $0x5b0] sm:$0xff]
          %v5033 = vld [vmem:[%s2 + $0x5b8] sm:$0xff]
          %v5034 = vld [vmem:[%s2 + $0x5c0] sm:$0xff]
          %v5035 = vld [vmem:[%s2 + $0x5c8] sm:$0xff]
          %v5036 = vld [vmem:[%s2 + $0x5d0] sm:$0xff]
          %v5037 = vld [vmem:[%s2 + $0x5d8] sm:$0xff]
          %v5038 = vld [vmem:[%s2 + $0x5e0] sm:$0xff]
          %v5039 = vld [vmem:[%s2 + $0x5e8] sm:$0xff]
          %v5040 = vld [vmem:[%s2 + $0x5f0] sm:$0xff]
          %v5041 = vld [vmem:[%s2 + $0x5f8] sm:$0xff]
          %v5042 = vld [vmem:[%s2 + $0x600] sm:$0xff]
          %v5043 = vld [vmem:[%s2 + $0x608] sm:$0xff]
          %v5044 = vld [vmem:[%s2 + $0x610] sm:$0xff]
          %v5045 = vld [vmem:[%s2 + $0x618] sm:$0xff]
          %v5046 = vld [vmem:[%s2 + $0x620] sm:$0xff]
          %v5047 = vld [vmem:[%s2 + $0x628] sm:$0xff]
          %v5048 = vld [vmem:[%s2 + $0x630] sm:$0xff]
          %v5049 = vld [vmem:[%s2 + $0x638] sm:$0xff]
          %v5050 = vld [vmem:[%s2 + $0x640] sm:$0xff]
          %v5051 = vld [vmem:[%s2 + $0x648] sm:$0xff]
          %v5052 = vld [vmem:[%s2 + $0x650] sm:$0xff]
          %v5053 = vld [vmem:[%s2 + $0x658] sm:$0xff]
          %v5054 = vld [vmem:[%s2 + $0x660] sm:$0xff]
          %v5055 = vld [vmem:[%s2 + $0x668] sm:$0xff]
          %v5056 = vld [vmem:[%s2 + $0x670] sm:$0xff]
          %v5057 = vld [vmem:[%s2 + $0x678] sm:$0xff]
          %v5058 = vld [vmem:[%s2 + $0x680] sm:$0xff]
          %v5059 = vld [vmem:[%s2 + $0x688] sm:$0xff]
          %v5060 = vld [vmem:[%s2 + $0x690] sm:$0xff]
          %v5061 = vld [vmem:[%s2 + $0x698] sm:$0xff]
          %v5062 = vld [vmem:[%s2 + $0x6a0] sm:$0xff]
          %v5063 = vld [vmem:[%s2 + $0x6a8] sm:$0xff]
          %v5064 = vld [vmem:[%s2 + $0x6b0] sm:$0xff]
          %v5065 = vld [vmem:[%s2 + $0x6b8] sm:$0xff]
          %v5066 = vld [vmem:[%s2 + $0x6c0] sm:$0xff]
          %v5067 = vld [vmem:[%s2 + $0x6c8] sm:$0xff]
          %v5068 = vld [vmem:[%s2 + $0x6d0] sm:$0xff]
          %v5069 = vld [vmem:[%s2 + $0x6d8] sm:$0xff]
          %v5070 = vld [vmem:[%s2 + $0x6e0] sm:$0xff]
          %v5071 = vld [vmem:[%s2 + $0x6e8] sm:$0xff]
          %v5072 = vld [vmem:[%s2 + $0x6f0] sm:$0xff]
          %v5073 = vld [vmem:[%s2 + $0x6f8] sm:$0xff]
          %v5074 = vld [vmem:[%s2 + $0x700] sm:$0xff]
          %v5075 = vld [vmem:[%s2 + $0x708] sm:$0xff]
          %v5076 = vld [vmem:[%s2 + $0x710] sm:$0xff]
          %v5077 = vld [vmem:[%s2 + $0x718] sm:$0xff]
          %v5078 = vld [vmem:[%s2 + $0x720] sm:$0xff]
          %v5079 = vld [vmem:[%s2 + $0x728] sm:$0xff]
          %v5080 = vld [vmem:[%s2 + $0x730] sm:$0xff]
          %v5081 = vld [vmem:[%s2 + $0x738] sm:$0xff]
          %v5082 = vld [vmem:[%s2 + $0x740] sm:$0xff]
          %v5083 = vld [vmem:[%s2 + $0x748] sm:$0xff]
          %v5084 = vld [vmem:[%s2 + $0x750] sm:$0xff]
          %v5085 = vld [vmem:[%s2 + $0x758] sm:$0xff]
          %v5086 = vld [vmem:[%s2 + $0x760] sm:$0xff]
          %v5087 = vld [vmem:[%s2 + $0x768] sm:$0xff]
          %v5088 = vld [vmem:[%s2 + $0x770] sm:$0xff]
          %v5089 = vld [vmem:[%s2 + $0x778] sm:$0xff]
          %v5090 = vld [vmem:[%s2 + $0x780] sm:$0xff]
          %v5091 = vld [vmem:[%s2 + $0x788] sm:$0xff]
          %v5092 = vld [vmem:[%s2 + $0x790] sm:$0xff]
          %v5093 = vld [vmem:[%s2 + $0x798] sm:$0xff]
          %v5094 = vld [vmem:[%s2 + $0x7a0] sm:$0xff]
          %v5095 = vld [vmem:[%s2 + $0x7a8] sm:$0xff]
          %v5096 = vld [vmem:[%s2 + $0x7b0] sm:$0xff]
          %v5097 = vld [vmem:[%s2 + $0x7b8] sm:$0xff]
          %v5098 = vld [vmem:[%s2 + $0x7c0] sm:$0xff]
          %v5099 = vld [vmem:[%s2 + $0x7c8] sm:$0xff]
          %v5100 = vld [vmem:[%s2 + $0x7d0] sm:$0xff]
          %v5101 = vld [vmem:[%s2 + $0x7d8] sm:$0xff]
          %v5102 = vld [vmem:[%s2 + $0x7e0] sm:$0xff]
          %v5103 = vld [vmem:[%s2 + $0x7e8] sm:$0xff]
          %v5104 = vld [vmem:[%s2 + $0x7f0] sm:$0xff]
          %v5105 = vld [vmem:[%s2 + $0x7f8] sm:$0xff]
          %v5106 = vld [vmem:[%s2 + $0x800] sm:$0xff]
          %v5107 = vld [vmem:[%s2 + $0x808] sm:$0xff]
          %v5108 = vld [vmem:[%s2 + $0x810] sm:$0xff]
          %v5109 = vld [vmem:[%s2 + $0x818] sm:$0xff]
          %v5110 = vld [vmem:[%s2 + $0x820] sm:$0xff]
          %v5111 = vld [vmem:[%s2 + $0x828] sm:$0xff]
          %v5112 = vld [vmem:[%s2 + $0x830] sm:$0xff]
          %v5113 = vld [vmem:[%s2 + $0x838] sm:$0xff]
          %v5114 = vld [vmem:[%s2 + $0x840] sm:$0xff]
          %v5115 = vld [vmem:[%s2 + $0x848] sm:$0xff]
          %v5116 = vld [vmem:[%s2 + $0x850] sm:$0xff]
          %v5117 = vld [vmem:[%s2 + $0x858] sm:$0xff]
          %v5118 = vld [vmem:[%s2 + $0x860] sm:$0xff]
          %v5119 = vld [vmem:[%s2 + $0x868] sm:$0xff]
          %v5120 = vld [vmem:[%s2 + $0x870] sm:$0xff]
          %v5121 = vld [vmem:[%s2 + $0x878] sm:$0xff]
          %v5122 = vld [vmem:[%s2 + $0x880] sm:$0xff]
          %v5123 = vld [vmem:[%s2 + $0x888] sm:$0xff]
          %v5124 = vld [vmem:[%s2 + $0x890] sm:$0xff]
          %v5125 = vld [vmem:[%s2 + $0x898] sm:$0xff]
          %v5126 = vld [vmem:[%s2 + $0x8a0] sm:$0xff]
          %v5127 = vld [vmem:[%s2 + $0x8a8] sm:$0xff]
          %v5128 = vld [vmem:[%s2 + $0x8b0] sm:$0xff]
          %v5129 = vld [vmem:[%s2 + $0x8b8] sm:$0xff]
          %v5130 = vld [vmem:[%s2 + $0x8c0] sm:$0xff]
          %v5131 = vld [vmem:[%s2 + $0x8c8] sm:$0xff]
          %v5132 = vld [vmem:[%s2 + $0x8d0] sm:$0xff]
          %v5133 = vld [vmem:[%s2 + $0x8d8] sm:$0xff]
          %v5134 = vld [vmem:[%s2 + $0x8e0] sm:$0xff]
          %v5135 = vld [vmem:[%s2 + $0x8e8] sm:$0xff]
          %v5136 = vld [vmem:[%s2 + $0x8f0] sm:$0xff]
          %v5137 = vld [vmem:[%s2 + $0x8f8] sm:$0xff]
          %5138 = vmatprep.subr.mxu0 0.0
          %5139 = vmatpush1.msra.mxu0 %v4993
          %5140 = vmatprep.subr.mxu0 0.0
          %5141 = vmatpush1.msra.mxu0 %v4992
          %5142 = vmatprep.subr.mxu0 0.0
          %5143 = vmatpush1.msra.mxu0 %v4991
          %5144 = vmatprep.subr.mxu0 0.0
          %5145 = vmatpush1.msra.mxu0 %v4990
          %5146 = vmatprep.subr.mxu0 0.0
          %5147 = vmatpush1.msra.mxu0 %v4989
          %5148 = vmatprep.subr.mxu0 0.0
          %5149 = vmatpush1.msra.mxu0 %v4988
          %5150 = vmatprep.subr.mxu0 0.0
          %5151 = vmatpush1.msra.mxu0 %v4987
          %5152 = vmatprep.subr.mxu0 0.0
          %5153 = vmatpush1.msra.mxu0 %v4986
          %5154 = vmatprep.subr.mxu0 0.0
          %5155 = vmatpush1.msra.mxu0 %v4985
          %5156 = vmatprep.subr.mxu0 0.0
          %5157 = vmatpush1.msra.mxu0 %v4984
          %5158 = vmatprep.subr.mxu0 0.0
          %5159 = vmatpush1.msra.mxu0 %v4983
          %5160 = vmatprep.subr.mxu0 0.0
          %5161 = vmatpush1.msra.mxu0 %v4982
          %5162 = vmatprep.subr.mxu0 0.0
          %5163 = vmatpush1.msra.mxu0 %v4981
          %5164 = vmatprep.subr.mxu0 0.0
          %5165 = vmatpush1.msra.mxu0 %v4980
          %5166 = vmatprep.subr.mxu0 0.0
          %5167 = vmatpush1.msra.mxu0 %v4979
          %5168 = vmatprep.subr.mxu0 0.0
          %5169 = vmatpush1.msra.mxu0 %v4978
          %5170 = vmatprep.subr.mxu0 0.0
          %5171 = vmatpush2.msra.mxu0 %v5009
          %5172 = vmatprep.subr.mxu0 0.0
          %5173 = vmatpush2.msra.mxu0 %v5008
          %5174 = vmatprep.subr.mxu0 0.0
          %5175 = vmatpush2.msra.mxu0 %v5007
          %5176 = vmatprep.subr.mxu0 0.0
          %5177 = vmatpush2.msra.mxu0 %v5006
          %5178 = vmatprep.subr.mxu0 0.0
          %5179 = vmatpush2.msra.mxu0 %v5005
          %5180 = vmatprep.subr.mxu0 0.0
          %5181 = vmatpush2.msra.mxu0 %v5004
          %5182 = vmatprep.subr.mxu0 0.0
          %5183 = vmatpush2.msra.mxu0 %v5003
          %5184 = vmatprep.subr.mxu0 0.0
          %5185 = vmatpush2.msra.mxu0 %v5002
          %5186 = vmatprep.subr.mxu0 0.0
          %5187 = vmatpush2.msra.mxu0 %v5001
          %5188 = vmatprep.subr.mxu0 0.0
          %5189 = vmatpush2.msra.mxu0 %v5000
          %5190 = vmatprep.subr.mxu0 0.0
          %5191 = vmatpush2.msra.mxu0 %v4999
          %5192 = vmatprep.subr.mxu0 0.0
          %5193 = vmatpush2.msra.mxu0 %v4998
          %5194 = vmatprep.subr.mxu0 0.0
          %5195 = vmatpush2.msra.mxu0 %v4997
          %5196 = vmatprep.subr.mxu0 0.0
          %5197 = vmatpush2.msra.mxu0 %v4996
          %5198 = vmatprep.subr.mxu0 0.0
          %5199 = vmatpush2.msra.mxu0 %v4995
          %5200 = vmatprep.subr.mxu0 0.0
          %5201 = vmatpush2.msra.mxu0 %v4994
          %5202 = vmatprep.mubr.f32.mxu0 %v4801
          %5203 = vmatmul.mubr.f32.gmra.mxu0 %v4795
          %v5204 = vpop.f32.mrf.mxu0
          %v5205 = vadd.f32 0.0, %v5204
          %v5206 = vpop.f32.mrf.mxu0
          %5207 = vdwg.mxu0
          %5208 = vmatprep.subr.mxu0 0.0
          %5209 = vmatpush1.msra.mxu0 %v5025
          %5210 = vmatprep.subr.mxu0 0.0
          %5211 = vmatpush1.msra.mxu0 %v5024
          %5212 = vmatprep.subr.mxu0 0.0
          %5213 = vmatpush1.msra.mxu0 %v5023
          %5214 = vmatprep.subr.mxu0 0.0
          %5215 = vmatpush1.msra.mxu0 %v5022
          %5216 = vmatprep.subr.mxu0 0.0
          %5217 = vmatpush1.msra.mxu0 %v5021
          %5218 = vmatprep.subr.mxu0 0.0
          %5219 = vmatpush1.msra.mxu0 %v5020
          %5220 = vmatprep.subr.mxu0 0.0
          %5221 = vmatpush1.msra.mxu0 %v5019
          %5222 = vmatprep.subr.mxu0 0.0
          %5223 = vmatpush1.msra.mxu0 %v5018
          %5224 = vmatprep.subr.mxu0 0.0
          %5225 = vmatpush1.msra.mxu0 %v5017
          %5226 = vmatprep.subr.mxu0 0.0
          %5227 = vmatpush1.msra.mxu0 %v5016
          %5228 = vmatprep.subr.mxu0 0.0
          %5229 = vmatpush1.msra.mxu0 %v5015
          %5230 = vmatprep.subr.mxu0 0.0
          %5231 = vmatpush1.msra.mxu0 %v5014
          %5232 = vmatprep.subr.mxu0 0.0
          %5233 = vmatpush1.msra.mxu0 %v5013
          %5234 = vmatprep.subr.mxu0 0.0
          %5235 = vmatpush1.msra.mxu0 %v5012
          %5236 = vmatprep.subr.mxu0 0.0
          %5237 = vmatpush1.msra.mxu0 %v5011
          %5238 = vmatprep.subr.mxu0 0.0
          %5239 = vmatpush1.msra.mxu0 %v5010
          %5240 = vmatprep.subr.mxu0 0.0
          %5241 = vmatpush2.msra.mxu0 %v5041
          %5242 = vmatprep.subr.mxu0 0.0
          %5243 = vmatpush2.msra.mxu0 %v5040
          %5244 = vmatprep.subr.mxu0 0.0
          %5245 = vmatpush2.msra.mxu0 %v5039
          %5246 = vmatprep.subr.mxu0 0.0
          %5247 = vmatpush2.msra.mxu0 %v5038
          %5248 = vmatprep.subr.mxu0 0.0
          %5249 = vmatpush2.msra.mxu0 %v5037
          %5250 = vmatprep.subr.mxu0 0.0
          %5251 = vmatpush2.msra.mxu0 %v5036
          %5252 = vmatprep.subr.mxu0 0.0
          %5253 = vmatpush2.msra.mxu0 %v5035
          %5254 = vmatprep.subr.mxu0 0.0
          %5255 = vmatpush2.msra.mxu0 %v5034
          %5256 = vmatprep.subr.mxu0 0.0
          %5257 = vmatpush2.msra.mxu0 %v5033
          %5258 = vmatprep.subr.mxu0 0.0
          %5259 = vmatpush2.msra.mxu0 %v5032
          %5260 = vmatprep.subr.mxu0 0.0
          %5261 = vmatpush2.msra.mxu0 %v5031
          %5262 = vmatprep.subr.mxu0 0.0
          %5263 = vmatpush2.msra.mxu0 %v5030
          %5264 = vmatprep.subr.mxu0 0.0
          %5265 = vmatpush2.msra.mxu0 %v5029
          %5266 = vmatprep.subr.mxu0 0.0
          %5267 = vmatpush2.msra.mxu0 %v5028
          %5268 = vmatprep.subr.mxu0 0.0
          %5269 = vmatpush2.msra.mxu0 %v5027
          %5270 = vmatprep.subr.mxu0 0.0
          %5271 = vmatpush2.msra.mxu0 %v5026
          %5272 = vmatprep.mubr.f32.mxu0 %v4813
          %5273 = vmatmul.mubr.f32.gmra.mxu0 %v4807
          %v5274 = vpop.f32.mrf.mxu0
          %v5275 = vadd.f32 %v5205, %v5274
          %v5276 = vpop.f32.mrf.mxu0
          %5277 = vdwg.mxu0
          %5278 = vmatprep.subr.mxu0 0.0
          %5279 = vmatpush1.msra.mxu0 %v5057
          %5280 = vmatprep.subr.mxu0 0.0
          %5281 = vmatpush1.msra.mxu0 %v5056
          %5282 = vmatprep.subr.mxu0 0.0
          %5283 = vmatpush1.msra.mxu0 %v5055
          %5284 = vmatprep.subr.mxu0 0.0
          %5285 = vmatpush1.msra.mxu0 %v5054
          %5286 = vmatprep.subr.mxu0 0.0
          %5287 = vmatpush1.msra.mxu0 %v5053
          %5288 = vmatprep.subr.mxu0 0.0
          %5289 = vmatpush1.msra.mxu0 %v5052
          %5290 = vmatprep.subr.mxu0 0.0
          %5291 = vmatpush1.msra.mxu0 %v5051
          %5292 = vmatprep.subr.mxu0 0.0
          %5293 = vmatpush1.msra.mxu0 %v5050
          %5294 = vmatprep.subr.mxu0 0.0
          %5295 = vmatpush1.msra.mxu0 %v5049
          %5296 = vmatprep.subr.mxu0 0.0
          %5297 = vmatpush1.msra.mxu0 %v5048
          %5298 = vmatprep.subr.mxu0 0.0
          %5299 = vmatpush1.msra.mxu0 %v5047
          %5300 = vmatprep.subr.mxu0 0.0
          %5301 = vmatpush1.msra.mxu0 %v5046
          %5302 = vmatprep.subr.mxu0 0.0
          %5303 = vmatpush1.msra.mxu0 %v5045
          %5304 = vmatprep.subr.mxu0 0.0
          %5305 = vmatpush1.msra.mxu0 %v5044
          %5306 = vmatprep.subr.mxu0 0.0
          %5307 = vmatpush1.msra.mxu0 %v5043
          %5308 = vmatprep.subr.mxu0 0.0
          %5309 = vmatpush1.msra.mxu0 %v5042
          %5310 = vmatprep.subr.mxu0 0.0
          %5311 = vmatpush2.msra.mxu0 %v5073
          %5312 = vmatprep.subr.mxu0 0.0
          %5313 = vmatpush2.msra.mxu0 %v5072
          %5314 = vmatprep.subr.mxu0 0.0
          %5315 = vmatpush2.msra.mxu0 %v5071
          %5316 = vmatprep.subr.mxu0 0.0
          %5317 = vmatpush2.msra.mxu0 %v5070
          %5318 = vmatprep.subr.mxu0 0.0
          %5319 = vmatpush2.msra.mxu0 %v5069
          %5320 = vmatprep.subr.mxu0 0.0
          %5321 = vmatpush2.msra.mxu0 %v5068
          %5322 = vmatprep.subr.mxu0 0.0
          %5323 = vmatpush2.msra.mxu0 %v5067
          %5324 = vmatprep.subr.mxu0 0.0
          %5325 = vmatpush2.msra.mxu0 %v5066
          %5326 = vmatprep.subr.mxu0 0.0
          %5327 = vmatpush2.msra.mxu0 %v5065
          %5328 = vmatprep.subr.mxu0 0.0
          %5329 = vmatpush2.msra.mxu0 %v5064
          %5330 = vmatprep.subr.mxu0 0.0
          %5331 = vmatpush2.msra.mxu0 %v5063
          %5332 = vmatprep.subr.mxu0 0.0
          %5333 = vmatpush2.msra.mxu0 %v5062
          %5334 = vmatprep.subr.mxu0 0.0
          %5335 = vmatpush2.msra.mxu0 %v5061
          %5336 = vmatprep.subr.mxu0 0.0
          %5337 = vmatpush2.msra.mxu0 %v5060
          %5338 = vmatprep.subr.mxu0 0.0
          %5339 = vmatpush2.msra.mxu0 %v5059
          %5340 = vmatprep.subr.mxu0 0.0
          %5341 = vmatpush2.msra.mxu0 %v5058
          %5342 = vmatprep.mubr.f32.mxu0 %v4825
          %5343 = vmatmul.mubr.f32.gmra.mxu0 %v4819
          %v5344 = vpop.f32.mrf.mxu0
          %v5345 = vadd.f32 %v5275, %v5344
          %v5346 = vpop.f32.mrf.mxu0
          %5347 = vdwg.mxu0
          %5348 = vmatprep.subr.mxu0 0.0
          %5349 = vmatpush1.msra.mxu0 %v5089
          %5350 = vmatprep.subr.mxu0 0.0
          %5351 = vmatpush1.msra.mxu0 %v5088
          %5352 = vmatprep.subr.mxu0 0.0
          %5353 = vmatpush1.msra.mxu0 %v5087
          %5354 = vmatprep.subr.mxu0 0.0
          %5355 = vmatpush1.msra.mxu0 %v5086
          %5356 = vmatprep.subr.mxu0 0.0
          %5357 = vmatpush1.msra.mxu0 %v5085
          %5358 = vmatprep.subr.mxu0 0.0
          %5359 = vmatpush1.msra.mxu0 %v5084
          %5360 = vmatprep.subr.mxu0 0.0
          %5361 = vmatpush1.msra.mxu0 %v5083
          %5362 = vmatprep.subr.mxu0 0.0
          %5363 = vmatpush1.msra.mxu0 %v5082
          %5364 = vmatprep.subr.mxu0 0.0
          %5365 = vmatpush1.msra.mxu0 %v5081
          %5366 = vmatprep.subr.mxu0 0.0
          %5367 = vmatpush1.msra.mxu0 %v5080
          %5368 = vmatprep.subr.mxu0 0.0
          %5369 = vmatpush1.msra.mxu0 %v5079
          %5370 = vmatprep.subr.mxu0 0.0
          %5371 = vmatpush1.msra.mxu0 %v5078
          %5372 = vmatprep.subr.mxu0 0.0
          %5373 = vmatpush1.msra.mxu0 %v5077
          %5374 = vmatprep.subr.mxu0 0.0
          %5375 = vmatpush1.msra.mxu0 %v5076
          %5376 = vmatprep.subr.mxu0 0.0
          %5377 = vmatpush1.msra.mxu0 %v5075
          %5378 = vmatprep.subr.mxu0 0.0
          %5379 = vmatpush1.msra.mxu0 %v5074
          %5380 = vmatprep.subr.mxu0 0.0
          %5381 = vmatpush2.msra.mxu0 %v5105
          %5382 = vmatprep.subr.mxu0 0.0
          %5383 = vmatpush2.msra.mxu0 %v5104
          %5384 = vmatprep.subr.mxu0 0.0
          %5385 = vmatpush2.msra.mxu0 %v5103
          %5386 = vmatprep.subr.mxu0 0.0
          %5387 = vmatpush2.msra.mxu0 %v5102
          %5388 = vmatprep.subr.mxu0 0.0
          %5389 = vmatpush2.msra.mxu0 %v5101
          %5390 = vmatprep.subr.mxu0 0.0
          %5391 = vmatpush2.msra.mxu0 %v5100
          %5392 = vmatprep.subr.mxu0 0.0
          %5393 = vmatpush2.msra.mxu0 %v5099
          %5394 = vmatprep.subr.mxu0 0.0
          %5395 = vmatpush2.msra.mxu0 %v5098
          %5396 = vmatprep.subr.mxu0 0.0
          %5397 = vmatpush2.msra.mxu0 %v5097
          %5398 = vmatprep.subr.mxu0 0.0
          %5399 = vmatpush2.msra.mxu0 %v5096
          %5400 = vmatprep.subr.mxu0 0.0
          %5401 = vmatpush2.msra.mxu0 %v5095
          %5402 = vmatprep.subr.mxu0 0.0
          %5403 = vmatpush2.msra.mxu0 %v5094
          %5404 = vmatprep.subr.mxu0 0.0
          %5405 = vmatpush2.msra.mxu0 %v5093
          %5406 = vmatprep.subr.mxu0 0.0
          %5407 = vmatpush2.msra.mxu0 %v5092
          %5408 = vmatprep.subr.mxu0 0.0
          %5409 = vmatpush2.msra.mxu0 %v5091
          %5410 = vmatprep.subr.mxu0 0.0
          %5411 = vmatpush2.msra.mxu0 %v5090
          %5412 = vmatprep.mubr.f32.mxu0 %v4837
          %5413 = vmatmul.mubr.f32.gmra.mxu0 %v4831
          %v5414 = vpop.f32.mrf.mxu0
          %v5415 = vadd.f32 %v5345, %v5414
          %v5416 = vpop.f32.mrf.mxu0
          %5417 = vdwg.mxu0
          %5418 = vmatprep.subr.mxu0 0.0
          %5419 = vmatpush1.msra.mxu0 %v5121
          %5420 = vmatprep.subr.mxu0 0.0
          %5421 = vmatpush1.msra.mxu0 %v5120
          %5422 = vmatprep.subr.mxu0 0.0
          %5423 = vmatpush1.msra.mxu0 %v5119
          %5424 = vmatprep.subr.mxu0 0.0
          %5425 = vmatpush1.msra.mxu0 %v5118
          %5426 = vmatprep.subr.mxu0 0.0
          %5427 = vmatpush1.msra.mxu0 %v5117
          %5428 = vmatprep.subr.mxu0 0.0
          %5429 = vmatpush1.msra.mxu0 %v5116
          %5430 = vmatprep.subr.mxu0 0.0
          %5431 = vmatpush1.msra.mxu0 %v5115
          %5432 = vmatprep.subr.mxu0 0.0
          %5433 = vmatpush1.msra.mxu0 %v5114
          %5434 = vmatprep.subr.mxu0 0.0
          %5435 = vmatpush1.msra.mxu0 %v5113
          %5436 = vmatprep.subr.mxu0 0.0
          %5437 = vmatpush1.msra.mxu0 %v5112
          %5438 = vmatprep.subr.mxu0 0.0
          %5439 = vmatpush1.msra.mxu0 %v5111
          %5440 = vmatprep.subr.mxu0 0.0
          %5441 = vmatpush1.msra.mxu0 %v5110
          %5442 = vmatprep.subr.mxu0 0.0
          %5443 = vmatpush1.msra.mxu0 %v5109
          %5444 = vmatprep.subr.mxu0 0.0
          %5445 = vmatpush1.msra.mxu0 %v5108
          %5446 = vmatprep.subr.mxu0 0.0
          %5447 = vmatpush1.msra.mxu0 %v5107
          %5448 = vmatprep.subr.mxu0 0.0
          %5449 = vmatpush1.msra.mxu0 %v5106
          %5450 = vmatprep.subr.mxu0 0.0
          %5451 = vmatpush2.msra.mxu0 %v5137
          %5452 = vmatprep.subr.mxu0 0.0
          %5453 = vmatpush2.msra.mxu0 %v5136
          %5454 = vmatprep.subr.mxu0 0.0
          %5455 = vmatpush2.msra.mxu0 %v5135
          %5456 = vmatprep.subr.mxu0 0.0
          %5457 = vmatpush2.msra.mxu0 %v5134
          %5458 = vmatprep.subr.mxu0 0.0
          %5459 = vmatpush2.msra.mxu0 %v5133
          %5460 = vmatprep.subr.mxu0 0.0
          %5461 = vmatpush2.msra.mxu0 %v5132
          %5462 = vmatprep.subr.mxu0 0.0
          %5463 = vmatpush2.msra.mxu0 %v5131
          %5464 = vmatprep.subr.mxu0 0.0
          %5465 = vmatpush2.msra.mxu0 %v5130
          %5466 = vmatprep.subr.mxu0 0.0
          %5467 = vmatpush2.msra.mxu0 %v5129
          %5468 = vmatprep.subr.mxu0 0.0
          %5469 = vmatpush2.msra.mxu0 %v5128
          %5470 = vmatprep.subr.mxu0 0.0
          %5471 = vmatpush2.msra.mxu0 %v5127
          %5472 = vmatprep.subr.mxu0 0.0
          %5473 = vmatpush2.msra.mxu0 %v5126
          %5474 = vmatprep.subr.mxu0 0.0
          %5475 = vmatpush2.msra.mxu0 %v5125
          %5476 = vmatprep.subr.mxu0 0.0
          %5477 = vmatpush2.msra.mxu0 %v5124
          %5478 = vmatprep.subr.mxu0 0.0
          %5479 = vmatpush2.msra.mxu0 %v5123
          %5480 = vmatprep.subr.mxu0 0.0
          %5481 = vmatpush2.msra.mxu0 %v5122
          %5482 = vmatprep.mubr.f32.mxu0 %v4849
          %5483 = vmatmul.mubr.f32.gmra.mxu0 %v4843
          %v5484 = vpop.f32.mrf.mxu0
          %v5485 = vadd.f32 %v5415, %v5484
          %v5486 = vpop.f32.mrf.mxu0
          %5487 = vdwg.mxu0
          %5488 = vmatprep.subr.mxu0 0.0
          %5489 = vmatpush1.msra.mxu0 %v4865
          %5490 = vmatprep.subr.mxu0 0.0
          %5491 = vmatpush1.msra.mxu0 %v4864
          %5492 = vmatprep.subr.mxu0 0.0
          %5493 = vmatpush1.msra.mxu0 %v4863
          %5494 = vmatprep.subr.mxu0 0.0
          %5495 = vmatpush1.msra.mxu0 %v4862
          %5496 = vmatprep.subr.mxu0 0.0
          %5497 = vmatpush1.msra.mxu0 %v4861
          %5498 = vmatprep.subr.mxu0 0.0
          %5499 = vmatpush1.msra.mxu0 %v4860
          %5500 = vmatprep.subr.mxu0 0.0
          %5501 = vmatpush1.msra.mxu0 %v4859
          %5502 = vmatprep.subr.mxu0 0.0
          %5503 = vmatpush1.msra.mxu0 %v4858
          %5504 = vmatprep.subr.mxu0 0.0
          %5505 = vmatpush1.msra.mxu0 %v4857
          %5506 = vmatprep.subr.mxu0 0.0
          %5507 = vmatpush1.msra.mxu0 %v4856
          %5508 = vmatprep.subr.mxu0 0.0
          %5509 = vmatpush1.msra.mxu0 %v4855
          %5510 = vmatprep.subr.mxu0 0.0
          %5511 = vmatpush1.msra.mxu0 %v4854
          %5512 = vmatprep.subr.mxu0 0.0
          %5513 = vmatpush1.msra.mxu0 %v4853
          %5514 = vmatprep.subr.mxu0 0.0
          %5515 = vmatpush1.msra.mxu0 %v4852
          %5516 = vmatprep.subr.mxu0 0.0
          %5517 = vmatpush1.msra.mxu0 %v4851
          %5518 = vmatprep.subr.mxu0 0.0
          %5519 = vmatpush1.msra.mxu0 %v4850
          %5520 = vmatprep.subr.mxu0 0.0
          %5521 = vmatpush2.msra.mxu0 %v4881
          %5522 = vmatprep.subr.mxu0 0.0
          %5523 = vmatpush2.msra.mxu0 %v4880
          %5524 = vmatprep.subr.mxu0 0.0
          %5525 = vmatpush2.msra.mxu0 %v4879
          %5526 = vmatprep.subr.mxu0 0.0
          %5527 = vmatpush2.msra.mxu0 %v4878
          %5528 = vmatprep.subr.mxu0 0.0
          %5529 = vmatpush2.msra.mxu0 %v4877
          %5530 = vmatprep.subr.mxu0 0.0
          %5531 = vmatpush2.msra.mxu0 %v4876
          %5532 = vmatprep.subr.mxu0 0.0
          %5533 = vmatpush2.msra.mxu0 %v4875
          %5534 = vmatprep.subr.mxu0 0.0
          %5535 = vmatpush2.msra.mxu0 %v4874
          %5536 = vmatprep.subr.mxu0 0.0
          %5537 = vmatpush2.msra.mxu0 %v4873
          %5538 = vmatprep.subr.mxu0 0.0
          %5539 = vmatpush2.msra.mxu0 %v4872
          %5540 = vmatprep.subr.mxu0 0.0
          %5541 = vmatpush2.msra.mxu0 %v4871
          %5542 = vmatprep.subr.mxu0 0.0
          %5543 = vmatpush2.msra.mxu0 %v4870
          %5544 = vmatprep.subr.mxu0 0.0
          %5545 = vmatpush2.msra.mxu0 %v4869
          %5546 = vmatprep.subr.mxu0 0.0
          %5547 = vmatpush2.msra.mxu0 %v4868
          %5548 = vmatprep.subr.mxu0 0.0
          %5549 = vmatpush2.msra.mxu0 %v4867
          %5550 = vmatprep.subr.mxu0 0.0
          %5551 = vmatpush2.msra.mxu0 %v4866
          %5552 = vmatprep.mubr.f32.mxu0 %v4743
          %5553 = vmatmul.mubr.f32.gmra.mxu0 %v4737
          %v5554 = vpop.f32.mrf.mxu0
          %v5555 = vadd.f32 %v5485, %v5554
          %v5556 = vpop.f32.mrf.mxu0
          %5557 = vdwg.mxu0
          %5558 = vmatprep.subr.mxu0 0.0
          %5559 = vmatpush1.msra.mxu0 %v4897
          %5560 = vmatprep.subr.mxu0 0.0
          %5561 = vmatpush1.msra.mxu0 %v4896
          %5562 = vmatprep.subr.mxu0 0.0
          %5563 = vmatpush1.msra.mxu0 %v4895
          %5564 = vmatprep.subr.mxu0 0.0
          %5565 = vmatpush1.msra.mxu0 %v4894
          %5566 = vmatprep.subr.mxu0 0.0
          %5567 = vmatpush1.msra.mxu0 %v4893
          %5568 = vmatprep.subr.mxu0 0.0
          %5569 = vmatpush1.msra.mxu0 %v4892
          %5570 = vmatprep.subr.mxu0 0.0
          %5571 = vmatpush1.msra.mxu0 %v4891
          %5572 = vmatprep.subr.mxu0 0.0
          %5573 = vmatpush1.msra.mxu0 %v4890
          %5574 = vmatprep.subr.mxu0 0.0
          %5575 = vmatpush1.msra.mxu0 %v4889
          %5576 = vmatprep.subr.mxu0 0.0
          %5577 = vmatpush1.msra.mxu0 %v4888
          %5578 = vmatprep.subr.mxu0 0.0
          %5579 = vmatpush1.msra.mxu0 %v4887
          %5580 = vmatprep.subr.mxu0 0.0
          %5581 = vmatpush1.msra.mxu0 %v4886
          %5582 = vmatprep.subr.mxu0 0.0
          %5583 = vmatpush1.msra.mxu0 %v4885
          %5584 = vmatprep.subr.mxu0 0.0
          %5585 = vmatpush1.msra.mxu0 %v4884
          %5586 = vmatprep.subr.mxu0 0.0
          %5587 = vmatpush1.msra.mxu0 %v4883
          %5588 = vmatprep.subr.mxu0 0.0
          %5589 = vmatpush1.msra.mxu0 %v4882
          %5590 = vmatprep.subr.mxu0 0.0
          %5591 = vmatpush2.msra.mxu0 %v4913
          %5592 = vmatprep.subr.mxu0 0.0
          %5593 = vmatpush2.msra.mxu0 %v4912
          %5594 = vmatprep.subr.mxu0 0.0
          %5595 = vmatpush2.msra.mxu0 %v4911
          %5596 = vmatprep.subr.mxu0 0.0
          %5597 = vmatpush2.msra.mxu0 %v4910
          %5598 = vmatprep.subr.mxu0 0.0
          %5599 = vmatpush2.msra.mxu0 %v4909
          %5600 = vmatprep.subr.mxu0 0.0
          %5601 = vmatpush2.msra.mxu0 %v4908
          %5602 = vmatprep.subr.mxu0 0.0
          %5603 = vmatpush2.msra.mxu0 %v4907
          %5604 = vmatprep.subr.mxu0 0.0
          %5605 = vmatpush2.msra.mxu0 %v4906
          %5606 = vmatprep.subr.mxu0 0.0
          %5607 = vmatpush2.msra.mxu0 %v4905
          %5608 = vmatprep.subr.mxu0 0.0
          %5609 = vmatpush2.msra.mxu0 %v4904
          %5610 = vmatprep.subr.mxu0 0.0
          %5611 = vmatpush2.msra.mxu0 %v4903
          %5612 = vmatprep.subr.mxu0 0.0
          %5613 = vmatpush2.msra.mxu0 %v4902
          %5614 = vmatprep.subr.mxu0 0.0
          %5615 = vmatpush2.msra.mxu0 %v4901
          %5616 = vmatprep.subr.mxu0 0.0
          %5617 = vmatpush2.msra.mxu0 %v4900
          %5618 = vmatprep.subr.mxu0 0.0
          %5619 = vmatpush2.msra.mxu0 %v4899
          %5620 = vmatprep.subr.mxu0 0.0
          %5621 = vmatpush2.msra.mxu0 %v4898
          %5622 = vmatprep.mubr.f32.mxu0 %v4755
          %5623 = vmatmul.mubr.f32.gmra.mxu0 %v4749
          %v5624 = vpop.f32.mrf.mxu0
          %v5625 = vadd.f32 %v5555, %v5624
          %v5626 = vpop.f32.mrf.mxu0
          %5627 = vdwg.mxu0
          %5628 = vmatprep.subr.mxu0 0.0
          %5629 = vmatpush1.msra.mxu0 %v4929
          %5630 = vmatprep.subr.mxu0 0.0
          %5631 = vmatpush1.msra.mxu0 %v4928
          %5632 = vmatprep.subr.mxu0 0.0
          %5633 = vmatpush1.msra.mxu0 %v4927
          %5634 = vmatprep.subr.mxu0 0.0
          %5635 = vmatpush1.msra.mxu0 %v4926
          %5636 = vmatprep.subr.mxu0 0.0
          %5637 = vmatpush1.msra.mxu0 %v4925
          %5638 = vmatprep.subr.mxu0 0.0
          %5639 = vmatpush1.msra.mxu0 %v4924
          %5640 = vmatprep.subr.mxu0 0.0
          %5641 = vmatpush1.msra.mxu0 %v4923
          %5642 = vmatprep.subr.mxu0 0.0
          %5643 = vmatpush1.msra.mxu0 %v4922
          %5644 = vmatprep.subr.mxu0 0.0
          %5645 = vmatpush1.msra.mxu0 %v4921
          %5646 = vmatprep.subr.mxu0 0.0
          %5647 = vmatpush1.msra.mxu0 %v4920
          %5648 = vmatprep.subr.mxu0 0.0
          %5649 = vmatpush1.msra.mxu0 %v4919
          %5650 = vmatprep.subr.mxu0 0.0
          %5651 = vmatpush1.msra.mxu0 %v4918
          %5652 = vmatprep.subr.mxu0 0.0
          %5653 = vmatpush1.msra.mxu0 %v4917
          %5654 = vmatprep.subr.mxu0 0.0
          %5655 = vmatpush1.msra.mxu0 %v4916
          %5656 = vmatprep.subr.mxu0 0.0
          %5657 = vmatpush1.msra.mxu0 %v4915
          %5658 = vmatprep.subr.mxu0 0.0
          %5659 = vmatpush1.msra.mxu0 %v4914
          %5660 = vmatprep.subr.mxu0 0.0
          %5661 = vmatpush2.msra.mxu0 %v4945
          %5662 = vmatprep.subr.mxu0 0.0
          %5663 = vmatpush2.msra.mxu0 %v4944
          %5664 = vmatprep.subr.mxu0 0.0
          %5665 = vmatpush2.msra.mxu0 %v4943
          %5666 = vmatprep.subr.mxu0 0.0
          %5667 = vmatpush2.msra.mxu0 %v4942
          %5668 = vmatprep.subr.mxu0 0.0
          %5669 = vmatpush2.msra.mxu0 %v4941
          %5670 = vmatprep.subr.mxu0 0.0
          %5671 = vmatpush2.msra.mxu0 %v4940
          %5672 = vmatprep.subr.mxu0 0.0
          %5673 = vmatpush2.msra.mxu0 %v4939
          %5674 = vmatprep.subr.mxu0 0.0
          %5675 = vmatpush2.msra.mxu0 %v4938
          %5676 = vmatprep.subr.mxu0 0.0
          %5677 = vmatpush2.msra.mxu0 %v4937
          %5678 = vmatprep.subr.mxu0 0.0
          %5679 = vmatpush2.msra.mxu0 %v4936
          %5680 = vmatprep.subr.mxu0 0.0
          %5681 = vmatpush2.msra.mxu0 %v4935
          %5682 = vmatprep.subr.mxu0 0.0
          %5683 = vmatpush2.msra.mxu0 %v4934
          %5684 = vmatprep.subr.mxu0 0.0
          %5685 = vmatpush2.msra.mxu0 %v4933
          %5686 = vmatprep.subr.mxu0 0.0
          %5687 = vmatpush2.msra.mxu0 %v4932
          %5688 = vmatprep.subr.mxu0 0.0
          %5689 = vmatpush2.msra.mxu0 %v4931
          %5690 = vmatprep.subr.mxu0 0.0
          %5691 = vmatpush2.msra.mxu0 %v4930
          %5692 = vmatprep.mubr.f32.mxu0 %v4767
          %5693 = vmatmul.mubr.f32.gmra.mxu0 %v4761
          %v5694 = vpop.f32.mrf.mxu0
          %v5695 = vadd.f32 %v5625, %v5694
          %v5696 = vpop.f32.mrf.mxu0
          %5697 = vdwg.mxu0
          %5698 = vmatprep.subr.mxu0 0.0
          %5699 = vmatpush1.msra.mxu0 %v4961
          %5700 = vmatprep.subr.mxu0 0.0
          %5701 = vmatpush1.msra.mxu0 %v4960
          %5702 = vmatprep.subr.mxu0 0.0
          %5703 = vmatpush1.msra.mxu0 %v4959
          %5704 = vmatprep.subr.mxu0 0.0
          %5705 = vmatpush1.msra.mxu0 %v4958
          %5706 = vmatprep.subr.mxu0 0.0
          %5707 = vmatpush1.msra.mxu0 %v4957
          %5708 = vmatprep.subr.mxu0 0.0
          %5709 = vmatpush1.msra.mxu0 %v4956
          %5710 = vmatprep.subr.mxu0 0.0
          %5711 = vmatpush1.msra.mxu0 %v4955
          %5712 = vmatprep.subr.mxu0 0.0
          %5713 = vmatpush1.msra.mxu0 %v4954
          %5714 = vmatprep.subr.mxu0 0.0
          %5715 = vmatpush1.msra.mxu0 %v4953
          %5716 = vmatprep.subr.mxu0 0.0
          %5717 = vmatpush1.msra.mxu0 %v4952
          %5718 = vmatprep.subr.mxu0 0.0
          %5719 = vmatpush1.msra.mxu0 %v4951
          %5720 = vmatprep.subr.mxu0 0.0
          %5721 = vmatpush1.msra.mxu0 %v4950
          %5722 = vmatprep.subr.mxu0 0.0
          %5723 = vmatpush1.msra.mxu0 %v4949
          %5724 = vmatprep.subr.mxu0 0.0
          %5725 = vmatpush1.msra.mxu0 %v4948
          %5726 = vmatprep.subr.mxu0 0.0
          %5727 = vmatpush1.msra.mxu0 %v4947
          %5728 = vmatprep.subr.mxu0 0.0
          %5729 = vmatpush1.msra.mxu0 %v4946
          %5730 = vmatprep.subr.mxu0 0.0
          %5731 = vmatpush2.msra.mxu0 %v4977
          %5732 = vmatprep.subr.mxu0 0.0
          %5733 = vmatpush2.msra.mxu0 %v4976
          %5734 = vmatprep.subr.mxu0 0.0
          %5735 = vmatpush2.msra.mxu0 %v4975
          %5736 = vmatprep.subr.mxu0 0.0
          %5737 = vmatpush2.msra.mxu0 %v4974
          %5738 = vmatprep.subr.mxu0 0.0
          %5739 = vmatpush2.msra.mxu0 %v4973
          %5740 = vmatprep.subr.mxu0 0.0
          %5741 = vmatpush2.msra.mxu0 %v4972
          %5742 = vmatprep.subr.mxu0 0.0
          %5743 = vmatpush2.msra.mxu0 %v4971
          %5744 = vmatprep.subr.mxu0 0.0
          %5745 = vmatpush2.msra.mxu0 %v4970
          %5746 = vmatprep.subr.mxu0 0.0
          %5747 = vmatpush2.msra.mxu0 %v4969
          %5748 = vmatprep.subr.mxu0 0.0
          %5749 = vmatpush2.msra.mxu0 %v4968
          %5750 = vmatprep.subr.mxu0 0.0
          %5751 = vmatpush2.msra.mxu0 %v4967
          %5752 = vmatprep.subr.mxu0 0.0
          %5753 = vmatpush2.msra.mxu0 %v4966
          %5754 = vmatprep.subr.mxu0 0.0
          %5755 = vmatpush2.msra.mxu0 %v4965
          %5756 = vmatprep.subr.mxu0 0.0
          %5757 = vmatpush2.msra.mxu0 %v4964
          %5758 = vmatprep.subr.mxu0 0.0
          %5759 = vmatpush2.msra.mxu0 %v4963
          %5760 = vmatprep.subr.mxu0 0.0
          %5761 = vmatpush2.msra.mxu0 %v4962
          %5762 = vmatprep.mubr.f32.mxu0 %v4779
          %5763 = vmatmul.mubr.f32.gmra.mxu0 %v4773
          %v5764 = vpop.f32.mrf.mxu0
          %v5765 = vadd.f32 %v5695, %v5764
          %v5766 = vpop.f32.mrf.mxu0
          %5767 = vdwg.mxu0
          %v5768 = vld [vmem:[%s3] sm:$0x1]
          %v5769 = vadd.f32 %v5765, %v5768
          %vm5770 = vcmask 8192
          %5771 = vst.msk [vmem:[%s212] sm:$0x1] %vm5770, %v5769
        $region44: #{tpu_custom_call.1} parent=35 // pred_fallthru
          _
        %s5772 = sand.u32 %s129, 1
        %s5773 = scalar_lea.sflag [#allocation5], %s5772
        %s5774 = sand.u32 %s129, 1
        %s5775 = scalar_lea.vmem [#allocation4], %s5774
        // Predicated region
        $region45: #{tpu_custom_call.1} parent=35 // pred_check
          %p5776 = pneg %p139
        $region46: #{tpu_custom_call.1} parent=35 // pred_check_branch
          %5778 = sbr.rel (%p5776) target = $region48
        $region47: #{tpu_custom_call.1} parent=35 // pred_region
          %s5780 = ssub.s32 16, 16
          %5781 = vsyncadd %s5773, %s5780
          %s5782 = smul.addr %s22, 16
          %s5783 = scalar_lea.hbm %s4, %s5782
          %s5785 = sshll.u32 %s5775, 4
          %s5786 = int_to_ptr.vmem [resolvable:$true] %s5785
          %5788 = dma.vmem_to_hbm [thread:$0]  %s5786, 16, %s5783, %s5773
        $region48: #{tpu_custom_call.1} parent=35 // pred_fallthru
          _
      $region36: #{tpu_custom_call.1} parent=5 // pred_fallthru
        _
      %p5789 = scmp.le.s32.totalorder 2, %s13
      // Predicated region
      $region49: #{tpu_custom_call.1} parent=5 // pred_check
        %p5790 = pneg %p5789
      $region50: #{tpu_custom_call.1} parent=5 // pred_check_branch
        %5792 = sbr.rel (%p5790) target = $region52
      $region51: #{tpu_custom_call.1} parent=5 // pred_region
        %s5793 = ssub.s32 %s13, 2
        // Predicated region
        $region53: #{tpu_custom_call.1} parent=51 // pred_check
          %p5794 = pneg %p145
        $region54: #{tpu_custom_call.1} parent=51 // pred_check_branch
          %5796 = sbr.rel (%p5794) target = $region56
        $region55: #{tpu_custom_call.1} parent=51 // pred_region
          %s5797 = sand.u32 %s130, 1
          %s5798 = scalar_lea.sflag [#allocation5], %s5797
          %s5799 = sand.u32 %s130, 1
          %s5800 = scalar_lea.vmem [#allocation4], %s5799
          %5801 = dma.done %s5798, 16
        $region56: #{tpu_custom_call.1} parent=51 // pred_fallthru
          _
      $region52: #{tpu_custom_call.1} parent=5 // pred_fallthru
        _
    $region6: #{tpu_custom_call.1} parent=1 // loop_footer
      %s17 = sadd.s32 1, %s13
    $region7: #{tpu_custom_call.1} parent=1 // loop_footer_branch
      %12 = sbr.rel target = $region3
    $region8: #{tpu_custom_call.1} parent=1 // loop_exit
      _
    %5802 = vsyncpa [#allocation5], 1
    %s5803 = scalar_lea.sflag [#allocation5], 1
    %5804 = vsyncpa %s5803, 1

</llo_original>
